<compile_context>
chip_gen: v6e
topology: v6e:2x2x1
jax: 0.10.0
libtpu: 0.0.40
codegen_flags: <defaults>
</compile_context>

<pallas_src>
import math
from functools import partial

import jax
import jax.numpy as jnp
from jax import lax
from jax.experimental import pallas as pl
from jax.experimental.pallas import tpu as pltpu

# ---- mini-BERT config -------------------------------------------------------
VOCAB = 64
PAD_VOCAB = 128          # lane-dense classifier output width (multiple of 128)
HIDDEN = 32
HEADS = 4
HEAD_DIM = HIDDEN // HEADS
LAYERS = 2
INTER = 64
SEQ = 8
BATCH = 2
MAX_POS = 16
LN_EPS = 1e-12
NEG_INF = -1e30


# ---- in-kernel helpers ------------------------------------------------------
def _layernorm(x, g, b):
    """Two-pass LayerNorm statistics (robust against mean/variance cancellation)."""
    mu = jnp.mean(x, axis=-1, keepdims=True)
    xc = x - mu
    var = jnp.mean(xc * xc, axis=-1, keepdims=True)
    return xc * lax.rsqrt(var + LN_EPS) * g + b


def _gelu(x):
    # tanh-approximate GELU: transcendental lands on the EUP slot instead of an
    # erf polynomial on the VPU (reviewer item for v5e; also helps v6e/v7x).
    c = math.sqrt(2.0 / math.pi)
    return 0.5 * x * (1.0 + jnp.tanh(c * (x + 0.044715 * x * x * x)))


# ---- the single fused kernel (one batch element per grid step) ---------------
def _fused_lm_kernel(
    # inputs
    ids_ref, word_emb_ref, pos_type_ref, emb_g_ref, emb_b_ref,
    qw_ref, qb_ref, kw_ref, kb_ref, vw_ref, vb_ref,
    aow_ref, aob_ref, ln1g_ref, ln1b_ref,
    f1w_ref, f1b_ref, f2w_ref, f2b_ref, ln2g_ref, ln2b_ref,
    kvmask_ref, summat_ref, cls_w_ref, cls_b_ref,
    # output
    out_ref,
    *, heads,
):
    seq = ids_ref.shape[0]                    # S rows for this batch element
    vocab = word_emb_ref.shape[0]
    n_layers = qw_ref.shape[0]

    # ---- embeddings: word gather as one-hot matmul on the MXU (bf16 x bf16) ----
    ids = ids_ref[...]                                              # (S, 1) int32
    one_hot = (lax.broadcasted_iota(jnp.int32, (seq, vocab), 1) == ids
               ).astype(jnp.bfloat16)
    x = jnp.dot(one_hot, word_emb_ref[...], preferred_element_type=jnp.float32)
    x = x + pos_type_ref[...]                                       # pos + token-type(0)
    x = _layernorm(x, emb_g_ref[...], emb_b_ref[...])

    kvmask = kvmask_ref[...]     # (heads*S, HIDDEN) f32 0/1 block-diagonal mask
    summat = summat_ref[...]     # (heads*S, heads*S) bf16 per-head-group ones

    # ---- encoder layers (static unrolled) --------------------------------------
    for l in range(n_layers):
        xb = x.astype(jnp.bfloat16)
        # three lane-0-aligned projections; 1/sqrt(head_dim) folded into qw/qb
        q = jnp.dot(xb, qw_ref[l], preferred_element_type=jnp.float32) + qb_ref[l]
        k = jnp.dot(xb, kw_ref[l], preferred_element_type=jnp.float32) + kb_ref[l]
        v = jnp.dot(xb, vw_ref[l], preferred_element_type=jnp.float32) + vb_ref[l]

        # block-diagonal K / V: replicate along sublanes, mask off other heads' columns.
        # row h*S+j of k_big/v_big holds head h's columns of token j, zeros elsewhere.
        k_big = (jnp.concatenate([k] * heads, axis=0) * kvmask).astype(jnp.bfloat16)
        v_big = (jnp.concatenate([v] * heads, axis=0) * kvmask).astype(jnp.bfloat16)

        # scores for ALL heads in one matmul: s[i, h*S+j] = <q_h[i], k_h[j]>
        s = lax.dot_general(q.astype(jnp.bfloat16), k_big,
                            (((1,), (1,)), ((), ())),
                            preferred_element_type=jnp.float32)      # (S, heads*S)
        # row-wide max is a per-(i) constant, so it is a valid softmax shift per head
        m = jnp.max(s, axis=-1, keepdims=True)
        e = jnp.exp(s - m)
        # per-head sums, broadcast back across each head's lane group, via one matmul
        denom = jnp.dot(e.astype(jnp.bfloat16), summat,
                        preferred_element_type=jnp.float32)
        p = e * pl.reciprocal(denom, approx=True)                    # EUP reciprocal
        # context for ALL heads in one matmul: (S, heads*S) @ (heads*S, HIDDEN)
        ctx = jnp.dot(p.astype(jnp.bfloat16), v_big,
                      preferred_element_type=jnp.float32)            # (S, HIDDEN)

        attn = jnp.dot(ctx.astype(jnp.bfloat16), aow_ref[l],
                       preferred_element_type=jnp.float32) + aob_ref[l]
        x = _layernorm(x + attn, ln1g_ref[l], ln1b_ref[l])

        # feed-forward: w1 + GELU + w2
        xb = x.astype(jnp.bfloat16)
        h1 = jnp.dot(xb, f1w_ref[l], preferred_element_type=jnp.float32) + f1b_ref[l]
        h1 = _gelu(h1)
        h2 = jnp.dot(h1.astype(jnp.bfloat16), f2w_ref[l],
                     preferred_element_type=jnp.float32) + f2b_ref[l]
        x = _layernorm(x + h2, ln2g_ref[l], ln2b_ref[l])

    # TODO(synk): nn.Dropout(0.1) is identity at inference; training-mode mask not modeled.

    # ---- classifier + exact f32 softmax, lane-dense 128-wide padded output -----
    logits = jnp.dot(x.astype(jnp.bfloat16), cls_w_ref[...],
                     preferred_element_type=jnp.float32) + cls_b_ref[...]
    lane = lax.broadcasted_iota(jnp.int32, logits.shape, 1)
    logits = jnp.where(lane < vocab, logits, NEG_INF)     # mask pad columns
    m = jnp.max(logits, axis=-1, keepdims=True)
    e = jnp.exp(logits - m)
    out_ref[...] = e * pl.reciprocal(jnp.sum(e, axis=-1, keepdims=True), approx=False)


# ---- pallas_call wrapper ----------------------------------------------------
def _const_spec(shape):
    return pl.BlockSpec(shape, lambda b: (0,) * len(shape))


def language_model_forward(params, input_ids):
    B, S = input_ids.shape
    BS = B * S
    inv_sqrt_d = 1.0 / math.sqrt(HEAD_DIM)

    ids = input_ids.reshape(BS, 1).astype(jnp.int32)

    # positional + token-type(0) additive table for one batch element: (S, HIDDEN)
    pos_type = params["pos_emb"][:S] + params["type_emb"][0][None, :]

    layers = params["layers"]

    def stack(name):
        return jnp.stack([lyr[name] for lyr in layers])

    # stacked per-layer weights; matmul weights bf16 (f32 accumulation in-kernel),
    # 1/sqrt(head_dim) folded into Q weights/bias at prep time.
    q_w = (stack("q_w") * inv_sqrt_d).astype(jnp.bfloat16)            # (L, H, H)
    q_b = (stack("q_b") * inv_sqrt_d)[:, None, :]                     # (L, 1, H) f32
    k_w = stack("k_w").astype(jnp.bfloat16)
    k_b = stack("k_b")[:, None, :]
    v_w = stack("v_w").astype(jnp.bfloat16)
    v_b = stack("v_b")[:, None, :]
    ao_w = stack("ao_w").astype(jnp.bfloat16)
    ao_b = stack("ao_b")[:, None, :]
    ln1_g = stack("ln1_g")[:, None, :]
    ln1_b = stack("ln1_b")[:, None, :]
    ffn_w1 = stack("ffn_w1").astype(jnp.bfloat16)                     # (L, H, INTER)
    ffn_b1 = stack("ffn_b1")[:, None, :]
    ffn_w2 = stack("ffn_w2").astype(jnp.bfloat16)                     # (L, INTER, H)
    ffn_b2 = stack("ffn_b2")[:, None, :]
    ln2_g = stack("ln2_g")[:, None, :]
    ln2_b = stack("ln2_b")[:, None, :]

    # attention helper constants (built once, VMEM-resident inputs)
    row_head = jnp.arange(HEADS * S) // S                             # (heads*S,)
    col_head_hidden = jnp.arange(HIDDEN) // HEAD_DIM                  # (HIDDEN,)
    kv_mask = (row_head[:, None] == col_head_hidden[None, :]).astype(jnp.float32)
    sum_mat = (row_head[:, None] == row_head[None, :]).astype(jnp.bfloat16)

    # classifier padded to lane-dense width (zero weight pad; pad cols masked in-kernel)
    cls_w = jnp.pad(params["cls_w"], ((0, 0), (0, PAD_VOCAB - VOCAB))).astype(jnp.bfloat16)
    cls_b = jnp.pad(params["cls_b"], (0, PAD_VOCAB - VOCAB))[None, :]

    args = (
        ids,
        params["word_emb"].astype(jnp.bfloat16),
        pos_type,
        params["emb_ln_g"][None, :],
        params["emb_ln_b"][None, :],
        q_w, q_b, k_w, k_b, v_w, v_b,
        ao_w, ao_b, ln1_g, ln1_b,
        ffn_w1, ffn_b1, ffn_w2, ffn_b2, ln2_g, ln2_b,
        kv_mask, sum_mat,
        cls_w, cls_b,
    )

    in_specs = [pl.BlockSpec((S, 1), lambda b: (b, 0))]        # ids: one batch row-block
    in_specs += [_const_spec(a.shape) for a in args[1:]]       # weights: resident

    probs_pad = pl.pallas_call(
        partial(_fused_lm_kernel, heads=HEADS),
        out_shape=jax.ShapeDtypeStruct((BS, PAD_VOCAB), jnp.float32),
        grid=(B,),                                             # v7x: batch over 2 TCs
        in_specs=in_specs,
        out_specs=pl.BlockSpec((S, PAD_VOCAB), lambda b: (b, 0)),
        compiler_params=pltpu.CompilerParams(dimension_semantics=("parallel",)),
    )(*args)

    # drop lane padding and restore (B, S, VOCAB)
    return probs_pad[:, :VOCAB].reshape(B, S, VOCAB)


# ---- parameter init (deterministic, synthetic) ------------------------------
def init_params(key):
    scale = 0.02
    ks = jax.random.split(key, 8 + LAYERS)
    p = {
        "word_emb": scale * jax.random.normal(ks[0], (VOCAB, HIDDEN), jnp.float32),
        "pos_emb": scale * jax.random.normal(ks[1], (MAX_POS, HIDDEN), jnp.float32),
        "type_emb": scale * jax.random.normal(ks[2], (2, HIDDEN), jnp.float32),
        "emb_ln_g": jnp.ones((HIDDEN,), jnp.float32),
        "emb_ln_b": jnp.zeros((HIDDEN,), jnp.float32),
        "cls_w": scale * jax.random.normal(ks[3], (HIDDEN, VOCAB), jnp.float32),
        "cls_b": jnp.zeros((VOCAB,), jnp.float32),
        "layers": [],
    }
    for l in range(LAYERS):
        lk = jax.random.split(ks[8 + l], 6)
        p["layers"].append(
            {
                "q_w": scale * jax.random.normal(lk[0], (HIDDEN, HIDDEN), jnp.float32),
                "q_b": jnp.zeros((HIDDEN,), jnp.float32),
                "k_w": scale * jax.random.normal(lk[1], (HIDDEN, HIDDEN), jnp.float32),
                "k_b": jnp.zeros((HIDDEN,), jnp.float32),
                "v_w": scale * jax.random.normal(lk[2], (HIDDEN, HIDDEN), jnp.float32),
                "v_b": jnp.zeros((HIDDEN,), jnp.float32),
                "ao_w": scale * jax.random.normal(lk[3], (HIDDEN, HIDDEN), jnp.float32),
                "ao_b": jnp.zeros((HIDDEN,), jnp.float32),
                "ln1_g": jnp.ones((HIDDEN,), jnp.float32),
                "ln1_b": jnp.zeros((HIDDEN,), jnp.float32),
                "ffn_w1": scale * jax.random.normal(lk[4], (HIDDEN, INTER), jnp.float32),
                "ffn_b1": jnp.zeros((INTER,), jnp.float32),
                "ffn_w2": scale * jax.random.normal(lk[5], (INTER, HIDDEN), jnp.float32),
                "ffn_b2": jnp.zeros((HIDDEN,), jnp.float32),
                "ln2_g": jnp.ones((HIDDEN,), jnp.float32),
                "ln2_b": jnp.zeros((HIDDEN,), jnp.float32),
            }
        )
    return p


if __name__ == "__main__":
    key = jax.random.PRNGKey(0)
    pkey, dkey = jax.random.split(key)
    params = init_params(pkey)
    input_ids = jax.random.randint(dkey, (BATCH, SEQ), 0, VOCAB, dtype=jnp.int32)

    # TODO(synk): training branch (y != None -> cross_entropy loss) not implemented;
    # only the inference softmax path is modeled, matching the y=None branch.
    fwd = jax.jit(language_model_forward)
    probs = fwd(params, input_ids)
    probs = jax.block_until_ready(probs)

    assert probs.shape == (BATCH, SEQ, VOCAB)
    assert bool(jnp.all(jnp.isfinite(probs)))
    assert bool(jnp.allclose(probs.sum(-1), 1.0, atol=1e-5))
    print("KERNEL_OK")
</pallas_src>

<mosaic_0001>
module attributes {stable_mosaic.version = 11 : i64} {
  func.func @_fused_lm_kernel(%arg0: i32, %arg1: memref<8x1xi32, #tpu.memory_space<vmem>>, %arg2: memref<64x32xbf16, #tpu.memory_space<vmem>>, %arg3: memref<8x32xf32, #tpu.memory_space<vmem>>, %arg4: memref<1x32xf32, #tpu.memory_space<vmem>>, %arg5: memref<1x32xf32, #tpu.memory_space<vmem>>, %arg6: memref<2x32x32xbf16, #tpu.memory_space<vmem>>, %arg7: memref<2x1x32xf32, #tpu.memory_space<vmem>>, %arg8: memref<2x32x32xbf16, #tpu.memory_space<vmem>>, %arg9: memref<2x1x32xf32, #tpu.memory_space<vmem>>, %arg10: memref<2x32x32xbf16, #tpu.memory_space<vmem>>, %arg11: memref<2x1x32xf32, #tpu.memory_space<vmem>>, %arg12: memref<2x32x32xbf16, #tpu.memory_space<vmem>>, %arg13: memref<2x1x32xf32, #tpu.memory_space<vmem>>, %arg14: memref<2x1x32xf32, #tpu.memory_space<vmem>>, %arg15: memref<2x1x32xf32, #tpu.memory_space<vmem>>, %arg16: memref<2x32x64xbf16, #tpu.memory_space<vmem>>, %arg17: memref<2x1x64xf32, #tpu.memory_space<vmem>>, %arg18: memref<2x64x32xbf16, #tpu.memory_space<vmem>>, %arg19: memref<2x1x32xf32, #tpu.memory_space<vmem>>, %arg20: memref<2x1x32xf32, #tpu.memory_space<vmem>>, %arg21: memref<2x1x32xf32, #tpu.memory_space<vmem>>, %arg22: memref<32x32xf32, #tpu.memory_space<vmem>>, %arg23: memref<32x32xbf16, #tpu.memory_space<vmem>>, %arg24: memref<32x128xbf16, #tpu.memory_space<vmem>>, %arg25: memref<1x128xf32, #tpu.memory_space<vmem>>, %arg26: memref<8x128xf32, #tpu.memory_space<vmem>>) attributes {dimension_semantics = [#tpu.dimension_semantics<parallel>], iteration_bounds = array<i64: 2>, scalar_prefetch = 0 : i64, scratch_operands = 0 : i64, tpu.core_type = #tpu.core_type<tc>, window_params = [{transform_indices = @transform_0, window_bounds = array<i64: 8, 1>}, {pipeline_mode = #tpu.pipeline_mode<synchronous>, transform_indices = @transform_1, window_bounds = array<i64: 64, 32>}, {pipeline_mode = #tpu.pipeline_mode<synchronous>, transform_indices = @transform_2, window_bounds = array<i64: 8, 32>}, {pipeline_mode = #tpu.pipeline_mode<synchronous>, transform_indices = @transform_3, window_bounds = array<i64: 1, 32>}, {pipeline_mode = #tpu.pipeline_mode<synchronous>, transform_indices = @transform_4, window_bounds = array<i64: 1, 32>}, {pipeline_mode = #tpu.pipeline_mode<synchronous>, transform_indices = @transform_5, window_bounds = array<i64: 2, 32, 32>}, {pipeline_mode = #tpu.pipeline_mode<synchronous>, transform_indices = @transform_6, window_bounds = array<i64: 2, 1, 32>}, {pipeline_mode = #tpu.pipeline_mode<synchronous>, transform_indices = @transform_7, window_bounds = array<i64: 2, 32, 32>}, {pipeline_mode = #tpu.pipeline_mode<synchronous>, transform_indices = @transform_8, window_bounds = array<i64: 2, 1, 32>}, {pipeline_mode = #tpu.pipeline_mode<synchronous>, transform_indices = @transform_9, window_bounds = array<i64: 2, 32, 32>}, {pipeline_mode = #tpu.pipeline_mode<synchronous>, transform_indices = @transform_10, window_bounds = array<i64: 2, 1, 32>}, {pipeline_mode = #tpu.pipeline_mode<synchronous>, transform_indices = @transform_11, window_bounds = array<i64: 2, 32, 32>}, {pipeline_mode = #tpu.pipeline_mode<synchronous>, transform_indices = @transform_12, window_bounds = array<i64: 2, 1, 32>}, {pipeline_mode = #tpu.pipeline_mode<synchronous>, transform_indices = @transform_13, window_bounds = array<i64: 2, 1, 32>}, {pipeline_mode = #tpu.pipeline_mode<synchronous>, transform_indices = @transform_14, window_bounds = array<i64: 2, 1, 32>}, {pipeline_mode = #tpu.pipeline_mode<synchronous>, transform_indices = @transform_15, window_bounds = array<i64: 2, 32, 64>}, {pipeline_mode = #tpu.pipeline_mode<synchronous>, transform_indices = @transform_16, window_bounds = array<i64: 2, 1, 64>}, {pipeline_mode = #tpu.pipeline_mode<synchronous>, transform_indices = @transform_17, window_bounds = array<i64: 2, 64, 32>}, {pipeline_mode = #tpu.pipeline_mode<synchronous>, transform_indices = @transform_18, window_bounds = array<i64: 2, 1, 32>}, {pipeline_mode = #tpu.pipeline_mode<synchronous>, transform_indices = @transform_19, window_bounds = array<i64: 2, 1, 32>}, {pipeline_mode = #tpu.pipeline_mode<synchronous>, transform_indices = @transform_20, window_bounds = array<i64: 2, 1, 32>}, {pipeline_mode = #tpu.pipeline_mode<synchronous>, transform_indices = @transform_21, window_bounds = array<i64: 32, 32>}, {pipeline_mode = #tpu.pipeline_mode<synchronous>, transform_indices = @transform_22, window_bounds = array<i64: 32, 32>}, {pipeline_mode = #tpu.pipeline_mode<synchronous>, transform_indices = @transform_23, window_bounds = array<i64: 32, 128>}, {pipeline_mode = #tpu.pipeline_mode<synchronous>, transform_indices = @transform_24, window_bounds = array<i64: 1, 128>}, {transform_indices = @transform_25, window_bounds = array<i64: 8, 128>}]} {
    %c0 = arith.constant 0 : index
    %c0_0 = arith.constant 0 : index
    %0 = vector.load %arg1[%c0, %c0_0] : memref<8x1xi32, #tpu.memory_space<vmem>>, vector<8x1xi32>
    %1 = tpu.iota {dimensions = array<i32: 1>} : vector<8x64xi32>
    %2 = vector.broadcast %0 : vector<8x1xi32> to vector<8x64xi32>
    %3 = arith.cmpi eq, %1, %2 : vector<8x64xi32>
    %4 = arith.extui %3 : vector<8x64xi1> to vector<8x64xi32>
    %5 = arith.sitofp %4 : vector<8x64xi32> to vector<8x64xf32>
    %6 = arith.truncf %5 : vector<8x64xf32> to vector<8x64xbf16>
    %c0_1 = arith.constant 0 : index
    %c0_2 = arith.constant 0 : index
    %7 = vector.load %arg2[%c0_1, %c0_2] : memref<64x32xbf16, #tpu.memory_space<vmem>>, vector<64x32xbf16>
    %cst = arith.constant dense<0.000000e+00> : vector<8x32xf32>
    %8 = tpu.matmul %6, %7, %cst {dimension_numbers = #tpu.dot_dimension_numbers<[1], [0], [0], [1], [0, 0, 1, 1], [], []>} : vector<8x64xbf16>, vector<64x32xbf16>, vector<8x32xf32> -> vector<8x32xf32>
    %c0_3 = arith.constant 0 : index
    %c0_4 = arith.constant 0 : index
    %9 = vector.load %arg3[%c0_3, %c0_4] : memref<8x32xf32, #tpu.memory_space<vmem>>, vector<8x32xf32>
    %10 = arith.addf %8, %9 : vector<8x32xf32>
    %c0_5 = arith.constant 0 : index
    %c0_6 = arith.constant 0 : index
    %11 = vector.load %arg4[%c0_5, %c0_6] : memref<1x32xf32, #tpu.memory_space<vmem>>, vector<1x32xf32>
    %c0_7 = arith.constant 0 : index
    %c0_8 = arith.constant 0 : index
    %12 = vector.load %arg5[%c0_7, %c0_8] : memref<1x32xf32, #tpu.memory_space<vmem>>, vector<1x32xf32>
    %cst_9 = arith.constant dense<0.000000e+00> : vector<8xf32>
    %13 = vector.multi_reduction <add>, %10, %cst_9 [1] : vector<8x32xf32> to vector<8xf32>
    %14 = vector.shape_cast %13 : vector<8xf32> to vector<8x1xf32>
    %cst_10 = arith.constant 3.200000e+01 : f32
    %15 = vector.broadcast %cst_10 : f32 to vector<8x1xf32>
    %16 = arith.divf %14, %15 : vector<8x1xf32>
    %17 = vector.broadcast %16 : vector<8x1xf32> to vector<8x32xf32>
    %18 = arith.subf %10, %17 : vector<8x32xf32>
    %19 = arith.mulf %18, %18 : vector<8x32xf32>
    %cst_11 = arith.constant dense<0.000000e+00> : vector<8xf32>
    %20 = vector.multi_reduction <add>, %19, %cst_11 [1] : vector<8x32xf32> to vector<8xf32>
    %21 = vector.shape_cast %20 : vector<8xf32> to vector<8x1xf32>
    %cst_12 = arith.constant 3.200000e+01 : f32
    %22 = vector.broadcast %cst_12 : f32 to vector<8x1xf32>
    %23 = arith.divf %21, %22 : vector<8x1xf32>
    %cst_13 = arith.constant 9.99999996E-13 : f32
    %24 = vector.broadcast %cst_13 : f32 to vector<8x1xf32>
    %25 = arith.addf %23, %24 : vector<8x1xf32>
    %26 = math.rsqrt %25 : vector<8x1xf32>
    %27 = vector.broadcast %26 : vector<8x1xf32> to vector<8x32xf32>
    %28 = arith.mulf %18, %27 : vector<8x32xf32>
    %29 = vector.broadcast %11 : vector<1x32xf32> to vector<8x32xf32>
    %30 = arith.mulf %28, %29 : vector<8x32xf32>
    %31 = vector.broadcast %12 : vector<1x32xf32> to vector<8x32xf32>
    %32 = arith.addf %30, %31 : vector<8x32xf32>
    %c0_14 = arith.constant 0 : index
    %c0_15 = arith.constant 0 : index
    %33 = vector.load %arg22[%c0_14, %c0_15] : memref<32x32xf32, #tpu.memory_space<vmem>>, vector<32x32xf32>
    %c0_16 = arith.constant 0 : index
    %c0_17 = arith.constant 0 : index
    %34 = vector.load %arg23[%c0_16, %c0_17] : memref<32x32xbf16, #tpu.memory_space<vmem>>, vector<32x32xbf16>
    %35 = arith.truncf %32 : vector<8x32xf32> to vector<8x32xbf16>
    %c0_18 = arith.constant 0 : index
    %c0_19 = arith.constant 0 : index
    %c0_20 = arith.constant 0 : index
    %36 = vector.load %arg6[%c0_18, %c0_19, %c0_20] : memref<2x32x32xbf16, #tpu.memory_space<vmem>>, vector<1x32x32xbf16>
    %37 = vector.shape_cast %36 : vector<1x32x32xbf16> to vector<32x32xbf16>
    %cst_21 = arith.constant dense<0.000000e+00> : vector<8x32xf32>
    %38 = tpu.matmul %35, %37, %cst_21 {dimension_numbers = #tpu.dot_dimension_numbers<[1], [0], [0], [1], [0, 0, 1, 1], [], []>} : vector<8x32xbf16>, vector<32x32xbf16>, vector<8x32xf32> -> vector<8x32xf32>
    %c0_22 = arith.constant 0 : index
    %c0_23 = arith.constant 0 : index
    %c0_24 = arith.constant 0 : index
    %39 = vector.load %arg7[%c0_22, %c0_23, %c0_24] : memref<2x1x32xf32, #tpu.memory_space<vmem>>, vector<1x1x32xf32>
    %40 = vector.shape_cast %39 : vector<1x1x32xf32> to vector<1x32xf32>
    %41 = vector.broadcast %40 : vector<1x32xf32> to vector<8x32xf32>
    %42 = arith.addf %38, %41 : vector<8x32xf32>
    %c0_25 = arith.constant 0 : index
    %c0_26 = arith.constant 0 : index
    %c0_27 = arith.constant 0 : index
    %43 = vector.load %arg8[%c0_25, %c0_26, %c0_27] : memref<2x32x32xbf16, #tpu.memory_space<vmem>>, vector<1x32x32xbf16>
    %44 = vector.shape_cast %43 : vector<1x32x32xbf16> to vector<32x32xbf16>
    %cst_28 = arith.constant dense<0.000000e+00> : vector<8x32xf32>
    %45 = tpu.matmul %35, %44, %cst_28 {dimension_numbers = #tpu.dot_dimension_numbers<[1], [0], [0], [1], [0, 0, 1, 1], [], []>} : vector<8x32xbf16>, vector<32x32xbf16>, vector<8x32xf32> -> vector<8x32xf32>
    %c0_29 = arith.constant 0 : index
    %c0_30 = arith.constant 0 : index
    %c0_31 = arith.constant 0 : index
    %46 = vector.load %arg9[%c0_29, %c0_30, %c0_31] : memref<2x1x32xf32, #tpu.memory_space<vmem>>, vector<1x1x32xf32>
    %47 = vector.shape_cast %46 : vector<1x1x32xf32> to vector<1x32xf32>
    %48 = vector.broadcast %47 : vector<1x32xf32> to vector<8x32xf32>
    %49 = arith.addf %45, %48 : vector<8x32xf32>
    %c0_32 = arith.constant 0 : index
    %c0_33 = arith.constant 0 : index
    %c0_34 = arith.constant 0 : index
    %50 = vector.load %arg10[%c0_32, %c0_33, %c0_34] : memref<2x32x32xbf16, #tpu.memory_space<vmem>>, vector<1x32x32xbf16>
    %51 = vector.shape_cast %50 : vector<1x32x32xbf16> to vector<32x32xbf16>
    %cst_35 = arith.constant dense<0.000000e+00> : vector<8x32xf32>
    %52 = tpu.matmul %35, %51, %cst_35 {dimension_numbers = #tpu.dot_dimension_numbers<[1], [0], [0], [1], [0, 0, 1, 1], [], []>} : vector<8x32xbf16>, vector<32x32xbf16>, vector<8x32xf32> -> vector<8x32xf32>
    %c0_36 = arith.constant 0 : index
    %c0_37 = arith.constant 0 : index
    %c0_38 = arith.constant 0 : index
    %53 = vector.load %arg11[%c0_36, %c0_37, %c0_38] : memref<2x1x32xf32, #tpu.memory_space<vmem>>, vector<1x1x32xf32>
    %54 = vector.shape_cast %53 : vector<1x1x32xf32> to vector<1x32xf32>
    %55 = vector.broadcast %54 : vector<1x32xf32> to vector<8x32xf32>
    %56 = arith.addf %52, %55 : vector<8x32xf32>
    %57 = tpu.concatenate %49, %49, %49, %49 in 0 : vector<8x32xf32>, vector<8x32xf32>, vector<8x32xf32>, vector<8x32xf32> -> vector<32x32xf32>
    %58 = arith.mulf %57, %33 : vector<32x32xf32>
    %59 = arith.truncf %58 : vector<32x32xf32> to vector<32x32xbf16>
    %60 = tpu.concatenate %56, %56, %56, %56 in 0 : vector<8x32xf32>, vector<8x32xf32>, vector<8x32xf32>, vector<8x32xf32> -> vector<32x32xf32>
    %61 = arith.mulf %60, %33 : vector<32x32xf32>
    %62 = arith.truncf %61 : vector<32x32xf32> to vector<32x32xbf16>
    %63 = arith.truncf %42 : vector<8x32xf32> to vector<8x32xbf16>
    %cst_39 = arith.constant dense<0.000000e+00> : vector<8x32xf32>
    %64 = tpu.matmul %63, %59, %cst_39 {dimension_numbers = #tpu.dot_dimension_numbers<[1], [1], [0], [0], [0, 0, 1, 0], [], []>} : vector<8x32xbf16>, vector<32x32xbf16>, vector<8x32xf32> -> vector<8x32xf32>
    %cst_40 = arith.constant dense<0xFF800000> : vector<8xf32>
    %65 = vector.multi_reduction <maximumf>, %64, %cst_40 [1] : vector<8x32xf32> to vector<8xf32>
    %66 = vector.shape_cast %65 : vector<8xf32> to vector<8x1xf32>
    %67 = vector.broadcast %66 : vector<8x1xf32> to vector<8x32xf32>
    %68 = arith.subf %64, %67 : vector<8x32xf32>
    %69 = math.exp %68 : vector<8x32xf32>
    %70 = arith.truncf %69 : vector<8x32xf32> to vector<8x32xbf16>
    %cst_41 = arith.constant dense<0.000000e+00> : vector<8x32xf32>
    %71 = tpu.matmul %70, %34, %cst_41 {dimension_numbers = #tpu.dot_dimension_numbers<[1], [0], [0], [1], [0, 0, 1, 1], [], []>} : vector<8x32xbf16>, vector<32x32xbf16>, vector<8x32xf32> -> vector<8x32xf32>
    %72 = tpu.reciprocal %71 {approx = true} : vector<8x32xf32> -> vector<8x32xf32>
    %73 = arith.mulf %69, %72 : vector<8x32xf32>
    %74 = arith.truncf %73 : vector<8x32xf32> to vector<8x32xbf16>
    %cst_42 = arith.constant dense<0.000000e+00> : vector<8x32xf32>
    %75 = tpu.matmul %74, %62, %cst_42 {dimension_numbers = #tpu.dot_dimension_numbers<[1], [0], [0], [1], [0, 0, 1, 1], [], []>} : vector<8x32xbf16>, vector<32x32xbf16>, vector<8x32xf32> -> vector<8x32xf32>
    %76 = arith.truncf %75 : vector<8x32xf32> to vector<8x32xbf16>
    %c0_43 = arith.constant 0 : index
    %c0_44 = arith.constant 0 : index
    %c0_45 = arith.constant 0 : index
    %77 = vector.load %arg12[%c0_43, %c0_44, %c0_45] : memref<2x32x32xbf16, #tpu.memory_space<vmem>>, vector<1x32x32xbf16>
    %78 = vector.shape_cast %77 : vector<1x32x32xbf16> to vector<32x32xbf16>
    %cst_46 = arith.constant dense<0.000000e+00> : vector<8x32xf32>
    %79 = tpu.matmul %76, %78, %cst_46 {dimension_numbers = #tpu.dot_dimension_numbers<[1], [0], [0], [1], [0, 0, 1, 1], [], []>} : vector<8x32xbf16>, vector<32x32xbf16>, vector<8x32xf32> -> vector<8x32xf32>
    %c0_47 = arith.constant 0 : index
    %c0_48 = arith.constant 0 : index
    %c0_49 = arith.constant 0 : index
    %80 = vector.load %arg13[%c0_47, %c0_48, %c0_49] : memref<2x1x32xf32, #tpu.memory_space<vmem>>, vector<1x1x32xf32>
    %81 = vector.shape_cast %80 : vector<1x1x32xf32> to vector<1x32xf32>
    %82 = vector.broadcast %81 : vector<1x32xf32> to vector<8x32xf32>
    %83 = arith.addf %79, %82 : vector<8x32xf32>
    %84 = arith.addf %32, %83 : vector<8x32xf32>
    %c0_50 = arith.constant 0 : index
    %c0_51 = arith.constant 0 : index
    %c0_52 = arith.constant 0 : index
    %85 = vector.load %arg14[%c0_50, %c0_51, %c0_52] : memref<2x1x32xf32, #tpu.memory_space<vmem>>, vector<1x1x32xf32>
    %86 = vector.shape_cast %85 : vector<1x1x32xf32> to vector<1x32xf32>
    %c0_53 = arith.constant 0 : index
    %c0_54 = arith.constant 0 : index
    %c0_55 = arith.constant 0 : index
    %87 = vector.load %arg15[%c0_53, %c0_54, %c0_55] : memref<2x1x32xf32, #tpu.memory_space<vmem>>, vector<1x1x32xf32>
    %88 = vector.shape_cast %87 : vector<1x1x32xf32> to vector<1x32xf32>
    %cst_56 = arith.constant dense<0.000000e+00> : vector<8xf32>
    %89 = vector.multi_reduction <add>, %84, %cst_56 [1] : vector<8x32xf32> to vector<8xf32>
    %90 = vector.shape_cast %89 : vector<8xf32> to vector<8x1xf32>
    %cst_57 = arith.constant 3.200000e+01 : f32
    %91 = vector.broadcast %cst_57 : f32 to vector<8x1xf32>
    %92 = arith.divf %90, %91 : vector<8x1xf32>
    %93 = vector.broadcast %92 : vector<8x1xf32> to vector<8x32xf32>
    %94 = arith.subf %84, %93 : vector<8x32xf32>
    %95 = arith.mulf %94, %94 : vector<8x32xf32>
    %cst_58 = arith.constant dense<0.000000e+00> : vector<8xf32>
    %96 = vector.multi_reduction <add>, %95, %cst_58 [1] : vector<8x32xf32> to vector<8xf32>
    %97 = vector.shape_cast %96 : vector<8xf32> to vector<8x1xf32>
    %cst_59 = arith.constant 3.200000e+01 : f32
    %98 = vector.broadcast %cst_59 : f32 to vector<8x1xf32>
    %99 = arith.divf %97, %98 : vector<8x1xf32>
    %cst_60 = arith.constant 9.99999996E-13 : f32
    %100 = vector.broadcast %cst_60 : f32 to vector<8x1xf32>
    %101 = arith.addf %99, %100 : vector<8x1xf32>
    %102 = math.rsqrt %101 : vector<8x1xf32>
    %103 = vector.broadcast %102 : vector<8x1xf32> to vector<8x32xf32>
    %104 = arith.mulf %94, %103 : vector<8x32xf32>
    %105 = vector.broadcast %86 : vector<1x32xf32> to vector<8x32xf32>
    %106 = arith.mulf %104, %105 : vector<8x32xf32>
    %107 = vector.broadcast %88 : vector<1x32xf32> to vector<8x32xf32>
    %108 = arith.addf %106, %107 : vector<8x32xf32>
    %109 = arith.truncf %108 : vector<8x32xf32> to vector<8x32xbf16>
    %c0_61 = arith.constant 0 : index
    %c0_62 = arith.constant 0 : index
    %c0_63 = arith.constant 0 : index
    %110 = vector.load %arg16[%c0_61, %c0_62, %c0_63] : memref<2x32x64xbf16, #tpu.memory_space<vmem>>, vector<1x32x64xbf16>
    %111 = vector.shape_cast %110 : vector<1x32x64xbf16> to vector<32x64xbf16>
    %cst_64 = arith.constant dense<0.000000e+00> : vector<8x64xf32>
    %112 = tpu.matmul %109, %111, %cst_64 {dimension_numbers = #tpu.dot_dimension_numbers<[1], [0], [0], [1], [0, 0, 1, 1], [], []>} : vector<8x32xbf16>, vector<32x64xbf16>, vector<8x64xf32> -> vector<8x64xf32>
    %c0_65 = arith.constant 0 : index
    %c0_66 = arith.constant 0 : index
    %c0_67 = arith.constant 0 : index
    %113 = vector.load %arg17[%c0_65, %c0_66, %c0_67] : memref<2x1x64xf32, #tpu.memory_space<vmem>>, vector<1x1x64xf32>
    %114 = vector.shape_cast %113 : vector<1x1x64xf32> to vector<1x64xf32>
    %115 = vector.broadcast %114 : vector<1x64xf32> to vector<8x64xf32>
    %116 = arith.addf %112, %115 : vector<8x64xf32>
    %cst_68 = arith.constant 5.000000e-01 : f32
    %117 = vector.broadcast %cst_68 : f32 to vector<8x64xf32>
    %118 = arith.mulf %117, %116 : vector<8x64xf32>
    %cst_69 = arith.constant 4.471500e-02 : f32
    %119 = vector.broadcast %cst_69 : f32 to vector<8x64xf32>
    %120 = arith.mulf %119, %116 : vector<8x64xf32>
    %121 = arith.mulf %120, %116 : vector<8x64xf32>
    %122 = arith.mulf %121, %116 : vector<8x64xf32>
    %123 = arith.addf %116, %122 : vector<8x64xf32>
    %cst_70 = arith.constant 0.797884583 : f32
    %124 = vector.broadcast %cst_70 : f32 to vector<8x64xf32>
    %125 = arith.mulf %124, %123 : vector<8x64xf32>
    %126 = math.tanh %125 : vector<8x64xf32>
    %cst_71 = arith.constant 1.000000e+00 : f32
    %127 = vector.broadcast %cst_71 : f32 to vector<8x64xf32>
    %128 = arith.addf %127, %126 : vector<8x64xf32>
    %129 = arith.mulf %118, %128 : vector<8x64xf32>
    %130 = arith.truncf %129 : vector<8x64xf32> to vector<8x64xbf16>
    %c0_72 = arith.constant 0 : index
    %c0_73 = arith.constant 0 : index
    %c0_74 = arith.constant 0 : index
    %131 = vector.load %arg18[%c0_72, %c0_73, %c0_74] : memref<2x64x32xbf16, #tpu.memory_space<vmem>>, vector<1x64x32xbf16>
    %132 = vector.shape_cast %131 : vector<1x64x32xbf16> to vector<64x32xbf16>
    %cst_75 = arith.constant dense<0.000000e+00> : vector<8x32xf32>
    %133 = tpu.matmul %130, %132, %cst_75 {dimension_numbers = #tpu.dot_dimension_numbers<[1], [0], [0], [1], [0, 0, 1, 1], [], []>} : vector<8x64xbf16>, vector<64x32xbf16>, vector<8x32xf32> -> vector<8x32xf32>
    %c0_76 = arith.constant 0 : index
    %c0_77 = arith.constant 0 : index
    %c0_78 = arith.constant 0 : index
    %134 = vector.load %arg19[%c0_76, %c0_77, %c0_78] : memref<2x1x32xf32, #tpu.memory_space<vmem>>, vector<1x1x32xf32>
    %135 = vector.shape_cast %134 : vector<1x1x32xf32> to vector<1x32xf32>
    %136 = vector.broadcast %135 : vector<1x32xf32> to vector<8x32xf32>
    %137 = arith.addf %133, %136 : vector<8x32xf32>
    %138 = arith.addf %108, %137 : vector<8x32xf32>
    %c0_79 = arith.constant 0 : index
    %c0_80 = arith.constant 0 : index
    %c0_81 = arith.constant 0 : index
    %139 = vector.load %arg20[%c0_79, %c0_80, %c0_81] : memref<2x1x32xf32, #tpu.memory_space<vmem>>, vector<1x1x32xf32>
    %140 = vector.shape_cast %139 : vector<1x1x32xf32> to vector<1x32xf32>
    %c0_82 = arith.constant 0 : index
    %c0_83 = arith.constant 0 : index
    %c0_84 = arith.constant 0 : index
    %141 = vector.load %arg21[%c0_82, %c0_83, %c0_84] : memref<2x1x32xf32, #tpu.memory_space<vmem>>, vector<1x1x32xf32>
    %142 = vector.shape_cast %141 : vector<1x1x32xf32> to vector<1x32xf32>
    %cst_85 = arith.constant dense<0.000000e+00> : vector<8xf32>
    %143 = vector.multi_reduction <add>, %138, %cst_85 [1] : vector<8x32xf32> to vector<8xf32>
    %144 = vector.shape_cast %143 : vector<8xf32> to vector<8x1xf32>
    %cst_86 = arith.constant 3.200000e+01 : f32
    %145 = vector.broadcast %cst_86 : f32 to vector<8x1xf32>
    %146 = arith.divf %144, %145 : vector<8x1xf32>
    %147 = vector.broadcast %146 : vector<8x1xf32> to vector<8x32xf32>
    %148 = arith.subf %138, %147 : vector<8x32xf32>
    %149 = arith.mulf %148, %148 : vector<8x32xf32>
    %cst_87 = arith.constant dense<0.000000e+00> : vector<8xf32>
    %150 = vector.multi_reduction <add>, %149, %cst_87 [1] : vector<8x32xf32> to vector<8xf32>
    %151 = vector.shape_cast %150 : vector<8xf32> to vector<8x1xf32>
    %cst_88 = arith.constant 3.200000e+01 : f32
    %152 = vector.broadcast %cst_88 : f32 to vector<8x1xf32>
    %153 = arith.divf %151, %152 : vector<8x1xf32>
    %cst_89 = arith.constant 9.99999996E-13 : f32
    %154 = vector.broadcast %cst_89 : f32 to vector<8x1xf32>
    %155 = arith.addf %153, %154 : vector<8x1xf32>
    %156 = math.rsqrt %155 : vector<8x1xf32>
    %157 = vector.broadcast %156 : vector<8x1xf32> to vector<8x32xf32>
    %158 = arith.mulf %148, %157 : vector<8x32xf32>
    %159 = vector.broadcast %140 : vector<1x32xf32> to vector<8x32xf32>
    %160 = arith.mulf %158, %159 : vector<8x32xf32>
    %161 = vector.broadcast %142 : vector<1x32xf32> to vector<8x32xf32>
    %162 = arith.addf %160, %161 : vector<8x32xf32>
    %163 = arith.truncf %162 : vector<8x32xf32> to vector<8x32xbf16>
    %c1 = arith.constant 1 : index
    %c0_90 = arith.constant 0 : index
    %c0_91 = arith.constant 0 : index
    %164 = vector.load %arg6[%c1, %c0_90, %c0_91] : memref<2x32x32xbf16, #tpu.memory_space<vmem>>, vector<1x32x32xbf16>
    %165 = vector.shape_cast %164 : vector<1x32x32xbf16> to vector<32x32xbf16>
    %cst_92 = arith.constant dense<0.000000e+00> : vector<8x32xf32>
    %166 = tpu.matmul %163, %165, %cst_92 {dimension_numbers = #tpu.dot_dimension_numbers<[1], [0], [0], [1], [0, 0, 1, 1], [], []>} : vector<8x32xbf16>, vector<32x32xbf16>, vector<8x32xf32> -> vector<8x32xf32>
    %c1_93 = arith.constant 1 : index
    %c0_94 = arith.constant 0 : index
    %c0_95 = arith.constant 0 : index
    %167 = vector.load %arg7[%c1_93, %c0_94, %c0_95] : memref<2x1x32xf32, #tpu.memory_space<vmem>>, vector<1x1x32xf32>
    %168 = vector.shape_cast %167 : vector<1x1x32xf32> to vector<1x32xf32>
    %169 = vector.broadcast %168 : vector<1x32xf32> to vector<8x32xf32>
    %170 = arith.addf %166, %169 : vector<8x32xf32>
    %c1_96 = arith.constant 1 : index
    %c0_97 = arith.constant 0 : index
    %c0_98 = arith.constant 0 : index
    %171 = vector.load %arg8[%c1_96, %c0_97, %c0_98] : memref<2x32x32xbf16, #tpu.memory_space<vmem>>, vector<1x32x32xbf16>
    %172 = vector.shape_cast %171 : vector<1x32x32xbf16> to vector<32x32xbf16>
    %cst_99 = arith.constant dense<0.000000e+00> : vector<8x32xf32>
    %173 = tpu.matmul %163, %172, %cst_99 {dimension_numbers = #tpu.dot_dimension_numbers<[1], [0], [0], [1], [0, 0, 1, 1], [], []>} : vector<8x32xbf16>, vector<32x32xbf16>, vector<8x32xf32> -> vector<8x32xf32>
    %c1_100 = arith.constant 1 : index
    %c0_101 = arith.constant 0 : index
    %c0_102 = arith.constant 0 : index
    %174 = vector.load %arg9[%c1_100, %c0_101, %c0_102] : memref<2x1x32xf32, #tpu.memory_space<vmem>>, vector<1x1x32xf32>
    %175 = vector.shape_cast %174 : vector<1x1x32xf32> to vector<1x32xf32>
    %176 = vector.broadcast %175 : vector<1x32xf32> to vector<8x32xf32>
    %177 = arith.addf %173, %176 : vector<8x32xf32>
    %c1_103 = arith.constant 1 : index
    %c0_104 = arith.constant 0 : index
    %c0_105 = arith.constant 0 : index
    %178 = vector.load %arg10[%c1_103, %c0_104, %c0_105] : memref<2x32x32xbf16, #tpu.memory_space<vmem>>, vector<1x32x32xbf16>
    %179 = vector.shape_cast %178 : vector<1x32x32xbf16> to vector<32x32xbf16>
    %cst_106 = arith.constant dense<0.000000e+00> : vector<8x32xf32>
    %180 = tpu.matmul %163, %179, %cst_106 {dimension_numbers = #tpu.dot_dimension_numbers<[1], [0], [0], [1], [0, 0, 1, 1], [], []>} : vector<8x32xbf16>, vector<32x32xbf16>, vector<8x32xf32> -> vector<8x32xf32>
    %c1_107 = arith.constant 1 : index
    %c0_108 = arith.constant 0 : index
    %c0_109 = arith.constant 0 : index
    %181 = vector.load %arg11[%c1_107, %c0_108, %c0_109] : memref<2x1x32xf32, #tpu.memory_space<vmem>>, vector<1x1x32xf32>
    %182 = vector.shape_cast %181 : vector<1x1x32xf32> to vector<1x32xf32>
    %183 = vector.broadcast %182 : vector<1x32xf32> to vector<8x32xf32>
    %184 = arith.addf %180, %183 : vector<8x32xf32>
    %185 = tpu.concatenate %177, %177, %177, %177 in 0 : vector<8x32xf32>, vector<8x32xf32>, vector<8x32xf32>, vector<8x32xf32> -> vector<32x32xf32>
    %186 = arith.mulf %185, %33 : vector<32x32xf32>
    %187 = arith.truncf %186 : vector<32x32xf32> to vector<32x32xbf16>
    %188 = tpu.concatenate %184, %184, %184, %184 in 0 : vector<8x32xf32>, vector<8x32xf32>, vector<8x32xf32>, vector<8x32xf32> -> vector<32x32xf32>
    %189 = arith.mulf %188, %33 : vector<32x32xf32>
    %190 = arith.truncf %189 : vector<32x32xf32> to vector<32x32xbf16>
    %191 = arith.truncf %170 : vector<8x32xf32> to vector<8x32xbf16>
    %cst_110 = arith.constant dense<0.000000e+00> : vector<8x32xf32>
    %192 = tpu.matmul %191, %187, %cst_110 {dimension_numbers = #tpu.dot_dimension_numbers<[1], [1], [0], [0], [0, 0, 1, 0], [], []>} : vector<8x32xbf16>, vector<32x32xbf16>, vector<8x32xf32> -> vector<8x32xf32>
    %cst_111 = arith.constant dense<0xFF800000> : vector<8xf32>
    %193 = vector.multi_reduction <maximumf>, %192, %cst_111 [1] : vector<8x32xf32> to vector<8xf32>
    %194 = vector.shape_cast %193 : vector<8xf32> to vector<8x1xf32>
    %195 = vector.broadcast %194 : vector<8x1xf32> to vector<8x32xf32>
    %196 = arith.subf %192, %195 : vector<8x32xf32>
    %197 = math.exp %196 : vector<8x32xf32>
    %198 = arith.truncf %197 : vector<8x32xf32> to vector<8x32xbf16>
    %cst_112 = arith.constant dense<0.000000e+00> : vector<8x32xf32>
    %199 = tpu.matmul %198, %34, %cst_112 {dimension_numbers = #tpu.dot_dimension_numbers<[1], [0], [0], [1], [0, 0, 1, 1], [], []>} : vector<8x32xbf16>, vector<32x32xbf16>, vector<8x32xf32> -> vector<8x32xf32>
    %200 = tpu.reciprocal %199 {approx = true} : vector<8x32xf32> -> vector<8x32xf32>
    %201 = arith.mulf %197, %200 : vector<8x32xf32>
    %202 = arith.truncf %201 : vector<8x32xf32> to vector<8x32xbf16>
    %cst_113 = arith.constant dense<0.000000e+00> : vector<8x32xf32>
    %203 = tpu.matmul %202, %190, %cst_113 {dimension_numbers = #tpu.dot_dimension_numbers<[1], [0], [0], [1], [0, 0, 1, 1], [], []>} : vector<8x32xbf16>, vector<32x32xbf16>, vector<8x32xf32> -> vector<8x32xf32>
    %204 = arith.truncf %203 : vector<8x32xf32> to vector<8x32xbf16>
    %c1_114 = arith.constant 1 : index
    %c0_115 = arith.constant 0 : index
    %c0_116 = arith.constant 0 : index
    %205 = vector.load %arg12[%c1_114, %c0_115, %c0_116] : memref<2x32x32xbf16, #tpu.memory_space<vmem>>, vector<1x32x32xbf16>
    %206 = vector.shape_cast %205 : vector<1x32x32xbf16> to vector<32x32xbf16>
    %cst_117 = arith.constant dense<0.000000e+00> : vector<8x32xf32>
    %207 = tpu.matmul %204, %206, %cst_117 {dimension_numbers = #tpu.dot_dimension_numbers<[1], [0], [0], [1], [0, 0, 1, 1], [], []>} : vector<8x32xbf16>, vector<32x32xbf16>, vector<8x32xf32> -> vector<8x32xf32>
    %c1_118 = arith.constant 1 : index
    %c0_119 = arith.constant 0 : index
    %c0_120 = arith.constant 0 : index
    %208 = vector.load %arg13[%c1_118, %c0_119, %c0_120] : memref<2x1x32xf32, #tpu.memory_space<vmem>>, vector<1x1x32xf32>
    %209 = vector.shape_cast %208 : vector<1x1x32xf32> to vector<1x32xf32>
    %210 = vector.broadcast %209 : vector<1x32xf32> to vector<8x32xf32>
    %211 = arith.addf %207, %210 : vector<8x32xf32>
    %212 = arith.addf %162, %211 : vector<8x32xf32>
    %c1_121 = arith.constant 1 : index
    %c0_122 = arith.constant 0 : index
    %c0_123 = arith.constant 0 : index
    %213 = vector.load %arg14[%c1_121, %c0_122, %c0_123] : memref<2x1x32xf32, #tpu.memory_space<vmem>>, vector<1x1x32xf32>
    %214 = vector.shape_cast %213 : vector<1x1x32xf32> to vector<1x32xf32>
    %c1_124 = arith.constant 1 : index
    %c0_125 = arith.constant 0 : index
    %c0_126 = arith.constant 0 : index
    %215 = vector.load %arg15[%c1_124, %c0_125, %c0_126] : memref<2x1x32xf32, #tpu.memory_space<vmem>>, vector<1x1x32xf32>
    %216 = vector.shape_cast %215 : vector<1x1x32xf32> to vector<1x32xf32>
    %cst_127 = arith.constant dense<0.000000e+00> : vector<8xf32>
    %217 = vector.multi_reduction <add>, %212, %cst_127 [1] : vector<8x32xf32> to vector<8xf32>
    %218 = vector.shape_cast %217 : vector<8xf32> to vector<8x1xf32>
    %cst_128 = arith.constant 3.200000e+01 : f32
    %219 = vector.broadcast %cst_128 : f32 to vector<8x1xf32>
    %220 = arith.divf %218, %219 : vector<8x1xf32>
    %221 = vector.broadcast %220 : vector<8x1xf32> to vector<8x32xf32>
    %222 = arith.subf %212, %221 : vector<8x32xf32>
    %223 = arith.mulf %222, %222 : vector<8x32xf32>
    %cst_129 = arith.constant dense<0.000000e+00> : vector<8xf32>
    %224 = vector.multi_reduction <add>, %223, %cst_129 [1] : vector<8x32xf32> to vector<8xf32>
    %225 = vector.shape_cast %224 : vector<8xf32> to vector<8x1xf32>
    %cst_130 = arith.constant 3.200000e+01 : f32
    %226 = vector.broadcast %cst_130 : f32 to vector<8x1xf32>
    %227 = arith.divf %225, %226 : vector<8x1xf32>
    %cst_131 = arith.constant 9.99999996E-13 : f32
    %228 = vector.broadcast %cst_131 : f32 to vector<8x1xf32>
    %229 = arith.addf %227, %228 : vector<8x1xf32>
    %230 = math.rsqrt %229 : vector<8x1xf32>
    %231 = vector.broadcast %230 : vector<8x1xf32> to vector<8x32xf32>
    %232 = arith.mulf %222, %231 : vector<8x32xf32>
    %233 = vector.broadcast %214 : vector<1x32xf32> to vector<8x32xf32>
    %234 = arith.mulf %232, %233 : vector<8x32xf32>
    %235 = vector.broadcast %216 : vector<1x32xf32> to vector<8x32xf32>
    %236 = arith.addf %234, %235 : vector<8x32xf32>
    %237 = arith.truncf %236 : vector<8x32xf32> to vector<8x32xbf16>
    %c1_132 = arith.constant 1 : index
    %c0_133 = arith.constant 0 : index
    %c0_134 = arith.constant 0 : index
    %238 = vector.load %arg16[%c1_132, %c0_133, %c0_134] : memref<2x32x64xbf16, #tpu.memory_space<vmem>>, vector<1x32x64xbf16>
    %239 = vector.shape_cast %238 : vector<1x32x64xbf16> to vector<32x64xbf16>
    %cst_135 = arith.constant dense<0.000000e+00> : vector<8x64xf32>
    %240 = tpu.matmul %237, %239, %cst_135 {dimension_numbers = #tpu.dot_dimension_numbers<[1], [0], [0], [1], [0, 0, 1, 1], [], []>} : vector<8x32xbf16>, vector<32x64xbf16>, vector<8x64xf32> -> vector<8x64xf32>
    %c1_136 = arith.constant 1 : index
    %c0_137 = arith.constant 0 : index
    %c0_138 = arith.constant 0 : index
    %241 = vector.load %arg17[%c1_136, %c0_137, %c0_138] : memref<2x1x64xf32, #tpu.memory_space<vmem>>, vector<1x1x64xf32>
    %242 = vector.shape_cast %241 : vector<1x1x64xf32> to vector<1x64xf32>
    %243 = vector.broadcast %242 : vector<1x64xf32> to vector<8x64xf32>
    %244 = arith.addf %240, %243 : vector<8x64xf32>
    %cst_139 = arith.constant 5.000000e-01 : f32
    %245 = vector.broadcast %cst_139 : f32 to vector<8x64xf32>
    %246 = arith.mulf %245, %244 : vector<8x64xf32>
    %cst_140 = arith.constant 4.471500e-02 : f32
    %247 = vector.broadcast %cst_140 : f32 to vector<8x64xf32>
    %248 = arith.mulf %247, %244 : vector<8x64xf32>
    %249 = arith.mulf %248, %244 : vector<8x64xf32>
    %250 = arith.mulf %249, %244 : vector<8x64xf32>
    %251 = arith.addf %244, %250 : vector<8x64xf32>
    %cst_141 = arith.constant 0.797884583 : f32
    %252 = vector.broadcast %cst_141 : f32 to vector<8x64xf32>
    %253 = arith.mulf %252, %251 : vector<8x64xf32>
    %254 = math.tanh %253 : vector<8x64xf32>
    %cst_142 = arith.constant 1.000000e+00 : f32
    %255 = vector.broadcast %cst_142 : f32 to vector<8x64xf32>
    %256 = arith.addf %255, %254 : vector<8x64xf32>
    %257 = arith.mulf %246, %256 : vector<8x64xf32>
    %258 = arith.truncf %257 : vector<8x64xf32> to vector<8x64xbf16>
    %c1_143 = arith.constant 1 : index
    %c0_144 = arith.constant 0 : index
    %c0_145 = arith.constant 0 : index
    %259 = vector.load %arg18[%c1_143, %c0_144, %c0_145] : memref<2x64x32xbf16, #tpu.memory_space<vmem>>, vector<1x64x32xbf16>
    %260 = vector.shape_cast %259 : vector<1x64x32xbf16> to vector<64x32xbf16>
    %cst_146 = arith.constant dense<0.000000e+00> : vector<8x32xf32>
    %261 = tpu.matmul %258, %260, %cst_146 {dimension_numbers = #tpu.dot_dimension_numbers<[1], [0], [0], [1], [0, 0, 1, 1], [], []>} : vector<8x64xbf16>, vector<64x32xbf16>, vector<8x32xf32> -> vector<8x32xf32>
    %c1_147 = arith.constant 1 : index
    %c0_148 = arith.constant 0 : index
    %c0_149 = arith.constant 0 : index
    %262 = vector.load %arg19[%c1_147, %c0_148, %c0_149] : memref<2x1x32xf32, #tpu.memory_space<vmem>>, vector<1x1x32xf32>
    %263 = vector.shape_cast %262 : vector<1x1x32xf32> to vector<1x32xf32>
    %264 = vector.broadcast %263 : vector<1x32xf32> to vector<8x32xf32>
    %265 = arith.addf %261, %264 : vector<8x32xf32>
    %266 = arith.addf %236, %265 : vector<8x32xf32>
    %c1_150 = arith.constant 1 : index
    %c0_151 = arith.constant 0 : index
    %c0_152 = arith.constant 0 : index
    %267 = vector.load %arg20[%c1_150, %c0_151, %c0_152] : memref<2x1x32xf32, #tpu.memory_space<vmem>>, vector<1x1x32xf32>
    %268 = vector.shape_cast %267 : vector<1x1x32xf32> to vector<1x32xf32>
    %c1_153 = arith.constant 1 : index
    %c0_154 = arith.constant 0 : index
    %c0_155 = arith.constant 0 : index
    %269 = vector.load %arg21[%c1_153, %c0_154, %c0_155] : memref<2x1x32xf32, #tpu.memory_space<vmem>>, vector<1x1x32xf32>
    %270 = vector.shape_cast %269 : vector<1x1x32xf32> to vector<1x32xf32>
    %cst_156 = arith.constant dense<0.000000e+00> : vector<8xf32>
    %271 = vector.multi_reduction <add>, %266, %cst_156 [1] : vector<8x32xf32> to vector<8xf32>
    %272 = vector.shape_cast %271 : vector<8xf32> to vector<8x1xf32>
    %cst_157 = arith.constant 3.200000e+01 : f32
    %273 = vector.broadcast %cst_157 : f32 to vector<8x1xf32>
    %274 = arith.divf %272, %273 : vector<8x1xf32>
    %275 = vector.broadcast %274 : vector<8x1xf32> to vector<8x32xf32>
    %276 = arith.subf %266, %275 : vector<8x32xf32>
    %277 = arith.mulf %276, %276 : vector<8x32xf32>
    %cst_158 = arith.constant dense<0.000000e+00> : vector<8xf32>
    %278 = vector.multi_reduction <add>, %277, %cst_158 [1] : vector<8x32xf32> to vector<8xf32>
    %279 = vector.shape_cast %278 : vector<8xf32> to vector<8x1xf32>
    %cst_159 = arith.constant 3.200000e+01 : f32
    %280 = vector.broadcast %cst_159 : f32 to vector<8x1xf32>
    %281 = arith.divf %279, %280 : vector<8x1xf32>
    %cst_160 = arith.constant 9.99999996E-13 : f32
    %282 = vector.broadcast %cst_160 : f32 to vector<8x1xf32>
    %283 = arith.addf %281, %282 : vector<8x1xf32>
    %284 = math.rsqrt %283 : vector<8x1xf32>
    %285 = vector.broadcast %284 : vector<8x1xf32> to vector<8x32xf32>
    %286 = arith.mulf %276, %285 : vector<8x32xf32>
    %287 = vector.broadcast %268 : vector<1x32xf32> to vector<8x32xf32>
    %288 = arith.mulf %286, %287 : vector<8x32xf32>
    %289 = vector.broadcast %270 : vector<1x32xf32> to vector<8x32xf32>
    %290 = arith.addf %288, %289 : vector<8x32xf32>
    %291 = arith.truncf %290 : vector<8x32xf32> to vector<8x32xbf16>
    %c0_161 = arith.constant 0 : index
    %c0_162 = arith.constant 0 : index
    %292 = vector.load %arg24[%c0_161, %c0_162] : memref<32x128xbf16, #tpu.memory_space<vmem>>, vector<32x128xbf16>
    %cst_163 = arith.constant dense<0.000000e+00> : vector<8x128xf32>
    %293 = tpu.matmul %291, %292, %cst_163 {dimension_numbers = #tpu.dot_dimension_numbers<[1], [0], [0], [1], [0, 0, 1, 1], [], []>} : vector<8x32xbf16>, vector<32x128xbf16>, vector<8x128xf32> -> vector<8x128xf32>
    %c0_164 = arith.constant 0 : index
    %c0_165 = arith.constant 0 : index
    %294 = vector.load %arg25[%c0_164, %c0_165] : memref<1x128xf32, #tpu.memory_space<vmem>>, vector<1x128xf32>
    %295 = vector.broadcast %294 : vector<1x128xf32> to vector<8x128xf32>
    %296 = arith.addf %293, %295 : vector<8x128xf32>
    %297 = tpu.iota {dimensions = array<i32: 1>} : vector<8x128xi32>
    %c64_i32 = arith.constant 64 : i32
    %298 = vector.broadcast %c64_i32 : i32 to vector<8x128xi32>
    %299 = arith.cmpi slt, %297, %298 : vector<8x128xi32>
    %cst_166 = arith.constant -1.000000e+30 : f32
    %300 = vector.broadcast %cst_166 : f32 to vector<8x128xf32>
    %301 = arith.select %299, %296, %300 : vector<8x128xi1>, vector<8x128xf32>
    %cst_167 = arith.constant dense<0xFF800000> : vector<8xf32>
    %302 = vector.multi_reduction <maximumf>, %301, %cst_167 [1] : vector<8x128xf32> to vector<8xf32>
    %303 = vector.shape_cast %302 : vector<8xf32> to vector<8x1xf32>
    %304 = vector.broadcast %303 : vector<8x1xf32> to vector<8x128xf32>
    %305 = arith.subf %301, %304 : vector<8x128xf32>
    %306 = math.exp %305 : vector<8x128xf32>
    %cst_168 = arith.constant dense<0.000000e+00> : vector<8xf32>
    %307 = vector.multi_reduction <add>, %306, %cst_168 [1] : vector<8x128xf32> to vector<8xf32>
    %308 = vector.shape_cast %307 : vector<8xf32> to vector<8x1xf32>
    %309 = tpu.reciprocal %308 : vector<8x1xf32> -> vector<8x1xf32>
    %310 = vector.broadcast %309 : vector<8x1xf32> to vector<8x128xf32>
    %311 = arith.mulf %306, %310 : vector<8x128xf32>
    %c0_169 = arith.constant 0 : index
    %c0_170 = arith.constant 0 : index
    %312 = vector.load %arg26[%c0_169, %c0_170] : memref<8x128xf32, #tpu.memory_space<vmem>>, vector<8x128xf32>
    tpu.vector_store %arg26[%c0_169, %c0_170], %311 {strides = array<i32>} : memref<8x128xf32, #tpu.memory_space<vmem>>, vector<8x128xf32>,
    return
  }
  func.func @transform_0(%arg0: i32) -> (i32, i32) {
    %c0_i32 = arith.constant 0 : i32
    %c0_i32_0 = arith.constant 0 : i32
    return %arg0, %c0_i32 : i32, i32
  }
  func.func @transform_1(%arg0: i32) -> (i32, i32) {
    %c0_i32 = arith.constant 0 : i32
    %c0_i32_0 = arith.constant 0 : i32
    %c0_i32_1 = arith.constant 0 : i32
    return %c0_i32, %c0_i32_0 : i32, i32
  }
  func.func @transform_2(%arg0: i32) -> (i32, i32) {
    %c0_i32 = arith.constant 0 : i32
    %c0_i32_0 = arith.constant 0 : i32
    %c0_i32_1 = arith.constant 0 : i32
    return %c0_i32, %c0_i32_0 : i32, i32
  }
  func.func @transform_3(%arg0: i32) -> (i32, i32) {
    %c0_i32 = arith.constant 0 : i32
    %c0_i32_0 = arith.constant 0 : i32
    %c0_i32_1 = arith.constant 0 : i32
    return %c0_i32, %c0_i32_0 : i32, i32
  }
  func.func @transform_4(%arg0: i32) -> (i32, i32) {
    %c0_i32 = arith.constant 0 : i32
    %c0_i32_0 = arith.constant 0 : i32
    %c0_i32_1 = arith.constant 0 : i32
    return %c0_i32, %c0_i32_0 : i32, i32
  }
  func.func @transform_5(%arg0: i32) -> (i32, i32, i32) {
    %c0_i32 = arith.constant 0 : i32
    %c0_i32_0 = arith.constant 0 : i32
    %c0_i32_1 = arith.constant 0 : i32
    %c0_i32_2 = arith.constant 0 : i32
    return %c0_i32, %c0_i32_0, %c0_i32_1 : i32, i32, i32
  }
  func.func @transform_6(%arg0: i32) -> (i32, i32, i32) {
    %c0_i32 = arith.constant 0 : i32
    %c0_i32_0 = arith.constant 0 : i32
    %c0_i32_1 = arith.constant 0 : i32
    %c0_i32_2 = arith.constant 0 : i32
    return %c0_i32, %c0_i32_0, %c0_i32_1 : i32, i32, i32
  }
  func.func @transform_7(%arg0: i32) -> (i32, i32, i32) {
    %c0_i32 = arith.constant 0 : i32
    %c0_i32_0 = arith.constant 0 : i32
    %c0_i32_1 = arith.constant 0 : i32
    %c0_i32_2 = arith.constant 0 : i32
    return %c0_i32, %c0_i32_0, %c0_i32_1 : i32, i32, i32
  }
  func.func @transform_8(%arg0: i32) -> (i32, i32, i32) {
    %c0_i32 = arith.constant 0 : i32
    %c0_i32_0 = arith.constant 0 : i32
    %c0_i32_1 = arith.constant 0 : i32
    %c0_i32_2 = arith.constant 0 : i32
    return %c0_i32, %c0_i32_0, %c0_i32_1 : i32, i32, i32
  }
  func.func @transform_9(%arg0: i32) -> (i32, i32, i32) {
    %c0_i32 = arith.constant 0 : i32
    %c0_i32_0 = arith.constant 0 : i32
    %c0_i32_1 = arith.constant 0 : i32
    %c0_i32_2 = arith.constant 0 : i32
    return %c0_i32, %c0_i32_0, %c0_i32_1 : i32, i32, i32
  }
  func.func @transform_10(%arg0: i32) -> (i32, i32, i32) {
    %c0_i32 = arith.constant 0 : i32
    %c0_i32_0 = arith.constant 0 : i32
    %c0_i32_1 = arith.constant 0 : i32
    %c0_i32_2 = arith.constant 0 : i32
    return %c0_i32, %c0_i32_0, %c0_i32_1 : i32, i32, i32
  }
  func.func @transform_11(%arg0: i32) -> (i32, i32, i32) {
    %c0_i32 = arith.constant 0 : i32
    %c0_i32_0 = arith.constant 0 : i32
    %c0_i32_1 = arith.constant 0 : i32
    %c0_i32_2 = arith.constant 0 : i32
    return %c0_i32, %c0_i32_0, %c0_i32_1 : i32, i32, i32
  }
  func.func @transform_12(%arg0: i32) -> (i32, i32, i32) {
    %c0_i32 = arith.constant 0 : i32
    %c0_i32_0 = arith.constant 0 : i32
    %c0_i32_1 = arith.constant 0 : i32
    %c0_i32_2 = arith.constant 0 : i32
    return %c0_i32, %c0_i32_0, %c0_i32_1 : i32, i32, i32
  }
  func.func @transform_13(%arg0: i32) -> (i32, i32, i32) {
    %c0_i32 = arith.constant 0 : i32
    %c0_i32_0 = arith.constant 0 : i32
    %c0_i32_1 = arith.constant 0 : i32
    %c0_i32_2 = arith.constant 0 : i32
    return %c0_i32, %c0_i32_0, %c0_i32_1 : i32, i32, i32
  }
  func.func @transform_14(%arg0: i32) -> (i32, i32, i32) {
    %c0_i32 = arith.constant 0 : i32
    %c0_i32_0 = arith.constant 0 : i32
    %c0_i32_1 = arith.constant 0 : i32
    %c0_i32_2 = arith.constant 0 : i32
    return %c0_i32, %c0_i32_0, %c0_i32_1 : i32, i32, i32
  }
  func.func @transform_15(%arg0: i32) -> (i32, i32, i32) {
    %c0_i32 = arith.constant 0 : i32
    %c0_i32_0 = arith.constant 0 : i32
    %c0_i32_1 = arith.constant 0 : i32
    %c0_i32_2 = arith.constant 0 : i32
    return %c0_i32, %c0_i32_0, %c0_i32_1 : i32, i32, i32
  }
  func.func @transform_16(%arg0: i32) -> (i32, i32, i32) {
    %c0_i32 = arith.constant 0 : i32
    %c0_i32_0 = arith.constant 0 : i32
    %c0_i32_1 = arith.constant 0 : i32
    %c0_i32_2 = arith.constant 0 : i32
    return %c0_i32, %c0_i32_0, %c0_i32_1 : i32, i32, i32
  }
  func.func @transform_17(%arg0: i32) -> (i32, i32, i32) {
    %c0_i32 = arith.constant 0 : i32
    %c0_i32_0 = arith.constant 0 : i32
    %c0_i32_1 = arith.constant 0 : i32
    %c0_i32_2 = arith.constant 0 : i32
    return %c0_i32, %c0_i32_0, %c0_i32_1 : i32, i32, i32
  }
  func.func @transform_18(%arg0: i32) -> (i32, i32, i32) {
    %c0_i32 = arith.constant 0 : i32
    %c0_i32_0 = arith.constant 0 : i32
    %c0_i32_1 = arith.constant 0 : i32
    %c0_i32_2 = arith.constant 0 : i32
    return %c0_i32, %c0_i32_0, %c0_i32_1 : i32, i32, i32
  }
  func.func @transform_19(%arg0: i32) -> (i32, i32, i32) {
    %c0_i32 = arith.constant 0 : i32
    %c0_i32_0 = arith.constant 0 : i32
    %c0_i32_1 = arith.constant 0 : i32
    %c0_i32_2 = arith.constant 0 : i32
    return %c0_i32, %c0_i32_0, %c0_i32_1 : i32, i32, i32
  }
  func.func @transform_20(%arg0: i32) -> (i32, i32, i32) {
    %c0_i32 = arith.constant 0 : i32
    %c0_i32_0 = arith.constant 0 : i32
    %c0_i32_1 = arith.constant 0 : i32
    %c0_i32_2 = arith.constant 0 : i32
    return %c0_i32, %c0_i32_0, %c0_i32_1 : i32, i32, i32
  }
  func.func @transform_21(%arg0: i32) -> (i32, i32) {
    %c0_i32 = arith.constant 0 : i32
    %c0_i32_0 = arith.constant 0 : i32
    %c0_i32_1 = arith.constant 0 : i32
    return %c0_i32, %c0_i32_0 : i32, i32
  }
  func.func @transform_22(%arg0: i32) -> (i32, i32) {
    %c0_i32 = arith.constant 0 : i32
    %c0_i32_0 = arith.constant 0 : i32
    %c0_i32_1 = arith.constant 0 : i32
    return %c0_i32, %c0_i32_0 : i32, i32
  }
  func.func @transform_23(%arg0: i32) -> (i32, i32) {
    %c0_i32 = arith.constant 0 : i32
    %c0_i32_0 = arith.constant 0 : i32
    %c0_i32_1 = arith.constant 0 : i32
    return %c0_i32, %c0_i32_0 : i32, i32
  }
  func.func @transform_24(%arg0: i32) -> (i32, i32) {
    %c0_i32 = arith.constant 0 : i32
    %c0_i32_0 = arith.constant 0 : i32
    %c0_i32_1 = arith.constant 0 : i32
    return %c0_i32, %c0_i32_0 : i32, i32
  }
  func.func @transform_25(%arg0: i32) -> (i32, i32) {
    %c0_i32 = arith.constant 0 : i32
    %c0_i32_0 = arith.constant 0 : i32
    return %arg0, %c0_i32 : i32, i32
  }
}

</mosaic_0001>

<llo_original>
// kernel: language_model_forward.1
$region0: #{language_model_forward.1}
  #allocation0 [shape = 'u32[]', space=smem, size = 0x4, offset = 0x4, fixed_abs, tag = 'smem constant byte address 0x4 - core index']
  #allocation1 [shape = 'u32[144,128]{1,0:T(1,128)}', space=vmem, size = 0x12000, scoped, tag = 'internal scratch']
  %s0 = inlined_call_operand.vmem [shape: s32[16,1], index: 0, kind: input, shape index: {}]
  %s1 = inlined_call_operand.vmem [shape: bf16[64,32], index: 1, kind: input, shape index: {}]
  %s2 = inlined_call_operand.vmem [shape: f32[8,32], index: 2, kind: input, shape index: {}]
  %s3 = inlined_call_operand.vmem [shape: f32[1,32], index: 3, kind: input, shape index: {}]
  %s4 = inlined_call_operand.vmem [shape: f32[1,32], index: 4, kind: input, shape index: {}]
  %s5 = inlined_call_operand.vmem [shape: bf16[2,32,32], index: 5, kind: input, shape index: {}]
  %s6 = inlined_call_operand.vmem [shape: f32[2,1,32], index: 6, kind: input, shape index: {}]
  %s7 = inlined_call_operand.vmem [shape: bf16[2,32,32], index: 7, kind: input, shape index: {}]
  %s8 = inlined_call_operand.vmem [shape: f32[2,1,32], index: 8, kind: input, shape index: {}]
  %s9 = inlined_call_operand.vmem [shape: bf16[2,32,32], index: 9, kind: input, shape index: {}]
  %s10 = inlined_call_operand.vmem [shape: f32[2,1,32], index: 10, kind: input, shape index: {}]
  %s11 = inlined_call_operand.vmem [shape: bf16[2,32,32], index: 11, kind: input, shape index: {}]
  %s12 = inlined_call_operand.vmem [shape: f32[2,1,32], index: 12, kind: input, shape index: {}]
  %s13 = inlined_call_operand.vmem [shape: f32[2,1,32], index: 13, kind: input, shape index: {}]
  %s14 = inlined_call_operand.vmem [shape: f32[2,1,32], index: 14, kind: input, shape index: {}]
  %s15 = inlined_call_operand.vmem [shape: bf16[2,32,64], index: 15, kind: input, shape index: {}]
  %s16 = inlined_call_operand.vmem [shape: f32[2,1,64], index: 16, kind: input, shape index: {}]
  %s17 = inlined_call_operand.vmem [shape: bf16[2,64,32], index: 17, kind: input, shape index: {}]
  %s18 = inlined_call_operand.vmem [shape: f32[2,1,32], index: 18, kind: input, shape index: {}]
  %s19 = inlined_call_operand.vmem [shape: f32[2,1,32], index: 19, kind: input, shape index: {}]
  %s20 = inlined_call_operand.vmem [shape: f32[2,1,32], index: 20, kind: input, shape index: {}]
  %s21 = inlined_call_operand.vmem [shape: f32[32,32], index: 21, kind: input, shape index: {}]
  %s22 = inlined_call_operand.vmem [shape: bf16[32,32], index: 22, kind: input, shape index: {}]
  %s23 = inlined_call_operand.vmem [shape: bf16[32,128], index: 23, kind: input, shape index: {}]
  %s24 = inlined_call_operand.vmem [shape: f32[1,128], index: 24, kind: input, shape index: {}]
  %s25 = inlined_call_operand.vmem [shape: f32[16,128], index: 25, kind: output, shape index: {}]
  %s26 = sld [smem:[#allocation0]]
  $region133: #{language_model_forward.1} parent=0
    _
  %s28 = ssub.s32 1, %s26
  %s29 = scalar_select 0, %s28, %s26
  loop: start=0, step=1, limit=4
  $region2: #{language_model_forward.1} parent=0 // loop_pre_header
    _
  $region3: #{language_model_forward.1} parent=0 // loop_header
    %s31 = sphi 0, %s35
    %p32 = scmp.ge.s32.totalorder %s31, 4
    %s41 = sphi 0, %s43
    %s44 = sphi 0, %s41
    %s45 = sphi 0, %s44
    %s61 = sphi 0, %s45
    %s65 = sphi 0, %s65
    %s67 = sphi 0, %s65
    %s68 = sphi 0, %s67
    %s82 = sphi 0, %s68
    %s86 = sphi 0, %s86
    %s88 = sphi 0, %s86
    %s89 = sphi 0, %s88
    %s103 = sphi 0, %s89
    %s107 = sphi 0, %s107
    %s109 = sphi 0, %s107
    %s110 = sphi 0, %s109
    %s124 = sphi 0, %s110
    %s128 = sphi 0, %s128
    %s130 = sphi 0, %s128
    %s131 = sphi 0, %s130
    %s145 = sphi 0, %s131
    %s149 = sphi 0, %s149
    %s151 = sphi 0, %s149
    %s152 = sphi 0, %s151
    %s166 = sphi 0, %s152
    %s170 = sphi 0, %s170
    %s172 = sphi 0, %s170
    %s173 = sphi 0, %s172
    %s187 = sphi 0, %s173
    %s191 = sphi 0, %s191
    %s193 = sphi 0, %s191
    %s194 = sphi 0, %s193
    %s208 = sphi 0, %s194
    %s212 = sphi 0, %s212
    %s214 = sphi 0, %s212
    %s215 = sphi 0, %s214
    %s229 = sphi 0, %s215
    %s233 = sphi 0, %s233
    %s235 = sphi 0, %s233
    %s236 = sphi 0, %s235
    %s250 = sphi 0, %s236
    %s254 = sphi 0, %s254
    %s256 = sphi 0, %s254
    %s257 = sphi 0, %s256
    %s271 = sphi 0, %s257
    %s275 = sphi 0, %s275
    %s277 = sphi 0, %s275
    %s278 = sphi 0, %s277
    %s292 = sphi 0, %s278
    %s296 = sphi 0, %s296
    %s298 = sphi 0, %s296
    %s299 = sphi 0, %s298
    %s313 = sphi 0, %s299
    %s317 = sphi 0, %s317
    %s319 = sphi 0, %s317
    %s320 = sphi 0, %s319
    %s334 = sphi 0, %s320
    %s338 = sphi 0, %s338
    %s340 = sphi 0, %s338
    %s341 = sphi 0, %s340
    %s355 = sphi 0, %s341
    %s359 = sphi 0, %s359
    %s361 = sphi 0, %s359
    %s362 = sphi 0, %s361
    %s376 = sphi 0, %s362
    %s380 = sphi 0, %s380
    %s382 = sphi 0, %s380
    %s383 = sphi 0, %s382
    %s397 = sphi 0, %s383
    %s401 = sphi 0, %s401
    %s403 = sphi 0, %s401
    %s404 = sphi 0, %s403
    %s418 = sphi 0, %s404
    %s422 = sphi 0, %s422
    %s424 = sphi 0, %s422
    %s425 = sphi 0, %s424
    %s439 = sphi 0, %s425
    %s443 = sphi 0, %s443
    %s445 = sphi 0, %s443
    %s446 = sphi 0, %s445
    %s460 = sphi 0, %s446
    %s464 = sphi 0, %s464
    %s466 = sphi 0, %s464
    %s467 = sphi 0, %s466
    %s481 = sphi 0, %s467
    %s485 = sphi 0, %s485
    %s487 = sphi 0, %s485
    %s488 = sphi 0, %s487
    %s502 = sphi 0, %s488
    %s506 = sphi 0, %s506
    %s508 = sphi 0, %s506
    %s509 = sphi 0, %s508
    %s523 = sphi 0, %s509
    %s527 = sphi 0, %s527
    %s529 = sphi 0, %s527
    %s530 = sphi 0, %s529
    %s544 = sphi 0, %s530
    %s548 = sphi 0, %s548
    %s550 = sphi 0, %s548
    %s551 = sphi 0, %s550
    %s565 = sphi 0, %s551
    %s571 = sphi 0, %s573
    %s574 = sphi 0, %s571
    %s575 = sphi 0, %s574
    %s591 = sphi 0, %s575
  $region4: #{language_model_forward.1} parent=0 // loop_header_branch
    %34 = sbr.rel (%p32) target = $region8
  $region5: #{language_model_forward.1} parent=0 // loop_body
    %s36 = ssub.s32 %s31, 1
    %s37 = ssub.s32 %s31, 2
    %s38 = sadd.s32 %s31, 1
    %s39 = ssub.s32 %s31, %s38
    %p40 = scmp.eq.s32.totalorder %s39, 0
    %s42 = sadd.s32 %s41, 1
    %s43 = scalar_select %p40, %s41, %s42
    %p46 = pneg %p40
    %p47 = scmp.eq.s32.totalorder %s31, 1
    %p48 = por %p46, %p47
    %p49 = scmp.ne.s32.totalorder %s41, %s44
    %p50 = scmp.eq.s32.totalorder %s31, 0
    %p51 = por %p49, %p50
    %p52 = scmp.ne.s32.totalorder %s41, %s44
    %p53 = scmp.eq.s32.totalorder %s36, 1
    %p54 = por %p52, %p53
    %p55 = scmp.ne.s32.totalorder %s44, %s45
    %p56 = scmp.eq.s32.totalorder %s36, 0
    %p57 = por %p55, %p56
    %p58 = scmp.ne.s32.totalorder %s44, %s45
    %p59 = scmp.eq.s32.totalorder %s37, 1
    %p60 = por %p58, %p59
    %p62 = scmp.ne.s32.totalorder %s45, %s61
    %p63 = scmp.eq.s32.totalorder %s37, 0
    %p64 = por %p62, %p63
    %s66 = sadd.s32 %s65, 1
    %p69 = scmp.eq.s32.totalorder %s31, 1
    %p70 = scmp.ne.s32.totalorder %s65, %s67
    %p71 = scmp.eq.s32.totalorder %s31, 0
    %p72 = por %p70, %p71
    %p73 = scmp.ne.s32.totalorder %s65, %s67
    %p74 = scmp.eq.s32.totalorder %s36, 1
    %p75 = por %p73, %p74
    %p76 = scmp.ne.s32.totalorder %s67, %s68
    %p77 = scmp.eq.s32.totalorder %s36, 0
    %p78 = por %p76, %p77
    %p79 = scmp.ne.s32.totalorder %s67, %s68
    %p80 = scmp.eq.s32.totalorder %s37, 1
    %p81 = por %p79, %p80
    %p83 = scmp.ne.s32.totalorder %s68, %s82
    %p84 = scmp.eq.s32.totalorder %s37, 0
    %p85 = por %p83, %p84
    %s87 = sadd.s32 %s86, 1
    %p90 = scmp.eq.s32.totalorder %s31, 1
    %p91 = scmp.ne.s32.totalorder %s86, %s88
    %p92 = scmp.eq.s32.totalorder %s31, 0
    %p93 = por %p91, %p92
    %p94 = scmp.ne.s32.totalorder %s86, %s88
    %p95 = scmp.eq.s32.totalorder %s36, 1
    %p96 = por %p94, %p95
    %p97 = scmp.ne.s32.totalorder %s88, %s89
    %p98 = scmp.eq.s32.totalorder %s36, 0
    %p99 = por %p97, %p98
    %p100 = scmp.ne.s32.totalorder %s88, %s89
    %p101 = scmp.eq.s32.totalorder %s37, 1
    %p102 = por %p100, %p101
    %p104 = scmp.ne.s32.totalorder %s89, %s103
    %p105 = scmp.eq.s32.totalorder %s37, 0
    %p106 = por %p104, %p105
    %s108 = sadd.s32 %s107, 1
    %p111 = scmp.eq.s32.totalorder %s31, 1
    %p112 = scmp.ne.s32.totalorder %s107, %s109
    %p113 = scmp.eq.s32.totalorder %s31, 0
    %p114 = por %p112, %p113
    %p115 = scmp.ne.s32.totalorder %s107, %s109
    %p116 = scmp.eq.s32.totalorder %s36, 1
    %p117 = por %p115, %p116
    %p118 = scmp.ne.s32.totalorder %s109, %s110
    %p119 = scmp.eq.s32.totalorder %s36, 0
    %p120 = por %p118, %p119
    %p121 = scmp.ne.s32.totalorder %s109, %s110
    %p122 = scmp.eq.s32.totalorder %s37, 1
    %p123 = por %p121, %p122
    %p125 = scmp.ne.s32.totalorder %s110, %s124
    %p126 = scmp.eq.s32.totalorder %s37, 0
    %p127 = por %p125, %p126
    %s129 = sadd.s32 %s128, 1
    %p132 = scmp.eq.s32.totalorder %s31, 1
    %p133 = scmp.ne.s32.totalorder %s128, %s130
    %p134 = scmp.eq.s32.totalorder %s31, 0
    %p135 = por %p133, %p134
    %p136 = scmp.ne.s32.totalorder %s128, %s130
    %p137 = scmp.eq.s32.totalorder %s36, 1
    %p138 = por %p136, %p137
    %p139 = scmp.ne.s32.totalorder %s130, %s131
    %p140 = scmp.eq.s32.totalorder %s36, 0
    %p141 = por %p139, %p140
    %p142 = scmp.ne.s32.totalorder %s130, %s131
    %p143 = scmp.eq.s32.totalorder %s37, 1
    %p144 = por %p142, %p143
    %p146 = scmp.ne.s32.totalorder %s131, %s145
    %p147 = scmp.eq.s32.totalorder %s37, 0
    %p148 = por %p146, %p147
    %s150 = sadd.s32 %s149, 1
    %p153 = scmp.eq.s32.totalorder %s31, 1
    %p154 = scmp.ne.s32.totalorder %s149, %s151
    %p155 = scmp.eq.s32.totalorder %s31, 0
    %p156 = por %p154, %p155
    %p157 = scmp.ne.s32.totalorder %s149, %s151
    %p158 = scmp.eq.s32.totalorder %s36, 1
    %p159 = por %p157, %p158
    %p160 = scmp.ne.s32.totalorder %s151, %s152
    %p161 = scmp.eq.s32.totalorder %s36, 0
    %p162 = por %p160, %p161
    %p163 = scmp.ne.s32.totalorder %s151, %s152
    %p164 = scmp.eq.s32.totalorder %s37, 1
    %p165 = por %p163, %p164
    %p167 = scmp.ne.s32.totalorder %s152, %s166
    %p168 = scmp.eq.s32.totalorder %s37, 0
    %p169 = por %p167, %p168
    %s171 = sadd.s32 %s170, 1
    %p174 = scmp.eq.s32.totalorder %s31, 1
    %p175 = scmp.ne.s32.totalorder %s170, %s172
    %p176 = scmp.eq.s32.totalorder %s31, 0
    %p177 = por %p175, %p176
    %p178 = scmp.ne.s32.totalorder %s170, %s172
    %p179 = scmp.eq.s32.totalorder %s36, 1
    %p180 = por %p178, %p179
    %p181 = scmp.ne.s32.totalorder %s172, %s173
    %p182 = scmp.eq.s32.totalorder %s36, 0
    %p183 = por %p181, %p182
    %p184 = scmp.ne.s32.totalorder %s172, %s173
    %p185 = scmp.eq.s32.totalorder %s37, 1
    %p186 = por %p184, %p185
    %p188 = scmp.ne.s32.totalorder %s173, %s187
    %p189 = scmp.eq.s32.totalorder %s37, 0
    %p190 = por %p188, %p189
    %s192 = sadd.s32 %s191, 1
    %p195 = scmp.eq.s32.totalorder %s31, 1
    %p196 = scmp.ne.s32.totalorder %s191, %s193
    %p197 = scmp.eq.s32.totalorder %s31, 0
    %p198 = por %p196, %p197
    %p199 = scmp.ne.s32.totalorder %s191, %s193
    %p200 = scmp.eq.s32.totalorder %s36, 1
    %p201 = por %p199, %p200
    %p202 = scmp.ne.s32.totalorder %s193, %s194
    %p203 = scmp.eq.s32.totalorder %s36, 0
    %p204 = por %p202, %p203
    %p205 = scmp.ne.s32.totalorder %s193, %s194
    %p206 = scmp.eq.s32.totalorder %s37, 1
    %p207 = por %p205, %p206
    %p209 = scmp.ne.s32.totalorder %s194, %s208
    %p210 = scmp.eq.s32.totalorder %s37, 0
    %p211 = por %p209, %p210
    %s213 = sadd.s32 %s212, 1
    %p216 = scmp.eq.s32.totalorder %s31, 1
    %p217 = scmp.ne.s32.totalorder %s212, %s214
    %p218 = scmp.eq.s32.totalorder %s31, 0
    %p219 = por %p217, %p218
    %p220 = scmp.ne.s32.totalorder %s212, %s214
    %p221 = scmp.eq.s32.totalorder %s36, 1
    %p222 = por %p220, %p221
    %p223 = scmp.ne.s32.totalorder %s214, %s215
    %p224 = scmp.eq.s32.totalorder %s36, 0
    %p225 = por %p223, %p224
    %p226 = scmp.ne.s32.totalorder %s214, %s215
    %p227 = scmp.eq.s32.totalorder %s37, 1
    %p228 = por %p226, %p227
    %p230 = scmp.ne.s32.totalorder %s215, %s229
    %p231 = scmp.eq.s32.totalorder %s37, 0
    %p232 = por %p230, %p231
    %s234 = sadd.s32 %s233, 1
    %p237 = scmp.eq.s32.totalorder %s31, 1
    %p238 = scmp.ne.s32.totalorder %s233, %s235
    %p239 = scmp.eq.s32.totalorder %s31, 0
    %p240 = por %p238, %p239
    %p241 = scmp.ne.s32.totalorder %s233, %s235
    %p242 = scmp.eq.s32.totalorder %s36, 1
    %p243 = por %p241, %p242
    %p244 = scmp.ne.s32.totalorder %s235, %s236
    %p245 = scmp.eq.s32.totalorder %s36, 0
    %p246 = por %p244, %p245
    %p247 = scmp.ne.s32.totalorder %s235, %s236
    %p248 = scmp.eq.s32.totalorder %s37, 1
    %p249 = por %p247, %p248
    %p251 = scmp.ne.s32.totalorder %s236, %s250
    %p252 = scmp.eq.s32.totalorder %s37, 0
    %p253 = por %p251, %p252
    %s255 = sadd.s32 %s254, 1
    %p258 = scmp.eq.s32.totalorder %s31, 1
    %p259 = scmp.ne.s32.totalorder %s254, %s256
    %p260 = scmp.eq.s32.totalorder %s31, 0
    %p261 = por %p259, %p260
    %p262 = scmp.ne.s32.totalorder %s254, %s256
    %p263 = scmp.eq.s32.totalorder %s36, 1
    %p264 = por %p262, %p263
    %p265 = scmp.ne.s32.totalorder %s256, %s257
    %p266 = scmp.eq.s32.totalorder %s36, 0
    %p267 = por %p265, %p266
    %p268 = scmp.ne.s32.totalorder %s256, %s257
    %p269 = scmp.eq.s32.totalorder %s37, 1
    %p270 = por %p268, %p269
    %p272 = scmp.ne.s32.totalorder %s257, %s271
    %p273 = scmp.eq.s32.totalorder %s37, 0
    %p274 = por %p272, %p273
    %s276 = sadd.s32 %s275, 1
    %p279 = scmp.eq.s32.totalorder %s31, 1
    %p280 = scmp.ne.s32.totalorder %s275, %s277
    %p281 = scmp.eq.s32.totalorder %s31, 0
    %p282 = por %p280, %p281
    %p283 = scmp.ne.s32.totalorder %s275, %s277
    %p284 = scmp.eq.s32.totalorder %s36, 1
    %p285 = por %p283, %p284
    %p286 = scmp.ne.s32.totalorder %s277, %s278
    %p287 = scmp.eq.s32.totalorder %s36, 0
    %p288 = por %p286, %p287
    %p289 = scmp.ne.s32.totalorder %s277, %s278
    %p290 = scmp.eq.s32.totalorder %s37, 1
    %p291 = por %p289, %p290
    %p293 = scmp.ne.s32.totalorder %s278, %s292
    %p294 = scmp.eq.s32.totalorder %s37, 0
    %p295 = por %p293, %p294
    %s297 = sadd.s32 %s296, 1
    %p300 = scmp.eq.s32.totalorder %s31, 1
    %p301 = scmp.ne.s32.totalorder %s296, %s298
    %p302 = scmp.eq.s32.totalorder %s31, 0
    %p303 = por %p301, %p302
    %p304 = scmp.ne.s32.totalorder %s296, %s298
    %p305 = scmp.eq.s32.totalorder %s36, 1
    %p306 = por %p304, %p305
    %p307 = scmp.ne.s32.totalorder %s298, %s299
    %p308 = scmp.eq.s32.totalorder %s36, 0
    %p309 = por %p307, %p308
    %p310 = scmp.ne.s32.totalorder %s298, %s299
    %p311 = scmp.eq.s32.totalorder %s37, 1
    %p312 = por %p310, %p311
    %p314 = scmp.ne.s32.totalorder %s299, %s313
    %p315 = scmp.eq.s32.totalorder %s37, 0
    %p316 = por %p314, %p315
    %s318 = sadd.s32 %s317, 1
    %p321 = scmp.eq.s32.totalorder %s31, 1
    %p322 = scmp.ne.s32.totalorder %s317, %s319
    %p323 = scmp.eq.s32.totalorder %s31, 0
    %p324 = por %p322, %p323
    %p325 = scmp.ne.s32.totalorder %s317, %s319
    %p326 = scmp.eq.s32.totalorder %s36, 1
    %p327 = por %p325, %p326
    %p328 = scmp.ne.s32.totalorder %s319, %s320
    %p329 = scmp.eq.s32.totalorder %s36, 0
    %p330 = por %p328, %p329
    %p331 = scmp.ne.s32.totalorder %s319, %s320
    %p332 = scmp.eq.s32.totalorder %s37, 1
    %p333 = por %p331, %p332
    %p335 = scmp.ne.s32.totalorder %s320, %s334
    %p336 = scmp.eq.s32.totalorder %s37, 0
    %p337 = por %p335, %p336
    %s339 = sadd.s32 %s338, 1
    %p342 = scmp.eq.s32.totalorder %s31, 1
    %p343 = scmp.ne.s32.totalorder %s338, %s340
    %p344 = scmp.eq.s32.totalorder %s31, 0
    %p345 = por %p343, %p344
    %p346 = scmp.ne.s32.totalorder %s338, %s340
    %p347 = scmp.eq.s32.totalorder %s36, 1
    %p348 = por %p346, %p347
    %p349 = scmp.ne.s32.totalorder %s340, %s341
    %p350 = scmp.eq.s32.totalorder %s36, 0
    %p351 = por %p349, %p350
    %p352 = scmp.ne.s32.totalorder %s340, %s341
    %p353 = scmp.eq.s32.totalorder %s37, 1
    %p354 = por %p352, %p353
    %p356 = scmp.ne.s32.totalorder %s341, %s355
    %p357 = scmp.eq.s32.totalorder %s37, 0
    %p358 = por %p356, %p357
    %s360 = sadd.s32 %s359, 1
    %p363 = scmp.eq.s32.totalorder %s31, 1
    %p364 = scmp.ne.s32.totalorder %s359, %s361
    %p365 = scmp.eq.s32.totalorder %s31, 0
    %p366 = por %p364, %p365
    %p367 = scmp.ne.s32.totalorder %s359, %s361
    %p368 = scmp.eq.s32.totalorder %s36, 1
    %p369 = por %p367, %p368
    %p370 = scmp.ne.s32.totalorder %s361, %s362
    %p371 = scmp.eq.s32.totalorder %s36, 0
    %p372 = por %p370, %p371
    %p373 = scmp.ne.s32.totalorder %s361, %s362
    %p374 = scmp.eq.s32.totalorder %s37, 1
    %p375 = por %p373, %p374
    %p377 = scmp.ne.s32.totalorder %s362, %s376
    %p378 = scmp.eq.s32.totalorder %s37, 0
    %p379 = por %p377, %p378
    %s381 = sadd.s32 %s380, 1
    %p384 = scmp.eq.s32.totalorder %s31, 1
    %p385 = scmp.ne.s32.totalorder %s380, %s382
    %p386 = scmp.eq.s32.totalorder %s31, 0
    %p387 = por %p385, %p386
    %p388 = scmp.ne.s32.totalorder %s380, %s382
    %p389 = scmp.eq.s32.totalorder %s36, 1
    %p390 = por %p388, %p389
    %p391 = scmp.ne.s32.totalorder %s382, %s383
    %p392 = scmp.eq.s32.totalorder %s36, 0
    %p393 = por %p391, %p392
    %p394 = scmp.ne.s32.totalorder %s382, %s383
    %p395 = scmp.eq.s32.totalorder %s37, 1
    %p396 = por %p394, %p395
    %p398 = scmp.ne.s32.totalorder %s383, %s397
    %p399 = scmp.eq.s32.totalorder %s37, 0
    %p400 = por %p398, %p399
    %s402 = sadd.s32 %s401, 1
    %p405 = scmp.eq.s32.totalorder %s31, 1
    %p406 = scmp.ne.s32.totalorder %s401, %s403
    %p407 = scmp.eq.s32.totalorder %s31, 0
    %p408 = por %p406, %p407
    %p409 = scmp.ne.s32.totalorder %s401, %s403
    %p410 = scmp.eq.s32.totalorder %s36, 1
    %p411 = por %p409, %p410
    %p412 = scmp.ne.s32.totalorder %s403, %s404
    %p413 = scmp.eq.s32.totalorder %s36, 0
    %p414 = por %p412, %p413
    %p415 = scmp.ne.s32.totalorder %s403, %s404
    %p416 = scmp.eq.s32.totalorder %s37, 1
    %p417 = por %p415, %p416
    %p419 = scmp.ne.s32.totalorder %s404, %s418
    %p420 = scmp.eq.s32.totalorder %s37, 0
    %p421 = por %p419, %p420
    %s423 = sadd.s32 %s422, 1
    %p426 = scmp.eq.s32.totalorder %s31, 1
    %p427 = scmp.ne.s32.totalorder %s422, %s424
    %p428 = scmp.eq.s32.totalorder %s31, 0
    %p429 = por %p427, %p428
    %p430 = scmp.ne.s32.totalorder %s422, %s424
    %p431 = scmp.eq.s32.totalorder %s36, 1
    %p432 = por %p430, %p431
    %p433 = scmp.ne.s32.totalorder %s424, %s425
    %p434 = scmp.eq.s32.totalorder %s36, 0
    %p435 = por %p433, %p434
    %p436 = scmp.ne.s32.totalorder %s424, %s425
    %p437 = scmp.eq.s32.totalorder %s37, 1
    %p438 = por %p436, %p437
    %p440 = scmp.ne.s32.totalorder %s425, %s439
    %p441 = scmp.eq.s32.totalorder %s37, 0
    %p442 = por %p440, %p441
    %s444 = sadd.s32 %s443, 1
    %p447 = scmp.eq.s32.totalorder %s31, 1
    %p448 = scmp.ne.s32.totalorder %s443, %s445
    %p449 = scmp.eq.s32.totalorder %s31, 0
    %p450 = por %p448, %p449
    %p451 = scmp.ne.s32.totalorder %s443, %s445
    %p452 = scmp.eq.s32.totalorder %s36, 1
    %p453 = por %p451, %p452
    %p454 = scmp.ne.s32.totalorder %s445, %s446
    %p455 = scmp.eq.s32.totalorder %s36, 0
    %p456 = por %p454, %p455
    %p457 = scmp.ne.s32.totalorder %s445, %s446
    %p458 = scmp.eq.s32.totalorder %s37, 1
    %p459 = por %p457, %p458
    %p461 = scmp.ne.s32.totalorder %s446, %s460
    %p462 = scmp.eq.s32.totalorder %s37, 0
    %p463 = por %p461, %p462
    %s465 = sadd.s32 %s464, 1
    %p468 = scmp.eq.s32.totalorder %s31, 1
    %p469 = scmp.ne.s32.totalorder %s464, %s466
    %p470 = scmp.eq.s32.totalorder %s31, 0
    %p471 = por %p469, %p470
    %p472 = scmp.ne.s32.totalorder %s464, %s466
    %p473 = scmp.eq.s32.totalorder %s36, 1
    %p474 = por %p472, %p473
    %p475 = scmp.ne.s32.totalorder %s466, %s467
    %p476 = scmp.eq.s32.totalorder %s36, 0
    %p477 = por %p475, %p476
    %p478 = scmp.ne.s32.totalorder %s466, %s467
    %p479 = scmp.eq.s32.totalorder %s37, 1
    %p480 = por %p478, %p479
    %p482 = scmp.ne.s32.totalorder %s467, %s481
    %p483 = scmp.eq.s32.totalorder %s37, 0
    %p484 = por %p482, %p483
    %s486 = sadd.s32 %s485, 1
    %p489 = scmp.eq.s32.totalorder %s31, 1
    %p490 = scmp.ne.s32.totalorder %s485, %s487
    %p491 = scmp.eq.s32.totalorder %s31, 0
    %p492 = por %p490, %p491
    %p493 = scmp.ne.s32.totalorder %s485, %s487
    %p494 = scmp.eq.s32.totalorder %s36, 1
    %p495 = por %p493, %p494
    %p496 = scmp.ne.s32.totalorder %s487, %s488
    %p497 = scmp.eq.s32.totalorder %s36, 0
    %p498 = por %p496, %p497
    %p499 = scmp.ne.s32.totalorder %s487, %s488
    %p500 = scmp.eq.s32.totalorder %s37, 1
    %p501 = por %p499, %p500
    %p503 = scmp.ne.s32.totalorder %s488, %s502
    %p504 = scmp.eq.s32.totalorder %s37, 0
    %p505 = por %p503, %p504
    %s507 = sadd.s32 %s506, 1
    %p510 = scmp.eq.s32.totalorder %s31, 1
    %p511 = scmp.ne.s32.totalorder %s506, %s508
    %p512 = scmp.eq.s32.totalorder %s31, 0
    %p513 = por %p511, %p512
    %p514 = scmp.ne.s32.totalorder %s506, %s508
    %p515 = scmp.eq.s32.totalorder %s36, 1
    %p516 = por %p514, %p515
    %p517 = scmp.ne.s32.totalorder %s508, %s509
    %p518 = scmp.eq.s32.totalorder %s36, 0
    %p519 = por %p517, %p518
    %p520 = scmp.ne.s32.totalorder %s508, %s509
    %p521 = scmp.eq.s32.totalorder %s37, 1
    %p522 = por %p520, %p521
    %p524 = scmp.ne.s32.totalorder %s509, %s523
    %p525 = scmp.eq.s32.totalorder %s37, 0
    %p526 = por %p524, %p525
    %s528 = sadd.s32 %s527, 1
    %p531 = scmp.eq.s32.totalorder %s31, 1
    %p532 = scmp.ne.s32.totalorder %s527, %s529
    %p533 = scmp.eq.s32.totalorder %s31, 0
    %p534 = por %p532, %p533
    %p535 = scmp.ne.s32.totalorder %s527, %s529
    %p536 = scmp.eq.s32.totalorder %s36, 1
    %p537 = por %p535, %p536
    %p538 = scmp.ne.s32.totalorder %s529, %s530
    %p539 = scmp.eq.s32.totalorder %s36, 0
    %p540 = por %p538, %p539
    %p541 = scmp.ne.s32.totalorder %s529, %s530
    %p542 = scmp.eq.s32.totalorder %s37, 1
    %p543 = por %p541, %p542
    %p545 = scmp.ne.s32.totalorder %s530, %s544
    %p546 = scmp.eq.s32.totalorder %s37, 0
    %p547 = por %p545, %p546
    %s549 = sadd.s32 %s548, 1
    %p552 = scmp.eq.s32.totalorder %s31, 1
    %p553 = scmp.ne.s32.totalorder %s548, %s550
    %p554 = scmp.eq.s32.totalorder %s31, 0
    %p555 = por %p553, %p554
    %p556 = scmp.ne.s32.totalorder %s548, %s550
    %p557 = scmp.eq.s32.totalorder %s36, 1
    %p558 = por %p556, %p557
    %p559 = scmp.ne.s32.totalorder %s550, %s551
    %p560 = scmp.eq.s32.totalorder %s36, 0
    %p561 = por %p559, %p560
    %p562 = scmp.ne.s32.totalorder %s550, %s551
    %p563 = scmp.eq.s32.totalorder %s37, 1
    %p564 = por %p562, %p563
    %p566 = scmp.ne.s32.totalorder %s551, %s565
    %p567 = scmp.eq.s32.totalorder %s37, 0
    %p568 = por %p566, %p567
    %s569 = ssub.s32 %s31, %s38
    %p570 = scmp.eq.s32.totalorder %s569, 0
    %s572 = sadd.s32 %s571, 1
    %s573 = scalar_select %p570, %s571, %s572
    %p576 = pneg %p570
    %p577 = scmp.eq.s32.totalorder %s31, 1
    %p578 = por %p576, %p577
    %p579 = scmp.ne.s32.totalorder %s571, %s574
    %p580 = scmp.eq.s32.totalorder %s31, 0
    %p581 = por %p579, %p580
    %p582 = scmp.ne.s32.totalorder %s571, %s574
    %p583 = scmp.eq.s32.totalorder %s36, 1
    %p584 = por %p582, %p583
    %p585 = scmp.ne.s32.totalorder %s574, %s575
    %p586 = scmp.eq.s32.totalorder %s36, 0
    %p587 = por %p585, %p586
    %p588 = scmp.ne.s32.totalorder %s574, %s575
    %p589 = scmp.eq.s32.totalorder %s37, 1
    %p590 = por %p588, %p589
    %p592 = scmp.ne.s32.totalorder %s575, %s591
    %p593 = scmp.eq.s32.totalorder %s37, 0
    %p594 = por %p592, %p593
    %p595 = scmp.le.s32.totalorder 1, %s31
    %p596 = scmp.lt.s32.totalorder %s31, 3
    %p597 = pnand %p595, %p596
    %p598 = pneg %p597
    // Predicated region
    $region9: #{language_model_forward.1} parent=5 // pred_check
      _
    $region10: #{language_model_forward.1} parent=5 // pred_check_branch
      %600 = sbr.rel (%p597) target = $region12
    $region11: #{language_model_forward.1} parent=5 // pred_region
      %s601 = ssub.s32 %s31, 1
      // Predicated region
      $region13: #{language_model_forward.1} parent=11 // pred_check
        %p602 = pneg %p78
      $region14: #{language_model_forward.1} parent=11 // pred_check_branch
        %604 = sbr.rel (%p602) target = $region16
      $region15: #{language_model_forward.1} parent=11 // pred_region
        _
      $region16: #{language_model_forward.1} parent=11 // pred_fallthru
        _
      // Predicated region
      $region17: #{language_model_forward.1} parent=11 // pred_check
        %p605 = pneg %p99
      $region18: #{language_model_forward.1} parent=11 // pred_check_branch
        %607 = sbr.rel (%p605) target = $region20
      $region19: #{language_model_forward.1} parent=11 // pred_region
        _
      $region20: #{language_model_forward.1} parent=11 // pred_fallthru
        _
      // Predicated region
      $region21: #{language_model_forward.1} parent=11 // pred_check
        %p608 = pneg %p120
      $region22: #{language_model_forward.1} parent=11 // pred_check_branch
        %610 = sbr.rel (%p608) target = $region24
      $region23: #{language_model_forward.1} parent=11 // pred_region
        _
      $region24: #{language_model_forward.1} parent=11 // pred_fallthru
        _
      // Predicated region
      $region25: #{language_model_forward.1} parent=11 // pred_check
        %p611 = pneg %p141
      $region26: #{language_model_forward.1} parent=11 // pred_check_branch
        %613 = sbr.rel (%p611) target = $region28
      $region27: #{language_model_forward.1} parent=11 // pred_region
        _
      $region28: #{language_model_forward.1} parent=11 // pred_fallthru
        _
      // Predicated region
      $region29: #{language_model_forward.1} parent=11 // pred_check
        %p614 = pneg %p162
      $region30: #{language_model_forward.1} parent=11 // pred_check_branch
        %616 = sbr.rel (%p614) target = $region32
      $region31: #{language_model_forward.1} parent=11 // pred_region
        _
      $region32: #{language_model_forward.1} parent=11 // pred_fallthru
        _
      // Predicated region
      $region33: #{language_model_forward.1} parent=11 // pred_check
        %p617 = pneg %p183
      $region34: #{language_model_forward.1} parent=11 // pred_check_branch
        %619 = sbr.rel (%p617) target = $region36
      $region35: #{language_model_forward.1} parent=11 // pred_region
        _
      $region36: #{language_model_forward.1} parent=11 // pred_fallthru
        _
      // Predicated region
      $region37: #{language_model_forward.1} parent=11 // pred_check
        %p620 = pneg %p204
      $region38: #{language_model_forward.1} parent=11 // pred_check_branch
        %622 = sbr.rel (%p620) target = $region40
      $region39: #{language_model_forward.1} parent=11 // pred_region
        _
      $region40: #{language_model_forward.1} parent=11 // pred_fallthru
        _
      // Predicated region
      $region41: #{language_model_forward.1} parent=11 // pred_check
        %p623 = pneg %p225
      $region42: #{language_model_forward.1} parent=11 // pred_check_branch
        %625 = sbr.rel (%p623) target = $region44
      $region43: #{language_model_forward.1} parent=11 // pred_region
        _
      $region44: #{language_model_forward.1} parent=11 // pred_fallthru
        _
      // Predicated region
      $region45: #{language_model_forward.1} parent=11 // pred_check
        %p626 = pneg %p246
      $region46: #{language_model_forward.1} parent=11 // pred_check_branch
        %628 = sbr.rel (%p626) target = $region48
      $region47: #{language_model_forward.1} parent=11 // pred_region
        _
      $region48: #{language_model_forward.1} parent=11 // pred_fallthru
        _
      // Predicated region
      $region49: #{language_model_forward.1} parent=11 // pred_check
        %p629 = pneg %p267
      $region50: #{language_model_forward.1} parent=11 // pred_check_branch
        %631 = sbr.rel (%p629) target = $region52
      $region51: #{language_model_forward.1} parent=11 // pred_region
        _
      $region52: #{language_model_forward.1} parent=11 // pred_fallthru
        _
      // Predicated region
      $region53: #{language_model_forward.1} parent=11 // pred_check
        %p632 = pneg %p288
      $region54: #{language_model_forward.1} parent=11 // pred_check_branch
        %634 = sbr.rel (%p632) target = $region56
      $region55: #{language_model_forward.1} parent=11 // pred_region
        _
      $region56: #{language_model_forward.1} parent=11 // pred_fallthru
        _
      // Predicated region
      $region57: #{language_model_forward.1} parent=11 // pred_check
        %p635 = pneg %p309
      $region58: #{language_model_forward.1} parent=11 // pred_check_branch
        %637 = sbr.rel (%p635) target = $region60
      $region59: #{language_model_forward.1} parent=11 // pred_region
        _
      $region60: #{language_model_forward.1} parent=11 // pred_fallthru
        _
      // Predicated region
      $region61: #{language_model_forward.1} parent=11 // pred_check
        %p638 = pneg %p330
      $region62: #{language_model_forward.1} parent=11 // pred_check_branch
        %640 = sbr.rel (%p638) target = $region64
      $region63: #{language_model_forward.1} parent=11 // pred_region
        _
      $region64: #{language_model_forward.1} parent=11 // pred_fallthru
        _
      // Predicated region
      $region65: #{language_model_forward.1} parent=11 // pred_check
        %p641 = pneg %p351
      $region66: #{language_model_forward.1} parent=11 // pred_check_branch
        %643 = sbr.rel (%p641) target = $region68
      $region67: #{language_model_forward.1} parent=11 // pred_region
        _
      $region68: #{language_model_forward.1} parent=11 // pred_fallthru
        _
      // Predicated region
      $region69: #{language_model_forward.1} parent=11 // pred_check
        %p644 = pneg %p372
      $region70: #{language_model_forward.1} parent=11 // pred_check_branch
        %646 = sbr.rel (%p644) target = $region72
      $region71: #{language_model_forward.1} parent=11 // pred_region
        _
      $region72: #{language_model_forward.1} parent=11 // pred_fallthru
        _
      // Predicated region
      $region73: #{language_model_forward.1} parent=11 // pred_check
        %p647 = pneg %p393
      $region74: #{language_model_forward.1} parent=11 // pred_check_branch
        %649 = sbr.rel (%p647) target = $region76
      $region75: #{language_model_forward.1} parent=11 // pred_region
        _
      $region76: #{language_model_forward.1} parent=11 // pred_fallthru
        _
      // Predicated region
      $region77: #{language_model_forward.1} parent=11 // pred_check
        %p650 = pneg %p414
      $region78: #{language_model_forward.1} parent=11 // pred_check_branch
        %652 = sbr.rel (%p650) target = $region80
      $region79: #{language_model_forward.1} parent=11 // pred_region
        _
      $region80: #{language_model_forward.1} parent=11 // pred_fallthru
        _
      // Predicated region
      $region81: #{language_model_forward.1} parent=11 // pred_check
        %p653 = pneg %p435
      $region82: #{language_model_forward.1} parent=11 // pred_check_branch
        %655 = sbr.rel (%p653) target = $region84
      $region83: #{language_model_forward.1} parent=11 // pred_region
        _
      $region84: #{language_model_forward.1} parent=11 // pred_fallthru
        _
      // Predicated region
      $region85: #{language_model_forward.1} parent=11 // pred_check
        %p656 = pneg %p456
      $region86: #{language_model_forward.1} parent=11 // pred_check_branch
        %658 = sbr.rel (%p656) target = $region88
      $region87: #{language_model_forward.1} parent=11 // pred_region
        _
      $region88: #{language_model_forward.1} parent=11 // pred_fallthru
        _
      // Predicated region
      $region89: #{language_model_forward.1} parent=11 // pred_check
        %p659 = pneg %p477
      $region90: #{language_model_forward.1} parent=11 // pred_check_branch
        %661 = sbr.rel (%p659) target = $region92
      $region91: #{language_model_forward.1} parent=11 // pred_region
        _
      $region92: #{language_model_forward.1} parent=11 // pred_fallthru
        _
      // Predicated region
      $region93: #{language_model_forward.1} parent=11 // pred_check
        %p662 = pneg %p498
      $region94: #{language_model_forward.1} parent=11 // pred_check_branch
        %664 = sbr.rel (%p662) target = $region96
      $region95: #{language_model_forward.1} parent=11 // pred_region
        _
      $region96: #{language_model_forward.1} parent=11 // pred_fallthru
        _
      // Predicated region
      $region97: #{language_model_forward.1} parent=11 // pred_check
        %p665 = pneg %p519
      $region98: #{language_model_forward.1} parent=11 // pred_check_branch
        %667 = sbr.rel (%p665) target = $region100
      $region99: #{language_model_forward.1} parent=11 // pred_region
        _
      $region100: #{language_model_forward.1} parent=11 // pred_fallthru
        _
      // Predicated region
      $region101: #{language_model_forward.1} parent=11 // pred_check
        %p668 = pneg %p540
      $region102: #{language_model_forward.1} parent=11 // pred_check_branch
        %670 = sbr.rel (%p668) target = $region104
      $region103: #{language_model_forward.1} parent=11 // pred_region
        _
      $region104: #{language_model_forward.1} parent=11 // pred_fallthru
        _
      // Predicated region
      $region105: #{language_model_forward.1} parent=11 // pred_check
        %p671 = pneg %p561
      $region106: #{language_model_forward.1} parent=11 // pred_check_branch
        %673 = sbr.rel (%p671) target = $region108
      $region107: #{language_model_forward.1} parent=11 // pred_region
        _
      $region108: #{language_model_forward.1} parent=11 // pred_fallthru
        _
    $region12: #{language_model_forward.1} parent=5 // pred_fallthru
      _
    %p674 = scmp.lt.s32.totalorder %s31, 2
    // Predicated region
    $region109: #{language_model_forward.1} parent=5 // pred_check
      %p675 = pneg %p674
    $region110: #{language_model_forward.1} parent=5 // pred_check_branch
      %677 = sbr.rel (%p675) target = $region112
    $region111: #{language_model_forward.1} parent=5 // pred_region
      // Predicated region
      $region113: #{language_model_forward.1} parent=111 // pred_check
        %p678 = pneg %p51
      $region114: #{language_model_forward.1} parent=111 // pred_check_branch
        %680 = sbr.rel (%p678) target = $region116
      $region115: #{language_model_forward.1} parent=111 // pred_region
        %p681 = scmp.lt.s32.totalorder %s31, 1
        %s682 = scalar_select %p681, %s31, 1
        %s683 = smul.addr %s682, 8
        %s684 = scalar_lea.vmem %s0, %s683
      $region116: #{language_model_forward.1} parent=111 // pred_fallthru
        _
    $region112: #{language_model_forward.1} parent=5 // pred_fallthru
      _
    %p685 = scmp.le.s32.totalorder 1, %s31
    %p686 = scmp.lt.s32.totalorder %s31, 3
    %p687 = pnand %p685, %p686
    %p688 = pneg %p687
    // Predicated region
    $region117: #{language_model_forward.1} parent=5 // pred_check
      _
    $region118: #{language_model_forward.1} parent=5 // pred_check_branch
      %690 = sbr.rel (%p687) target = $region120
    $region119: #{language_model_forward.1} parent=5 // pred_region
      %s691 = ssub.s32 %s31, 1
      %p692 = scmp.lt.s32.totalorder %s36, 1
      %s693 = scalar_select %p692, %s36, 1
      %s694 = smul.addr %s693, 8
      %s695 = scalar_lea.vmem %s0, %s694
      %p696 = pneg %p57
      %p697 = pneg %p54
      %p698 = pneg %p78
      %p699 = pneg %p75
      %p700 = pneg %p99
      %p701 = pneg %p96
      %p702 = pneg %p120
      %p703 = pneg %p117
      %p704 = pneg %p141
      %p705 = pneg %p138
      %p706 = pneg %p162
      %p707 = pneg %p159
      %p708 = pneg %p183
      %p709 = pneg %p180
      %p710 = pneg %p204
      %p711 = pneg %p201
      %p712 = pneg %p225
      %p713 = pneg %p222
      %p714 = pneg %p246
      %p715 = pneg %p243
      %p716 = pneg %p267
      %p717 = pneg %p264
      %p718 = pneg %p288
      %p719 = pneg %p285
      %p720 = pneg %p309
      %p721 = pneg %p306
      %p722 = pneg %p330
      %p723 = pneg %p327
      %p724 = pneg %p351
      %p725 = pneg %p348
      %p726 = pneg %p372
      %p727 = pneg %p369
      %p728 = pneg %p393
      %p729 = pneg %p390
      %p730 = pneg %p414
      %p731 = pneg %p411
      %p732 = pneg %p435
      %p733 = pneg %p432
      %p734 = pneg %p456
      %p735 = pneg %p453
      %p736 = pneg %p477
      %p737 = pneg %p474
      %p738 = pneg %p498
      %p739 = pneg %p495
      %p740 = pneg %p519
      %p741 = pneg %p516
      %p742 = pneg %p540
      %p743 = pneg %p537
      %p744 = pneg %p561
      %p745 = pneg %p558
      %p746 = pneg %p587
      %p747 = pneg %p584
      %p748 = scmp.lt.s32.totalorder %s36, 1
      %s749 = scalar_select %p748, %s36, 1
      %s750 = smul.addr %s749, 8
      %s751 = scalar_lea.vmem %s25, %s750
      %p752 = scmp.lt.s32.totalorder %s36, 1
      %s753 = scalar_select %p752, %s36, 1
      %s754 = smul.addr %s753, 8
      %s755 = scalar_lea.vmem %s0, %s754
      %p756 = scmp.lt.s32.totalorder %s36, 1
      %s757 = scalar_select %p756, %s36, 1
      %s758 = smul.addr %s757, 8
      %s759 = scalar_lea.vmem %s25, %s758
      %v761 = vld [vmem:[%s755] sm:$0xff]
      %v762 = vlaneseq
      %v763 = vand.u32 %v762, 127
      %764 = vset.pattern.permute.xlu0 0
      %765 = vperm.xlu0 %764, %v761
      %v766 = vpop.permute.xlu0 %765
      %vm767 = vcmp.eq.s32.totalorder %v763, %v766
      %v768 = vsel %vm767, 1, 0
      %v769 = vcvt.s32.f32 %v768
      %v770 = vpack.c.bf16 %v769, %v769
      %v771 = vld [vmem:[%s1] sm:$0xf]
      %v772 = vld [vmem:[%s1 + $0x4] sm:$0xf]
      %v773 = vld [vmem:[%s1 + $0x8] sm:$0xf]
      %v774 = vld [vmem:[%s1 + $0xc] sm:$0xf]
      %v775 = vld [vmem:[%s1 + $0x10] sm:$0xf]
      %v776 = vld [vmem:[%s1 + $0x14] sm:$0xf]
      %v777 = vld [vmem:[%s1 + $0x18] sm:$0xf]
      %v778 = vld [vmem:[%s1 + $0x1c] sm:$0xf]
      %v779 = vld [vmem:[%s2] sm:$0xff]
      %v788 = vunpack.c.l.b16 %v771
      %v789 = vunpack.c.l.b16 %v772
      %v790 = vunpack.c.l.b16 %v773
      %v791 = vunpack.c.l.b16 %v774
      %v792 = vunpack.c.l.b16 %v775
      %v793 = vunpack.c.l.b16 %v776
      %v794 = vunpack.c.l.b16 %v777
      %v795 = vunpack.c.l.b16 %v778
      %v796 = vpack.c.b16 %v789, %v788
      %v797 = vpack.c.b16 %v791, %v790
      %v798 = vpack.c.b16 %v793, %v792
      %v799 = vpack.c.b16 %v795, %v794
      %vm804 = vcmask 523264
      %v806 = vsel %vm804, %v770, 0
      %808 = vmatprep.subr.bf16.mxu0 0
      %809 = vmatpush1.bf16.msra.mxu0 0
      %810 = vmatprep.subr.bf16.mxu0 0
      %811 = vmatpush1.bf16.msra.mxu0 0
      %812 = vmatprep.subr.bf16.mxu0 0
      %813 = vmatpush1.bf16.msra.mxu0 0
      %814 = vmatprep.subr.bf16.mxu0 0
      %815 = vmatpush1.bf16.msra.mxu0 0
      %816 = vmatprep.subr.bf16.mxu0 0
      %817 = vmatpush1.bf16.msra.mxu0 %v799
      %818 = vmatprep.subr.bf16.mxu0 0
      %819 = vmatpush1.bf16.msra.mxu0 %v798
      %820 = vmatprep.subr.bf16.mxu0 0
      %821 = vmatpush1.bf16.msra.mxu0 %v797
      %822 = vmatprep.subr.bf16.mxu0 0
      %823 = vmatpush1.bf16.msra.mxu0 %v796
      %824 = vmatprep.subr.bf16.mxu0 0
      %825 = vmatpush2.bf16.msra.mxu0 0
      %826 = vmatprep.subr.bf16.mxu0 0
      %827 = vmatpush2.bf16.msra.mxu0 0
      %828 = vmatprep.subr.bf16.mxu0 0
      %829 = vmatpush2.bf16.msra.mxu0 0
      %830 = vmatprep.subr.bf16.mxu0 0
      %831 = vmatpush2.bf16.msra.mxu0 0
      %832 = vmatprep.subr.bf16.mxu0 0
      %833 = vmatpush2.bf16.msra.mxu0 0
      %834 = vmatprep.subr.bf16.mxu0 0
      %835 = vmatpush2.bf16.msra.mxu0 0
      %836 = vmatprep.subr.bf16.mxu0 0
      %837 = vmatpush2.bf16.msra.mxu0 0
      %838 = vmatprep.subr.bf16.mxu0 0
      %839 = vmatpush2.bf16.msra.mxu0 0
      %840 = vmatprep.mubr.bf16.mxu0 0
      %841 = vmatmul.mubr.bf16.gmra.mxu0 %v806
      %v842 = vpop.f32.mrf.mxu0
      %v843 = vadd.f32 %v779, %v842
      %v844 = vpop.f32.mrf.mxu0
      %v845 = vpop.f32.mrf.mxu0
      %v846 = vpop.f32.mrf.mxu0
      %847 = vdwg.mxu0
      %v848 = vld [vmem:[%s3] sm:$0x1]
      %v849 = vld [vmem:[%s4] sm:$0x1]
      %vm850 = vcmask 261120
      %v851 = vsel %vm850, %v843, 0.0
      %852 = vadd.xlane.f32.xlu0 %v851
      %v853 = vpop.xlane.xlu0 %852
      %v854 = vrcp.pop 32.0
      %v855 = vmul.f32 %v853, %v854
      %v856 = vsub.f32 %v843, %v855
      %v857 = vmul.f32 %v856, %v856
      %v858 = vsel %vm850, %v857, 0.0
      %859 = vadd.xlane.f32.xlu0 %v858
      %v860 = vpop.xlane.xlu0 %859
      %v861 = vmul.f32 %v860, %v854
      %v862 = vadd.f32 %v861, 1e-12
      %v863 = vrsqrt.pop %v862
      %v864 = vmul.f32 %v856, %v863
      %v866 = vlaneseq
      %v867 = vshrl.u32 %v866, 7
      %v868 = vsub.s32 0, %v867
      %v869 = vrot.slane %v848, %v868
      %v871 = vmul.f32 %v864, %v869
      %v873 = vlaneseq
      %v874 = vshrl.u32 %v873, 7
      %v875 = vsub.s32 0, %v874
      %v876 = vrot.slane %v849, %v875
      %v878 = vadd.f32 %v871, %v876
      %v879 = vld [vmem:[%s21] sm:$0xff]
      %v880 = vld [vmem:[%s21 + $0x8] sm:$0xff]
      %v881 = vld [vmem:[%s21 + $0x10] sm:$0xff]
      %v882 = vld [vmem:[%s21 + $0x18] sm:$0xff]
      %v883 = vld [vmem:[%s22] sm:$0xf]
      %v884 = vld [vmem:[%s22 + $0x4] sm:$0xf]
      %v885 = vld [vmem:[%s22 + $0x8] sm:$0xf]
      %v886 = vld [vmem:[%s22 + $0xc] sm:$0xf]
      %v887 = vpack.c.bf16 %v878, %v878
      %v888 = vld [vmem:[%s5] sm:$0xf]
      %v889 = vld [vmem:[%s5 + $0x4] sm:$0xf]
      %v890 = vld [vmem:[%s5 + $0x8] sm:$0xf]
      %v891 = vld [vmem:[%s5 + $0xc] sm:$0xf]
      %v892 = vld [vmem:[%s6] sm:$0x1]
      %v894 = vlaneseq
      %v895 = vshrl.u32 %v894, 7
      %v896 = vsub.s32 0, %v895
      %v897 = vrot.slane %v892, %v896
      %v903 = vunpack.c.l.b16 %v888
      %v904 = vunpack.c.l.b16 %v889
      %v905 = vunpack.c.l.b16 %v890
      %v906 = vunpack.c.l.b16 %v891
      %v907 = vpack.c.b16 %v904, %v903
      %v908 = vpack.c.b16 %v906, %v905
      %v912 = vsel %vm850, %v887, 0
      %914 = vmatprep.subr.bf16.mxu0 0
      %915 = vmatpush1.bf16.msra.mxu0 0
      %916 = vmatprep.subr.bf16.mxu0 0
      %917 = vmatpush1.bf16.msra.mxu0 0
      %918 = vmatprep.subr.bf16.mxu0 0
      %919 = vmatpush1.bf16.msra.mxu0 0
      %920 = vmatprep.subr.bf16.mxu0 0
      %921 = vmatpush1.bf16.msra.mxu0 0
      %922 = vmatprep.subr.bf16.mxu0 0
      %923 = vmatpush1.bf16.msra.mxu0 0
      %924 = vmatprep.subr.bf16.mxu0 0
      %925 = vmatpush1.bf16.msra.mxu0 0
      %926 = vmatprep.subr.bf16.mxu0 0
      %927 = vmatpush1.bf16.msra.mxu0 %v908
      %928 = vmatprep.subr.bf16.mxu0 0
      %929 = vmatpush1.bf16.msra.mxu0 %v907
      %930 = vmatprep.subr.bf16.mxu0 0
      %931 = vmatpush2.bf16.msra.mxu0 0
      %932 = vmatprep.subr.bf16.mxu0 0
      %933 = vmatpush2.bf16.msra.mxu0 0
      %934 = vmatprep.subr.bf16.mxu0 0
      %935 = vmatpush2.bf16.msra.mxu0 0
      %936 = vmatprep.subr.bf16.mxu0 0
      %937 = vmatpush2.bf16.msra.mxu0 0
      %938 = vmatprep.subr.bf16.mxu0 0
      %939 = vmatpush2.bf16.msra.mxu0 0
      %940 = vmatprep.subr.bf16.mxu0 0
      %941 = vmatpush2.bf16.msra.mxu0 0
      %942 = vmatprep.subr.bf16.mxu0 0
      %943 = vmatpush2.bf16.msra.mxu0 0
      %944 = vmatprep.subr.bf16.mxu0 0
      %945 = vmatpush2.bf16.msra.mxu0 0
      %946 = vmatprep.mubr.bf16.mxu0 0
      %947 = vmatmul.mubr.bf16.gmra.mxu0 %v912
      %v948 = vpop.f32.mrf.mxu0
      %v949 = vadd.f32 %v897, %v948
      %v950 = vpop.f32.mrf.mxu0
      %v951 = vpop.f32.mrf.mxu0
      %v952 = vpop.f32.mrf.mxu0
      %953 = vdwg.mxu0
      %v954 = vld [vmem:[%s7] sm:$0xf]
      %v955 = vld [vmem:[%s7 + $0x4] sm:$0xf]
      %v956 = vld [vmem:[%s7 + $0x8] sm:$0xf]
      %v957 = vld [vmem:[%s7 + $0xc] sm:$0xf]
      %v958 = vld [vmem:[%s8] sm:$0x1]
      %v960 = vlaneseq
      %v961 = vshrl.u32 %v960, 7
      %v962 = vsub.s32 0, %v961
      %v963 = vrot.slane %v958, %v962
      %v969 = vunpack.c.l.b16 %v954
      %v970 = vunpack.c.l.b16 %v955
      %v971 = vunpack.c.l.b16 %v956
      %v972 = vunpack.c.l.b16 %v957
      %v973 = vpack.c.b16 %v970, %v969
      %v974 = vpack.c.b16 %v972, %v971
      %977 = vmatprep.subr.bf16.mxu0 0
      %978 = vmatpush1.bf16.msra.mxu0 0
      %979 = vmatprep.subr.bf16.mxu0 0
      %980 = vmatpush1.bf16.msra.mxu0 0
      %981 = vmatprep.subr.bf16.mxu0 0
      %982 = vmatpush1.bf16.msra.mxu0 0
      %983 = vmatprep.subr.bf16.mxu0 0
      %984 = vmatpush1.bf16.msra.mxu0 0
      %985 = vmatprep.subr.bf16.mxu0 0
      %986 = vmatpush1.bf16.msra.mxu0 0
      %987 = vmatprep.subr.bf16.mxu0 0
      %988 = vmatpush1.bf16.msra.mxu0 0
      %989 = vmatprep.subr.bf16.mxu0 0
      %990 = vmatpush1.bf16.msra.mxu0 %v974
      %991 = vmatprep.subr.bf16.mxu0 0
      %992 = vmatpush1.bf16.msra.mxu0 %v973
      %993 = vmatprep.subr.bf16.mxu0 0
      %994 = vmatpush2.bf16.msra.mxu0 0
      %995 = vmatprep.subr.bf16.mxu0 0
      %996 = vmatpush2.bf16.msra.mxu0 0
      %997 = vmatprep.subr.bf16.mxu0 0
      %998 = vmatpush2.bf16.msra.mxu0 0
      %999 = vmatprep.subr.bf16.mxu0 0
      %1000 = vmatpush2.bf16.msra.mxu0 0
      %1001 = vmatprep.subr.bf16.mxu0 0
      %1002 = vmatpush2.bf16.msra.mxu0 0
      %1003 = vmatprep.subr.bf16.mxu0 0
      %1004 = vmatpush2.bf16.msra.mxu0 0
      %1005 = vmatprep.subr.bf16.mxu0 0
      %1006 = vmatpush2.bf16.msra.mxu0 0
      %1007 = vmatprep.subr.bf16.mxu0 0
      %1008 = vmatpush2.bf16.msra.mxu0 0
      %1009 = vmatprep.mubr.bf16.mxu0 0
      %1010 = vmatmul.mubr.bf16.gmra.mxu0 %v912
      %v1011 = vpop.f32.mrf.mxu0
      %v1012 = vadd.f32 %v963, %v1011
      %v1013 = vpop.f32.mrf.mxu0
      %v1014 = vpop.f32.mrf.mxu0
      %v1015 = vpop.f32.mrf.mxu0
      %1016 = vdwg.mxu0
      %v1017 = vld [vmem:[%s9] sm:$0xf]
      %v1018 = vld [vmem:[%s9 + $0x4] sm:$0xf]
      %v1019 = vld [vmem:[%s9 + $0x8] sm:$0xf]
      %v1020 = vld [vmem:[%s9 + $0xc] sm:$0xf]
      %v1021 = vld [vmem:[%s10] sm:$0x1]
      %v1023 = vlaneseq
      %v1024 = vshrl.u32 %v1023, 7
      %v1025 = vsub.s32 0, %v1024
      %v1026 = vrot.slane %v1021, %v1025
      %v1032 = vunpack.c.l.b16 %v1017
      %v1033 = vunpack.c.l.b16 %v1018
      %v1034 = vunpack.c.l.b16 %v1019
      %v1035 = vunpack.c.l.b16 %v1020
      %v1036 = vpack.c.b16 %v1033, %v1032
      %v1037 = vpack.c.b16 %v1035, %v1034
      %1040 = vmatprep.subr.bf16.mxu0 0
      %1041 = vmatpush1.bf16.msra.mxu0 0
      %1042 = vmatprep.subr.bf16.mxu0 0
      %1043 = vmatpush1.bf16.msra.mxu0 0
      %1044 = vmatprep.subr.bf16.mxu0 0
      %1045 = vmatpush1.bf16.msra.mxu0 0
      %1046 = vmatprep.subr.bf16.mxu0 0
      %1047 = vmatpush1.bf16.msra.mxu0 0
      %1048 = vmatprep.subr.bf16.mxu0 0
      %1049 = vmatpush1.bf16.msra.mxu0 0
      %1050 = vmatprep.subr.bf16.mxu0 0
      %1051 = vmatpush1.bf16.msra.mxu0 0
      %1052 = vmatprep.subr.bf16.mxu0 0
      %1053 = vmatpush1.bf16.msra.mxu0 %v1037
      %1054 = vmatprep.subr.bf16.mxu0 0
      %1055 = vmatpush1.bf16.msra.mxu0 %v1036
      %1056 = vmatprep.subr.bf16.mxu0 0
      %1057 = vmatpush2.bf16.msra.mxu0 0
      %1058 = vmatprep.subr.bf16.mxu0 0
      %1059 = vmatpush2.bf16.msra.mxu0 0
      %1060 = vmatprep.subr.bf16.mxu0 0
      %1061 = vmatpush2.bf16.msra.mxu0 0
      %1062 = vmatprep.subr.bf16.mxu0 0
      %1063 = vmatpush2.bf16.msra.mxu0 0
      %1064 = vmatprep.subr.bf16.mxu0 0
      %1065 = vmatpush2.bf16.msra.mxu0 0
      %1066 = vmatprep.subr.bf16.mxu0 0
      %1067 = vmatpush2.bf16.msra.mxu0 0
      %1068 = vmatprep.subr.bf16.mxu0 0
      %1069 = vmatpush2.bf16.msra.mxu0 0
      %1070 = vmatprep.subr.bf16.mxu0 0
      %1071 = vmatpush2.bf16.msra.mxu0 0
      %1072 = vmatprep.mubr.bf16.mxu0 0
      %1073 = vmatmul.mubr.bf16.gmra.mxu0 %v912
      %v1074 = vpop.f32.mrf.mxu0
      %v1075 = vadd.f32 %v1026, %v1074
      %v1076 = vpop.f32.mrf.mxu0
      %v1077 = vpop.f32.mrf.mxu0
      %v1078 = vpop.f32.mrf.mxu0
      %1079 = vdwg.mxu0
      %v1080 = vmul.f32 %v1012, %v879
      %v1081 = vmul.f32 %v1012, %v880
      %v1082 = vmul.f32 %v1012, %v881
      %v1083 = vmul.f32 %v1012, %v882
      %v1084 = vpack.c.bf16 %v1081, %v1080
      %v1085 = vpack.c.bf16 %v1083, %v1082
      %v1086 = vmul.f32 %v1075, %v879
      %v1087 = vmul.f32 %v1075, %v880
      %v1088 = vmul.f32 %v1075, %v881
      %v1089 = vmul.f32 %v1075, %v882
      %v1090 = vpack.c.bf16 %v1087, %v1086
      %v1091 = vpack.c.bf16 %v1089, %v1088
      %v1092 = vpack.c.bf16 %v949, %v949
      %v1094 = vsel %vm850, %v1092, 0
      %v1097 = vsel %vm850, %v1084, 0
      %v1100 = vsel %vm850, %v1085, 0
      %1102 = vmatprep.subr.bf16.mxu0 0
      %1103 = vmatpush1.bf16.xpose.msra.mxu0 0
      %1104 = vmatprep.subr.bf16.mxu0 0
      %1105 = vmatpush1.bf16.xpose.msra.mxu0 0
      %1106 = vmatprep.subr.bf16.mxu0 0
      %1107 = vmatpush1.bf16.xpose.msra.mxu0 0
      %1108 = vmatprep.subr.bf16.mxu0 0
      %1109 = vmatpush1.bf16.xpose.msra.mxu0 0
      %1110 = vmatprep.subr.bf16.mxu0 0
      %1111 = vmatpush1.bf16.xpose.msra.mxu0 0
      %1112 = vmatprep.subr.bf16.mxu0 0
      %1113 = vmatpush1.bf16.xpose.msra.mxu0 0
      %1114 = vmatprep.subr.bf16.mxu0 0
      %1115 = vmatpush1.bf16.xpose.msra.mxu0 %v1100
      %1116 = vmatprep.subr.bf16.mxu0 0
      %1117 = vmatpush1.bf16.xpose.msra.mxu0 %v1097
      %1118 = vmatprep.subr.bf16.mxu0 0
      %1119 = vmatpush2.bf16.xpose.msra.mxu0 0
      %1120 = vmatprep.subr.bf16.mxu0 0
      %1121 = vmatpush2.bf16.xpose.msra.mxu0 0
      %1122 = vmatprep.subr.bf16.mxu0 0
      %1123 = vmatpush2.bf16.xpose.msra.mxu0 0
      %1124 = vmatprep.subr.bf16.mxu0 0
      %1125 = vmatpush2.bf16.xpose.msra.mxu0 0
      %1126 = vmatprep.subr.bf16.mxu0 0
      %1127 = vmatpush2.bf16.xpose.msra.mxu0 0
      %1128 = vmatprep.subr.bf16.mxu0 0
      %1129 = vmatpush2.bf16.xpose.msra.mxu0 0
      %1130 = vmatprep.subr.bf16.mxu0 0
      %1131 = vmatpush2.bf16.xpose.msra.mxu0 0
      %1132 = vmatprep.subr.bf16.mxu0 0
      %1133 = vmatpush2.bf16.xpose.msra.mxu0 0
      %1134 = vmatprep.mubr.bf16.mxu0 0
      %1135 = vmatmul.mubr.bf16.gmra.mxu0 %v1094
      %v1136 = vpop.f32.mrf.mxu0
      %v1137 = vadd.f32 0.0, %v1136
      %v1138 = vpop.f32.mrf.mxu0
      %v1139 = vpop.f32.mrf.mxu0
      %v1140 = vpop.f32.mrf.mxu0
      %1141 = vdwg.mxu0
      %v1142 = vsel %vm850, %v1137, -inf
      %1143 = vmax.xlane.f32.xlu0 %v1142
      %v1144 = vpop.xlane.xlu0 %1143
      %v1145 = vsub.f32 %v1137, %v1144
      %v1146 = vmul.f32 %v1145, 1.442695
      %v1147 = vpow.pop %v1146
      %v1148 = vpack.c.bf16 %v1147, %v1147
      %v1153 = vunpack.c.l.b16 %v883
      %v1154 = vunpack.c.l.b16 %v884
      %v1155 = vunpack.c.l.b16 %v885
      %v1156 = vunpack.c.l.b16 %v886
      %v1157 = vpack.c.b16 %v1154, %v1153
      %v1158 = vpack.c.b16 %v1156, %v1155
      %v1162 = vsel %vm850, %v1148, 0
      %1164 = vmatprep.subr.bf16.mxu0 0
      %1165 = vmatpush1.bf16.msra.mxu0 0
      %1166 = vmatprep.subr.bf16.mxu0 0
      %1167 = vmatpush1.bf16.msra.mxu0 0
      %1168 = vmatprep.subr.bf16.mxu0 0
      %1169 = vmatpush1.bf16.msra.mxu0 0
      %1170 = vmatprep.subr.bf16.mxu0 0
      %1171 = vmatpush1.bf16.msra.mxu0 0
      %1172 = vmatprep.subr.bf16.mxu0 0
      %1173 = vmatpush1.bf16.msra.mxu0 0
      %1174 = vmatprep.subr.bf16.mxu0 0
      %1175 = vmatpush1.bf16.msra.mxu0 0
      %1176 = vmatprep.subr.bf16.mxu0 0
      %1177 = vmatpush1.bf16.msra.mxu0 %v1158
      %1178 = vmatprep.subr.bf16.mxu0 0
      %1179 = vmatpush1.bf16.msra.mxu0 %v1157
      %1180 = vmatprep.subr.bf16.mxu0 0
      %1181 = vmatpush2.bf16.msra.mxu0 0
      %1182 = vmatprep.subr.bf16.mxu0 0
      %1183 = vmatpush2.bf16.msra.mxu0 0
      %1184 = vmatprep.subr.bf16.mxu0 0
      %1185 = vmatpush2.bf16.msra.mxu0 0
      %1186 = vmatprep.subr.bf16.mxu0 0
      %1187 = vmatpush2.bf16.msra.mxu0 0
      %1188 = vmatprep.subr.bf16.mxu0 0
      %1189 = vmatpush2.bf16.msra.mxu0 0
      %1190 = vmatprep.subr.bf16.mxu0 0
      %1191 = vmatpush2.bf16.msra.mxu0 0
      %1192 = vmatprep.subr.bf16.mxu0 0
      %1193 = vmatpush2.bf16.msra.mxu0 0
      %1194 = vmatprep.subr.bf16.mxu0 0
      %1195 = vmatpush2.bf16.msra.mxu0 0
      %1196 = vmatprep.mubr.bf16.mxu0 0
      %1197 = vmatmul.mubr.bf16.gmra.mxu0 %v1162
      %v1198 = vpop.f32.mrf.mxu0
      %v1199 = vadd.f32 0.0, %v1198
      %v1200 = vpop.f32.mrf.mxu0
      %v1201 = vpop.f32.mrf.mxu0
      %v1202 = vpop.f32.mrf.mxu0
      %1203 = vdwg.mxu0
      %v1204 = vrcp.pop %v1199
      %v1205 = vmul.f32 %v1147, %v1204
      %v1206 = vpack.c.bf16 %v1205, %v1205
      %v1208 = vsel %vm850, %v1206, 0
      %1210 = vmatprep.subr.bf16.mxu0 0
      %1211 = vmatpush1.bf16.msra.mxu0 0
      %1212 = vmatprep.subr.bf16.mxu0 0
      %1213 = vmatpush1.bf16.msra.mxu0 0
      %1214 = vmatprep.subr.bf16.mxu0 0
      %1215 = vmatpush1.bf16.msra.mxu0 0
      %1216 = vmatprep.subr.bf16.mxu0 0
      %1217 = vmatpush1.bf16.msra.mxu0 0
      %1218 = vmatprep.subr.bf16.mxu0 0
      %1219 = vmatpush1.bf16.msra.mxu0 0
      %1220 = vmatprep.subr.bf16.mxu0 0
      %1221 = vmatpush1.bf16.msra.mxu0 0
      %1222 = vmatprep.subr.bf16.mxu0 0
      %1223 = vmatpush1.bf16.msra.mxu0 %v1091
      %1224 = vmatprep.subr.bf16.mxu0 0
      %1225 = vmatpush1.bf16.msra.mxu0 %v1090
      %1226 = vmatprep.subr.bf16.mxu0 0
      %1227 = vmatpush2.bf16.msra.mxu0 0
      %1228 = vmatprep.subr.bf16.mxu0 0
      %1229 = vmatpush2.bf16.msra.mxu0 0
      %1230 = vmatprep.subr.bf16.mxu0 0
      %1231 = vmatpush2.bf16.msra.mxu0 0
      %1232 = vmatprep.subr.bf16.mxu0 0
      %1233 = vmatpush2.bf16.msra.mxu0 0
      %1234 = vmatprep.subr.bf16.mxu0 0
      %1235 = vmatpush2.bf16.msra.mxu0 0
      %1236 = vmatprep.subr.bf16.mxu0 0
      %1237 = vmatpush2.bf16.msra.mxu0 0
      %1238 = vmatprep.subr.bf16.mxu0 0
      %1239 = vmatpush2.bf16.msra.mxu0 0
      %1240 = vmatprep.subr.bf16.mxu0 0
      %1241 = vmatpush2.bf16.msra.mxu0 0
      %1242 = vmatprep.mubr.bf16.mxu0 0
      %1243 = vmatmul.mubr.bf16.gmra.mxu0 %v1208
      %v1244 = vpop.f32.mrf.mxu0
      %v1245 = vadd.f32 0.0, %v1244
      %v1246 = vpop.f32.mrf.mxu0
      %v1247 = vpop.f32.mrf.mxu0
      %v1248 = vpop.f32.mrf.mxu0
      %1249 = vdwg.mxu0
      %v1250 = vpack.c.bf16 %v1245, %v1245
      %v1251 = vld [vmem:[%s11] sm:$0xf]
      %v1252 = vld [vmem:[%s11 + $0x4] sm:$0xf]
      %v1253 = vld [vmem:[%s11 + $0x8] sm:$0xf]
      %v1254 = vld [vmem:[%s11 + $0xc] sm:$0xf]
      %v1255 = vld [vmem:[%s12] sm:$0x1]
      %v1257 = vlaneseq
      %v1258 = vshrl.u32 %v1257, 7
      %v1259 = vsub.s32 0, %v1258
      %v1260 = vrot.slane %v1255, %v1259
      %v1266 = vunpack.c.l.b16 %v1251
      %v1267 = vunpack.c.l.b16 %v1252
      %v1268 = vunpack.c.l.b16 %v1253
      %v1269 = vunpack.c.l.b16 %v1254
      %v1270 = vpack.c.b16 %v1267, %v1266
      %v1271 = vpack.c.b16 %v1269, %v1268
      %v1275 = vsel %vm850, %v1250, 0
      %1277 = vmatprep.subr.bf16.mxu0 0
      %1278 = vmatpush1.bf16.msra.mxu0 0
      %1279 = vmatprep.subr.bf16.mxu0 0
      %1280 = vmatpush1.bf16.msra.mxu0 0
      %1281 = vmatprep.subr.bf16.mxu0 0
      %1282 = vmatpush1.bf16.msra.mxu0 0
      %1283 = vmatprep.subr.bf16.mxu0 0
      %1284 = vmatpush1.bf16.msra.mxu0 0
      %1285 = vmatprep.subr.bf16.mxu0 0
      %1286 = vmatpush1.bf16.msra.mxu0 0
      %1287 = vmatprep.subr.bf16.mxu0 0
      %1288 = vmatpush1.bf16.msra.mxu0 0
      %1289 = vmatprep.subr.bf16.mxu0 0
      %1290 = vmatpush1.bf16.msra.mxu0 %v1271
      %1291 = vmatprep.subr.bf16.mxu0 0
      %1292 = vmatpush1.bf16.msra.mxu0 %v1270
      %1293 = vmatprep.subr.bf16.mxu0 0
      %1294 = vmatpush2.bf16.msra.mxu0 0
      %1295 = vmatprep.subr.bf16.mxu0 0
      %1296 = vmatpush2.bf16.msra.mxu0 0
      %1297 = vmatprep.subr.bf16.mxu0 0
      %1298 = vmatpush2.bf16.msra.mxu0 0
      %1299 = vmatprep.subr.bf16.mxu0 0
      %1300 = vmatpush2.bf16.msra.mxu0 0
      %1301 = vmatprep.subr.bf16.mxu0 0
      %1302 = vmatpush2.bf16.msra.mxu0 0
      %1303 = vmatprep.subr.bf16.mxu0 0
      %1304 = vmatpush2.bf16.msra.mxu0 0
      %1305 = vmatprep.subr.bf16.mxu0 0
      %1306 = vmatpush2.bf16.msra.mxu0 0
      %1307 = vmatprep.subr.bf16.mxu0 0
      %1308 = vmatpush2.bf16.msra.mxu0 0
      %1309 = vmatprep.mubr.bf16.mxu0 0
      %1310 = vmatmul.mubr.bf16.gmra.mxu0 %v1275
      %v1311 = vpop.f32.mrf.mxu0
      %v1312 = vadd.f32 %v1260, %v1311
      %v1313 = vpop.f32.mrf.mxu0
      %v1314 = vpop.f32.mrf.mxu0
      %v1315 = vpop.f32.mrf.mxu0
      %1316 = vdwg.mxu0
      %v1317 = vadd.f32 %v878, %v1312
      %v1318 = vld [vmem:[%s13] sm:$0x1]
      %v1319 = vld [vmem:[%s14] sm:$0x1]
      %v1320 = vsel %vm850, %v1317, 0.0
      %1321 = vadd.xlane.f32.xlu0 %v1320
      %v1322 = vpop.xlane.xlu0 %1321
      %v1323 = vmul.f32 %v1322, %v854
      %v1324 = vsub.f32 %v1317, %v1323
      %v1325 = vmul.f32 %v1324, %v1324
      %v1326 = vsel %vm850, %v1325, 0.0
      %1327 = vadd.xlane.f32.xlu0 %v1326
      %v1328 = vpop.xlane.xlu0 %1327
      %v1329 = vmul.f32 %v1328, %v854
      %v1330 = vadd.f32 %v1329, 1e-12
      %v1331 = vrsqrt.pop %v1330
      %v1332 = vmul.f32 %v1324, %v1331
      %v1334 = vlaneseq
      %v1335 = vshrl.u32 %v1334, 7
      %v1336 = vsub.s32 0, %v1335
      %v1337 = vrot.slane %v1318, %v1336
      %v1339 = vmul.f32 %v1332, %v1337
      %v1341 = vlaneseq
      %v1342 = vshrl.u32 %v1341, 7
      %v1343 = vsub.s32 0, %v1342
      %v1344 = vrot.slane %v1319, %v1343
      %v1346 = vadd.f32 %v1339, %v1344
      %v1347 = vpack.c.bf16 %v1346, %v1346
      %v1348 = vld [vmem:[%s15] sm:$0xf]
      %v1349 = vld [vmem:[%s15 + $0x4] sm:$0xf]
      %v1350 = vld [vmem:[%s15 + $0x8] sm:$0xf]
      %v1351 = vld [vmem:[%s15 + $0xc] sm:$0xf]
      %v1352 = vld [vmem:[%s16] sm:$0x1]
      %v1354 = vlaneseq
      %v1355 = vshrl.u32 %v1354, 7
      %v1356 = vsub.s32 0, %v1355
      %v1357 = vrot.slane %v1352, %v1356
      %v1363 = vunpack.c.l.b16 %v1348
      %v1364 = vunpack.c.l.b16 %v1349
      %v1365 = vunpack.c.l.b16 %v1350
      %v1366 = vunpack.c.l.b16 %v1351
      %v1367 = vpack.c.b16 %v1364, %v1363
      %v1368 = vpack.c.b16 %v1366, %v1365
      %v1372 = vsel %vm850, %v1347, 0
      %1374 = vmatprep.subr.bf16.mxu0 0
      %1375 = vmatpush1.bf16.msra.mxu0 0
      %1376 = vmatprep.subr.bf16.mxu0 0
      %1377 = vmatpush1.bf16.msra.mxu0 0
      %1378 = vmatprep.subr.bf16.mxu0 0
      %1379 = vmatpush1.bf16.msra.mxu0 0
      %1380 = vmatprep.subr.bf16.mxu0 0
      %1381 = vmatpush1.bf16.msra.mxu0 0
      %1382 = vmatprep.subr.bf16.mxu0 0
      %1383 = vmatpush1.bf16.msra.mxu0 0
      %1384 = vmatprep.subr.bf16.mxu0 0
      %1385 = vmatpush1.bf16.msra.mxu0 0
      %1386 = vmatprep.subr.bf16.mxu0 0
      %1387 = vmatpush1.bf16.msra.mxu0 %v1368
      %1388 = vmatprep.subr.bf16.mxu0 0
      %1389 = vmatpush1.bf16.msra.mxu0 %v1367
      %1390 = vmatprep.subr.bf16.mxu0 0
      %1391 = vmatpush2.bf16.msra.mxu0 0
      %1392 = vmatprep.subr.bf16.mxu0 0
      %1393 = vmatpush2.bf16.msra.mxu0 0
      %1394 = vmatprep.subr.bf16.mxu0 0
      %1395 = vmatpush2.bf16.msra.mxu0 0
      %1396 = vmatprep.subr.bf16.mxu0 0
      %1397 = vmatpush2.bf16.msra.mxu0 0
      %1398 = vmatprep.subr.bf16.mxu0 0
      %1399 = vmatpush2.bf16.msra.mxu0 0
      %1400 = vmatprep.subr.bf16.mxu0 0
      %1401 = vmatpush2.bf16.msra.mxu0 0
      %1402 = vmatprep.subr.bf16.mxu0 0
      %1403 = vmatpush2.bf16.msra.mxu0 0
      %1404 = vmatprep.subr.bf16.mxu0 0
      %1405 = vmatpush2.bf16.msra.mxu0 0
      %1406 = vmatprep.mubr.bf16.mxu0 0
      %1407 = vmatmul.mubr.bf16.gmra.mxu0 %v1372
      %v1408 = vpop.f32.mrf.mxu0
      %v1409 = vadd.f32 %v1357, %v1408
      %v1410 = vpop.f32.mrf.mxu0
      %v1411 = vpop.f32.mrf.mxu0
      %v1412 = vpop.f32.mrf.mxu0
      %1413 = vdwg.mxu0
      %v1414 = vmul.f32 %v1409, 0.5
      %v1415 = vmul.f32 %v1409, 0.044715
      %v1416 = vmul.f32 %v1415, %v1409
      %v1417 = vmul.f32 %v1416, %v1409
      %v1418 = vadd.f32 %v1409, %v1417
      %v1419 = vmul.f32 %v1418, 0.7978846
      %v1420 = vtanh.pop %v1419
      %v1421 = vadd.f32 %v1420, 1.0
      %v1422 = vmul.f32 %v1414, %v1421
      %v1423 = vpack.c.bf16 %v1422, %v1422
      %v1424 = vld [vmem:[%s17] sm:$0xf]
      %v1425 = vld [vmem:[%s17 + $0x4] sm:$0xf]
      %v1426 = vld [vmem:[%s17 + $0x8] sm:$0xf]
      %v1427 = vld [vmem:[%s17 + $0xc] sm:$0xf]
      %v1428 = vld [vmem:[%s17 + $0x10] sm:$0xf]
      %v1429 = vld [vmem:[%s17 + $0x14] sm:$0xf]
      %v1430 = vld [vmem:[%s17 + $0x18] sm:$0xf]
      %v1431 = vld [vmem:[%s17 + $0x1c] sm:$0xf]
      %v1432 = vld [vmem:[%s18] sm:$0x1]
      %v1434 = vlaneseq
      %v1435 = vshrl.u32 %v1434, 7
      %v1436 = vsub.s32 0, %v1435
      %v1437 = vrot.slane %v1432, %v1436
      %v1447 = vunpack.c.l.b16 %v1424
      %v1448 = vunpack.c.l.b16 %v1425
      %v1449 = vunpack.c.l.b16 %v1426
      %v1450 = vunpack.c.l.b16 %v1427
      %v1451 = vunpack.c.l.b16 %v1428
      %v1452 = vunpack.c.l.b16 %v1429
      %v1453 = vunpack.c.l.b16 %v1430
      %v1454 = vunpack.c.l.b16 %v1431
      %v1455 = vpack.c.b16 %v1448, %v1447
      %v1456 = vpack.c.b16 %v1450, %v1449
      %v1457 = vpack.c.b16 %v1452, %v1451
      %v1458 = vpack.c.b16 %v1454, %v1453
      %v1464 = vsel %vm804, %v1423, 0
      %1466 = vmatprep.subr.bf16.mxu0 0
      %1467 = vmatpush1.bf16.msra.mxu0 0
      %1468 = vmatprep.subr.bf16.mxu0 0
      %1469 = vmatpush1.bf16.msra.mxu0 0
      %1470 = vmatprep.subr.bf16.mxu0 0
      %1471 = vmatpush1.bf16.msra.mxu0 0
      %1472 = vmatprep.subr.bf16.mxu0 0
      %1473 = vmatpush1.bf16.msra.mxu0 0
      %1474 = vmatprep.subr.bf16.mxu0 0
      %1475 = vmatpush1.bf16.msra.mxu0 %v1458
      %1476 = vmatprep.subr.bf16.mxu0 0
      %1477 = vmatpush1.bf16.msra.mxu0 %v1457
      %1478 = vmatprep.subr.bf16.mxu0 0
      %1479 = vmatpush1.bf16.msra.mxu0 %v1456
      %1480 = vmatprep.subr.bf16.mxu0 0
      %1481 = vmatpush1.bf16.msra.mxu0 %v1455
      %1482 = vmatprep.subr.bf16.mxu0 0
      %1483 = vmatpush2.bf16.msra.mxu0 0
      %1484 = vmatprep.subr.bf16.mxu0 0
      %1485 = vmatpush2.bf16.msra.mxu0 0
      %1486 = vmatprep.subr.bf16.mxu0 0
      %1487 = vmatpush2.bf16.msra.mxu0 0
      %1488 = vmatprep.subr.bf16.mxu0 0
      %1489 = vmatpush2.bf16.msra.mxu0 0
      %1490 = vmatprep.subr.bf16.mxu0 0
      %1491 = vmatpush2.bf16.msra.mxu0 0
      %1492 = vmatprep.subr.bf16.mxu0 0
      %1493 = vmatpush2.bf16.msra.mxu0 0
      %1494 = vmatprep.subr.bf16.mxu0 0
      %1495 = vmatpush2.bf16.msra.mxu0 0
      %1496 = vmatprep.subr.bf16.mxu0 0
      %1497 = vmatpush2.bf16.msra.mxu0 0
      %1498 = vmatprep.mubr.bf16.mxu0 0
      %1499 = vmatmul.mubr.bf16.gmra.mxu0 %v1464
      %v1500 = vpop.f32.mrf.mxu0
      %v1501 = vadd.f32 %v1437, %v1500
      %v1502 = vpop.f32.mrf.mxu0
      %v1503 = vpop.f32.mrf.mxu0
      %v1504 = vpop.f32.mrf.mxu0
      %1505 = vdwg.mxu0
      %v1506 = vadd.f32 %v1346, %v1501
      %v1507 = vld [vmem:[%s19] sm:$0x1]
      %v1508 = vld [vmem:[%s20] sm:$0x1]
      %v1509 = vsel %vm850, %v1506, 0.0
      %1510 = vadd.xlane.f32.xlu0 %v1509
      %v1511 = vpop.xlane.xlu0 %1510
      %v1512 = vmul.f32 %v1511, %v854
      %v1513 = vsub.f32 %v1506, %v1512
      %v1514 = vmul.f32 %v1513, %v1513
      %v1515 = vsel %vm850, %v1514, 0.0
      %1516 = vadd.xlane.f32.xlu0 %v1515
      %v1517 = vpop.xlane.xlu0 %1516
      %v1518 = vmul.f32 %v1517, %v854
      %v1519 = vadd.f32 %v1518, 1e-12
      %v1520 = vrsqrt.pop %v1519
      %v1521 = vmul.f32 %v1513, %v1520
      %v1523 = vlaneseq
      %v1524 = vshrl.u32 %v1523, 7
      %v1525 = vsub.s32 0, %v1524
      %v1526 = vrot.slane %v1507, %v1525
      %v1528 = vmul.f32 %v1521, %v1526
      %v1530 = vlaneseq
      %v1531 = vshrl.u32 %v1530, 7
      %v1532 = vsub.s32 0, %v1531
      %v1533 = vrot.slane %v1508, %v1532
      %v1535 = vadd.f32 %v1528, %v1533
      %v1536 = vpack.c.bf16 %v1535, %v1535
      %s1537 = scalar_lea.vmem %s5, 16
      %v1538 = vld [vmem:[%s1537] sm:$0xf]
      %v1539 = vld [vmem:[%s1537 + $0x4] sm:$0xf]
      %v1540 = vld [vmem:[%s1537 + $0x8] sm:$0xf]
      %v1541 = vld [vmem:[%s1537 + $0xc] sm:$0xf]
      %s1542 = scalar_lea.vmem %s6, 1
      %v1543 = vld [vmem:[%s1542] sm:$0x1]
      %v1545 = vlaneseq
      %v1546 = vshrl.u32 %v1545, 7
      %v1547 = vsub.s32 0, %v1546
      %v1548 = vrot.slane %v1543, %v1547
      %v1554 = vunpack.c.l.b16 %v1538
      %v1555 = vunpack.c.l.b16 %v1539
      %v1556 = vunpack.c.l.b16 %v1540
      %v1557 = vunpack.c.l.b16 %v1541
      %v1558 = vpack.c.b16 %v1555, %v1554
      %v1559 = vpack.c.b16 %v1557, %v1556
      %v1563 = vsel %vm850, %v1536, 0
      %1565 = vmatprep.subr.bf16.mxu0 0
      %1566 = vmatpush1.bf16.msra.mxu0 0
      %1567 = vmatprep.subr.bf16.mxu0 0
      %1568 = vmatpush1.bf16.msra.mxu0 0
      %1569 = vmatprep.subr.bf16.mxu0 0
      %1570 = vmatpush1.bf16.msra.mxu0 0
      %1571 = vmatprep.subr.bf16.mxu0 0
      %1572 = vmatpush1.bf16.msra.mxu0 0
      %1573 = vmatprep.subr.bf16.mxu0 0
      %1574 = vmatpush1.bf16.msra.mxu0 0
      %1575 = vmatprep.subr.bf16.mxu0 0
      %1576 = vmatpush1.bf16.msra.mxu0 0
      %1577 = vmatprep.subr.bf16.mxu0 0
      %1578 = vmatpush1.bf16.msra.mxu0 %v1559
      %1579 = vmatprep.subr.bf16.mxu0 0
      %1580 = vmatpush1.bf16.msra.mxu0 %v1558
      %1581 = vmatprep.subr.bf16.mxu0 0
      %1582 = vmatpush2.bf16.msra.mxu0 0
      %1583 = vmatprep.subr.bf16.mxu0 0
      %1584 = vmatpush2.bf16.msra.mxu0 0
      %1585 = vmatprep.subr.bf16.mxu0 0
      %1586 = vmatpush2.bf16.msra.mxu0 0
      %1587 = vmatprep.subr.bf16.mxu0 0
      %1588 = vmatpush2.bf16.msra.mxu0 0
      %1589 = vmatprep.subr.bf16.mxu0 0
      %1590 = vmatpush2.bf16.msra.mxu0 0
      %1591 = vmatprep.subr.bf16.mxu0 0
      %1592 = vmatpush2.bf16.msra.mxu0 0
      %1593 = vmatprep.subr.bf16.mxu0 0
      %1594 = vmatpush2.bf16.msra.mxu0 0
      %1595 = vmatprep.subr.bf16.mxu0 0
      %1596 = vmatpush2.bf16.msra.mxu0 0
      %1597 = vmatprep.mubr.bf16.mxu0 0
      %1598 = vmatmul.mubr.bf16.gmra.mxu0 %v1563
      %v1599 = vpop.f32.mrf.mxu0
      %v1600 = vadd.f32 %v1548, %v1599
      %v1601 = vpop.f32.mrf.mxu0
      %v1602 = vpop.f32.mrf.mxu0
      %v1603 = vpop.f32.mrf.mxu0
      %1604 = vdwg.mxu0
      %s1605 = scalar_lea.vmem %s7, 16
      %v1606 = vld [vmem:[%s1605] sm:$0xf]
      %v1607 = vld [vmem:[%s1605 + $0x4] sm:$0xf]
      %v1608 = vld [vmem:[%s1605 + $0x8] sm:$0xf]
      %v1609 = vld [vmem:[%s1605 + $0xc] sm:$0xf]
      %s1610 = scalar_lea.vmem %s8, 1
      %v1611 = vld [vmem:[%s1610] sm:$0x1]
      %v1613 = vlaneseq
      %v1614 = vshrl.u32 %v1613, 7
      %v1615 = vsub.s32 0, %v1614
      %v1616 = vrot.slane %v1611, %v1615
      %v1622 = vunpack.c.l.b16 %v1606
      %v1623 = vunpack.c.l.b16 %v1607
      %v1624 = vunpack.c.l.b16 %v1608
      %v1625 = vunpack.c.l.b16 %v1609
      %v1626 = vpack.c.b16 %v1623, %v1622
      %v1627 = vpack.c.b16 %v1625, %v1624
      %1630 = vmatprep.subr.bf16.mxu0 0
      %1631 = vmatpush1.bf16.msra.mxu0 0
      %1632 = vmatprep.subr.bf16.mxu0 0
      %1633 = vmatpush1.bf16.msra.mxu0 0
      %1634 = vmatprep.subr.bf16.mxu0 0
      %1635 = vmatpush1.bf16.msra.mxu0 0
      %1636 = vmatprep.subr.bf16.mxu0 0
      %1637 = vmatpush1.bf16.msra.mxu0 0
      %1638 = vmatprep.subr.bf16.mxu0 0
      %1639 = vmatpush1.bf16.msra.mxu0 0
      %1640 = vmatprep.subr.bf16.mxu0 0
      %1641 = vmatpush1.bf16.msra.mxu0 0
      %1642 = vmatprep.subr.bf16.mxu0 0
      %1643 = vmatpush1.bf16.msra.mxu0 %v1627
      %1644 = vmatprep.subr.bf16.mxu0 0
      %1645 = vmatpush1.bf16.msra.mxu0 %v1626
      %1646 = vmatprep.subr.bf16.mxu0 0
      %1647 = vmatpush2.bf16.msra.mxu0 0
      %1648 = vmatprep.subr.bf16.mxu0 0
      %1649 = vmatpush2.bf16.msra.mxu0 0
      %1650 = vmatprep.subr.bf16.mxu0 0
      %1651 = vmatpush2.bf16.msra.mxu0 0
      %1652 = vmatprep.subr.bf16.mxu0 0
      %1653 = vmatpush2.bf16.msra.mxu0 0
      %1654 = vmatprep.subr.bf16.mxu0 0
      %1655 = vmatpush2.bf16.msra.mxu0 0
      %1656 = vmatprep.subr.bf16.mxu0 0
      %1657 = vmatpush2.bf16.msra.mxu0 0
      %1658 = vmatprep.subr.bf16.mxu0 0
      %1659 = vmatpush2.bf16.msra.mxu0 0
      %1660 = vmatprep.subr.bf16.mxu0 0
      %1661 = vmatpush2.bf16.msra.mxu0 0
      %1662 = vmatprep.mubr.bf16.mxu0 0
      %1663 = vmatmul.mubr.bf16.gmra.mxu0 %v1563
      %v1664 = vpop.f32.mrf.mxu0
      %v1665 = vadd.f32 %v1616, %v1664
      %v1666 = vpop.f32.mrf.mxu0
      %v1667 = vpop.f32.mrf.mxu0
      %v1668 = vpop.f32.mrf.mxu0
      %1669 = vdwg.mxu0
      %s1670 = scalar_lea.vmem %s9, 16
      %v1671 = vld [vmem:[%s1670] sm:$0xf]
      %v1672 = vld [vmem:[%s1670 + $0x4] sm:$0xf]
      %v1673 = vld [vmem:[%s1670 + $0x8] sm:$0xf]
      %v1674 = vld [vmem:[%s1670 + $0xc] sm:$0xf]
      %s1675 = scalar_lea.vmem %s10, 1
      %v1676 = vld [vmem:[%s1675] sm:$0x1]
      %v1678 = vlaneseq
      %v1679 = vshrl.u32 %v1678, 7
      %v1680 = vsub.s32 0, %v1679
      %v1681 = vrot.slane %v1676, %v1680
      %v1687 = vunpack.c.l.b16 %v1671
      %v1688 = vunpack.c.l.b16 %v1672
      %v1689 = vunpack.c.l.b16 %v1673
      %v1690 = vunpack.c.l.b16 %v1674
      %v1691 = vpack.c.b16 %v1688, %v1687
      %v1692 = vpack.c.b16 %v1690, %v1689
      %1695 = vmatprep.subr.bf16.mxu0 0
      %1696 = vmatpush1.bf16.msra.mxu0 0
      %1697 = vmatprep.subr.bf16.mxu0 0
      %1698 = vmatpush1.bf16.msra.mxu0 0
      %1699 = vmatprep.subr.bf16.mxu0 0
      %1700 = vmatpush1.bf16.msra.mxu0 0
      %1701 = vmatprep.subr.bf16.mxu0 0
      %1702 = vmatpush1.bf16.msra.mxu0 0
      %1703 = vmatprep.subr.bf16.mxu0 0
      %1704 = vmatpush1.bf16.msra.mxu0 0
      %1705 = vmatprep.subr.bf16.mxu0 0
      %1706 = vmatpush1.bf16.msra.mxu0 0
      %1707 = vmatprep.subr.bf16.mxu0 0
      %1708 = vmatpush1.bf16.msra.mxu0 %v1692
      %1709 = vmatprep.subr.bf16.mxu0 0
      %1710 = vmatpush1.bf16.msra.mxu0 %v1691
      %1711 = vmatprep.subr.bf16.mxu0 0
      %1712 = vmatpush2.bf16.msra.mxu0 0
      %1713 = vmatprep.subr.bf16.mxu0 0
      %1714 = vmatpush2.bf16.msra.mxu0 0
      %1715 = vmatprep.subr.bf16.mxu0 0
      %1716 = vmatpush2.bf16.msra.mxu0 0
      %1717 = vmatprep.subr.bf16.mxu0 0
      %1718 = vmatpush2.bf16.msra.mxu0 0
      %1719 = vmatprep.subr.bf16.mxu0 0
      %1720 = vmatpush2.bf16.msra.mxu0 0
      %1721 = vmatprep.subr.bf16.mxu0 0
      %1722 = vmatpush2.bf16.msra.mxu0 0
      %1723 = vmatprep.subr.bf16.mxu0 0
      %1724 = vmatpush2.bf16.msra.mxu0 0
      %1725 = vmatprep.subr.bf16.mxu0 0
      %1726 = vmatpush2.bf16.msra.mxu0 0
      %1727 = vmatprep.mubr.bf16.mxu0 0
      %1728 = vmatmul.mubr.bf16.gmra.mxu0 %v1563
      %v1729 = vpop.f32.mrf.mxu0
      %v1730 = vadd.f32 %v1681, %v1729
      %v1731 = vpop.f32.mrf.mxu0
      %v1732 = vpop.f32.mrf.mxu0
      %v1733 = vpop.f32.mrf.mxu0
      %1734 = vdwg.mxu0
      %v1735 = vmul.f32 %v1665, %v879
      %v1736 = vmul.f32 %v1665, %v880
      %v1737 = vmul.f32 %v1665, %v881
      %v1738 = vmul.f32 %v1665, %v882
      %v1739 = vpack.c.bf16 %v1736, %v1735
      %v1740 = vpack.c.bf16 %v1738, %v1737
      %v1741 = vmul.f32 %v1730, %v879
      %v1742 = vmul.f32 %v1730, %v880
      %v1743 = vmul.f32 %v1730, %v881
      %v1744 = vmul.f32 %v1730, %v882
      %v1745 = vpack.c.bf16 %v1742, %v1741
      %v1746 = vpack.c.bf16 %v1744, %v1743
      %v1747 = vpack.c.bf16 %v1600, %v1600
      %v1749 = vsel %vm850, %v1747, 0
      %v1752 = vsel %vm850, %v1739, 0
      %v1755 = vsel %vm850, %v1740, 0
      %1757 = vmatprep.subr.bf16.mxu0 0
      %1758 = vmatpush1.bf16.xpose.msra.mxu0 0
      %1759 = vmatprep.subr.bf16.mxu0 0
      %1760 = vmatpush1.bf16.xpose.msra.mxu0 0
      %1761 = vmatprep.subr.bf16.mxu0 0
      %1762 = vmatpush1.bf16.xpose.msra.mxu0 0
      %1763 = vmatprep.subr.bf16.mxu0 0
      %1764 = vmatpush1.bf16.xpose.msra.mxu0 0
      %1765 = vmatprep.subr.bf16.mxu0 0
      %1766 = vmatpush1.bf16.xpose.msra.mxu0 0
      %1767 = vmatprep.subr.bf16.mxu0 0
      %1768 = vmatpush1.bf16.xpose.msra.mxu0 0
      %1769 = vmatprep.subr.bf16.mxu0 0
      %1770 = vmatpush1.bf16.xpose.msra.mxu0 %v1755
      %1771 = vmatprep.subr.bf16.mxu0 0
      %1772 = vmatpush1.bf16.xpose.msra.mxu0 %v1752
      %1773 = vmatprep.subr.bf16.mxu0 0
      %1774 = vmatpush2.bf16.xpose.msra.mxu0 0
      %1775 = vmatprep.subr.bf16.mxu0 0
      %1776 = vmatpush2.bf16.xpose.msra.mxu0 0
      %1777 = vmatprep.subr.bf16.mxu0 0
      %1778 = vmatpush2.bf16.xpose.msra.mxu0 0
      %1779 = vmatprep.subr.bf16.mxu0 0
      %1780 = vmatpush2.bf16.xpose.msra.mxu0 0
      %1781 = vmatprep.subr.bf16.mxu0 0
      %1782 = vmatpush2.bf16.xpose.msra.mxu0 0
      %1783 = vmatprep.subr.bf16.mxu0 0
      %1784 = vmatpush2.bf16.xpose.msra.mxu0 0
      %1785 = vmatprep.subr.bf16.mxu0 0
      %1786 = vmatpush2.bf16.xpose.msra.mxu0 0
      %1787 = vmatprep.subr.bf16.mxu0 0
      %1788 = vmatpush2.bf16.xpose.msra.mxu0 0
      %1789 = vmatprep.mubr.bf16.mxu0 0
      %1790 = vmatmul.mubr.bf16.gmra.mxu0 %v1749
      %v1791 = vpop.f32.mrf.mxu0
      %v1792 = vadd.f32 0.0, %v1791
      %v1793 = vpop.f32.mrf.mxu0
      %v1794 = vpop.f32.mrf.mxu0
      %v1795 = vpop.f32.mrf.mxu0
      %1796 = vdwg.mxu0
      %v1797 = vsel %vm850, %v1792, -inf
      %1798 = vmax.xlane.f32.xlu0 %v1797
      %v1799 = vpop.xlane.xlu0 %1798
      %v1800 = vsub.f32 %v1792, %v1799
      %v1801 = vmul.f32 %v1800, 1.442695
      %v1802 = vpow.pop %v1801
      %v1803 = vpack.c.bf16 %v1802, %v1802
      %v1805 = vsel %vm850, %v1803, 0
      %1807 = vmatprep.subr.bf16.mxu0 0
      %1808 = vmatpush1.bf16.msra.mxu0 0
      %1809 = vmatprep.subr.bf16.mxu0 0
      %1810 = vmatpush1.bf16.msra.mxu0 0
      %1811 = vmatprep.subr.bf16.mxu0 0
      %1812 = vmatpush1.bf16.msra.mxu0 0
      %1813 = vmatprep.subr.bf16.mxu0 0
      %1814 = vmatpush1.bf16.msra.mxu0 0
      %1815 = vmatprep.subr.bf16.mxu0 0
      %1816 = vmatpush1.bf16.msra.mxu0 0
      %1817 = vmatprep.subr.bf16.mxu0 0
      %1818 = vmatpush1.bf16.msra.mxu0 0
      %1819 = vmatprep.subr.bf16.mxu0 0
      %1820 = vmatpush1.bf16.msra.mxu0 %v1158
      %1821 = vmatprep.subr.bf16.mxu0 0
      %1822 = vmatpush1.bf16.msra.mxu0 %v1157
      %1823 = vmatprep.subr.bf16.mxu0 0
      %1824 = vmatpush2.bf16.msra.mxu0 0
      %1825 = vmatprep.subr.bf16.mxu0 0
      %1826 = vmatpush2.bf16.msra.mxu0 0
      %1827 = vmatprep.subr.bf16.mxu0 0
      %1828 = vmatpush2.bf16.msra.mxu0 0
      %1829 = vmatprep.subr.bf16.mxu0 0
      %1830 = vmatpush2.bf16.msra.mxu0 0
      %1831 = vmatprep.subr.bf16.mxu0 0
      %1832 = vmatpush2.bf16.msra.mxu0 0
      %1833 = vmatprep.subr.bf16.mxu0 0
      %1834 = vmatpush2.bf16.msra.mxu0 0
      %1835 = vmatprep.subr.bf16.mxu0 0
      %1836 = vmatpush2.bf16.msra.mxu0 0
      %1837 = vmatprep.subr.bf16.mxu0 0
      %1838 = vmatpush2.bf16.msra.mxu0 0
      %1839 = vmatprep.mubr.bf16.mxu0 0
      %1840 = vmatmul.mubr.bf16.gmra.mxu0 %v1805
      %v1841 = vpop.f32.mrf.mxu0
      %v1842 = vadd.f32 0.0, %v1841
      %v1843 = vpop.f32.mrf.mxu0
      %v1844 = vpop.f32.mrf.mxu0
      %v1845 = vpop.f32.mrf.mxu0
      %1846 = vdwg.mxu0
      %v1847 = vrcp.pop %v1842
      %v1848 = vmul.f32 %v1802, %v1847
      %v1849 = vpack.c.bf16 %v1848, %v1848
      %v1851 = vsel %vm850, %v1849, 0
      %1853 = vmatprep.subr.bf16.mxu0 0
      %1854 = vmatpush1.bf16.msra.mxu0 0
      %1855 = vmatprep.subr.bf16.mxu0 0
      %1856 = vmatpush1.bf16.msra.mxu0 0
      %1857 = vmatprep.subr.bf16.mxu0 0
      %1858 = vmatpush1.bf16.msra.mxu0 0
      %1859 = vmatprep.subr.bf16.mxu0 0
      %1860 = vmatpush1.bf16.msra.mxu0 0
      %1861 = vmatprep.subr.bf16.mxu0 0
      %1862 = vmatpush1.bf16.msra.mxu0 0
      %1863 = vmatprep.subr.bf16.mxu0 0
      %1864 = vmatpush1.bf16.msra.mxu0 0
      %1865 = vmatprep.subr.bf16.mxu0 0
      %1866 = vmatpush1.bf16.msra.mxu0 %v1746
      %1867 = vmatprep.subr.bf16.mxu0 0
      %1868 = vmatpush1.bf16.msra.mxu0 %v1745
      %1869 = vmatprep.subr.bf16.mxu0 0
      %1870 = vmatpush2.bf16.msra.mxu0 0
      %1871 = vmatprep.subr.bf16.mxu0 0
      %1872 = vmatpush2.bf16.msra.mxu0 0
      %1873 = vmatprep.subr.bf16.mxu0 0
      %1874 = vmatpush2.bf16.msra.mxu0 0
      %1875 = vmatprep.subr.bf16.mxu0 0
      %1876 = vmatpush2.bf16.msra.mxu0 0
      %1877 = vmatprep.subr.bf16.mxu0 0
      %1878 = vmatpush2.bf16.msra.mxu0 0
      %1879 = vmatprep.subr.bf16.mxu0 0
      %1880 = vmatpush2.bf16.msra.mxu0 0
      %1881 = vmatprep.subr.bf16.mxu0 0
      %1882 = vmatpush2.bf16.msra.mxu0 0
      %1883 = vmatprep.subr.bf16.mxu0 0
      %1884 = vmatpush2.bf16.msra.mxu0 0
      %1885 = vmatprep.mubr.bf16.mxu0 0
      %1886 = vmatmul.mubr.bf16.gmra.mxu0 %v1851
      %v1887 = vpop.f32.mrf.mxu0
      %v1888 = vadd.f32 0.0, %v1887
      %v1889 = vpop.f32.mrf.mxu0
      %v1890 = vpop.f32.mrf.mxu0
      %v1891 = vpop.f32.mrf.mxu0
      %1892 = vdwg.mxu0
      %v1893 = vpack.c.bf16 %v1888, %v1888
      %s1894 = scalar_lea.vmem %s11, 16
      %v1895 = vld [vmem:[%s1894] sm:$0xf]
      %v1896 = vld [vmem:[%s1894 + $0x4] sm:$0xf]
      %v1897 = vld [vmem:[%s1894 + $0x8] sm:$0xf]
      %v1898 = vld [vmem:[%s1894 + $0xc] sm:$0xf]
      %s1899 = scalar_lea.vmem %s12, 1
      %v1900 = vld [vmem:[%s1899] sm:$0x1]
      %v1902 = vlaneseq
      %v1903 = vshrl.u32 %v1902, 7
      %v1904 = vsub.s32 0, %v1903
      %v1905 = vrot.slane %v1900, %v1904
      %v1911 = vunpack.c.l.b16 %v1895
      %v1912 = vunpack.c.l.b16 %v1896
      %v1913 = vunpack.c.l.b16 %v1897
      %v1914 = vunpack.c.l.b16 %v1898
      %v1915 = vpack.c.b16 %v1912, %v1911
      %v1916 = vpack.c.b16 %v1914, %v1913
      %v1920 = vsel %vm850, %v1893, 0
      %1922 = vmatprep.subr.bf16.mxu0 0
      %1923 = vmatpush1.bf16.msra.mxu0 0
      %1924 = vmatprep.subr.bf16.mxu0 0
      %1925 = vmatpush1.bf16.msra.mxu0 0
      %1926 = vmatprep.subr.bf16.mxu0 0
      %1927 = vmatpush1.bf16.msra.mxu0 0
      %1928 = vmatprep.subr.bf16.mxu0 0
      %1929 = vmatpush1.bf16.msra.mxu0 0
      %1930 = vmatprep.subr.bf16.mxu0 0
      %1931 = vmatpush1.bf16.msra.mxu0 0
      %1932 = vmatprep.subr.bf16.mxu0 0
      %1933 = vmatpush1.bf16.msra.mxu0 0
      %1934 = vmatprep.subr.bf16.mxu0 0
      %1935 = vmatpush1.bf16.msra.mxu0 %v1916
      %1936 = vmatprep.subr.bf16.mxu0 0
      %1937 = vmatpush1.bf16.msra.mxu0 %v1915
      %1938 = vmatprep.subr.bf16.mxu0 0
      %1939 = vmatpush2.bf16.msra.mxu0 0
      %1940 = vmatprep.subr.bf16.mxu0 0
      %1941 = vmatpush2.bf16.msra.mxu0 0
      %1942 = vmatprep.subr.bf16.mxu0 0
      %1943 = vmatpush2.bf16.msra.mxu0 0
      %1944 = vmatprep.subr.bf16.mxu0 0
      %1945 = vmatpush2.bf16.msra.mxu0 0
      %1946 = vmatprep.subr.bf16.mxu0 0
      %1947 = vmatpush2.bf16.msra.mxu0 0
      %1948 = vmatprep.subr.bf16.mxu0 0
      %1949 = vmatpush2.bf16.msra.mxu0 0
      %1950 = vmatprep.subr.bf16.mxu0 0
      %1951 = vmatpush2.bf16.msra.mxu0 0
      %1952 = vmatprep.subr.bf16.mxu0 0
      %1953 = vmatpush2.bf16.msra.mxu0 0
      %1954 = vmatprep.mubr.bf16.mxu0 0
      %1955 = vmatmul.mubr.bf16.gmra.mxu0 %v1920
      %v1956 = vpop.f32.mrf.mxu0
      %v1957 = vadd.f32 %v1905, %v1956
      %v1958 = vpop.f32.mrf.mxu0
      %v1959 = vpop.f32.mrf.mxu0
      %v1960 = vpop.f32.mrf.mxu0
      %1961 = vdwg.mxu0
      %v1962 = vadd.f32 %v1535, %v1957
      %s1963 = scalar_lea.vmem %s13, 1
      %v1964 = vld [vmem:[%s1963] sm:$0x1]
      %s1965 = scalar_lea.vmem %s14, 1
      %v1966 = vld [vmem:[%s1965] sm:$0x1]
      %v1967 = vsel %vm850, %v1962, 0.0
      %1968 = vadd.xlane.f32.xlu0 %v1967
      %v1969 = vpop.xlane.xlu0 %1968
      %v1970 = vmul.f32 %v1969, %v854
      %v1971 = vsub.f32 %v1962, %v1970
      %v1972 = vmul.f32 %v1971, %v1971
      %v1973 = vsel %vm850, %v1972, 0.0
      %1974 = vadd.xlane.f32.xlu0 %v1973
      %v1975 = vpop.xlane.xlu0 %1974
      %v1976 = vmul.f32 %v1975, %v854
      %v1977 = vadd.f32 %v1976, 1e-12
      %v1978 = vrsqrt.pop %v1977
      %v1979 = vmul.f32 %v1971, %v1978
      %v1981 = vlaneseq
      %v1982 = vshrl.u32 %v1981, 7
      %v1983 = vsub.s32 0, %v1982
      %v1984 = vrot.slane %v1964, %v1983
      %v1986 = vmul.f32 %v1979, %v1984
      %v1988 = vlaneseq
      %v1989 = vshrl.u32 %v1988, 7
      %v1990 = vsub.s32 0, %v1989
      %v1991 = vrot.slane %v1966, %v1990
      %v1993 = vadd.f32 %v1986, %v1991
      %v1994 = vpack.c.bf16 %v1993, %v1993
      %s1995 = scalar_lea.vmem %s15, 16
      %v1996 = vld [vmem:[%s1995] sm:$0xf]
      %v1997 = vld [vmem:[%s1995 + $0x4] sm:$0xf]
      %v1998 = vld [vmem:[%s1995 + $0x8] sm:$0xf]
      %v1999 = vld [vmem:[%s1995 + $0xc] sm:$0xf]
      %s2000 = scalar_lea.vmem %s16, 1
      %v2001 = vld [vmem:[%s2000] sm:$0x1]
      %v2003 = vlaneseq
      %v2004 = vshrl.u32 %v2003, 7
      %v2005 = vsub.s32 0, %v2004
      %v2006 = vrot.slane %v2001, %v2005
      %v2012 = vunpack.c.l.b16 %v1996
      %v2013 = vunpack.c.l.b16 %v1997
      %v2014 = vunpack.c.l.b16 %v1998
      %v2015 = vunpack.c.l.b16 %v1999
      %v2016 = vpack.c.b16 %v2013, %v2012
      %v2017 = vpack.c.b16 %v2015, %v2014
      %v2021 = vsel %vm850, %v1994, 0
      %2023 = vmatprep.subr.bf16.mxu0 0
      %2024 = vmatpush1.bf16.msra.mxu0 0
      %2025 = vmatprep.subr.bf16.mxu0 0
      %2026 = vmatpush1.bf16.msra.mxu0 0
      %2027 = vmatprep.subr.bf16.mxu0 0
      %2028 = vmatpush1.bf16.msra.mxu0 0
      %2029 = vmatprep.subr.bf16.mxu0 0
      %2030 = vmatpush1.bf16.msra.mxu0 0
      %2031 = vmatprep.subr.bf16.mxu0 0
      %2032 = vmatpush1.bf16.msra.mxu0 0
      %2033 = vmatprep.subr.bf16.mxu0 0
      %2034 = vmatpush1.bf16.msra.mxu0 0
      %2035 = vmatprep.subr.bf16.mxu0 0
      %2036 = vmatpush1.bf16.msra.mxu0 %v2017
      %2037 = vmatprep.subr.bf16.mxu0 0
      %2038 = vmatpush1.bf16.msra.mxu0 %v2016
      %2039 = vmatprep.subr.bf16.mxu0 0
      %2040 = vmatpush2.bf16.msra.mxu0 0
      %2041 = vmatprep.subr.bf16.mxu0 0
      %2042 = vmatpush2.bf16.msra.mxu0 0
      %2043 = vmatprep.subr.bf16.mxu0 0
      %2044 = vmatpush2.bf16.msra.mxu0 0
      %2045 = vmatprep.subr.bf16.mxu0 0
      %2046 = vmatpush2.bf16.msra.mxu0 0
      %2047 = vmatprep.subr.bf16.mxu0 0
      %2048 = vmatpush2.bf16.msra.mxu0 0
      %2049 = vmatprep.subr.bf16.mxu0 0
      %2050 = vmatpush2.bf16.msra.mxu0 0
      %2051 = vmatprep.subr.bf16.mxu0 0
      %2052 = vmatpush2.bf16.msra.mxu0 0
      %2053 = vmatprep.subr.bf16.mxu0 0
      %2054 = vmatpush2.bf16.msra.mxu0 0
      %2055 = vmatprep.mubr.bf16.mxu0 0
      %2056 = vmatmul.mubr.bf16.gmra.mxu0 %v2021
      %v2057 = vpop.f32.mrf.mxu0
      %v2058 = vadd.f32 %v2006, %v2057
      %v2059 = vpop.f32.mrf.mxu0
      %v2060 = vpop.f32.mrf.mxu0
      %v2061 = vpop.f32.mrf.mxu0
      %2062 = vdwg.mxu0
      %v2063 = vmul.f32 %v2058, 0.5
      %v2064 = vmul.f32 %v2058, 0.044715
      %v2065 = vmul.f32 %v2064, %v2058
      %v2066 = vmul.f32 %v2065, %v2058
      %v2067 = vadd.f32 %v2058, %v2066
      %v2068 = vmul.f32 %v2067, 0.7978846
      %v2069 = vtanh.pop %v2068
      %v2070 = vadd.f32 %v2069, 1.0
      %v2071 = vmul.f32 %v2063, %v2070
      %v2072 = vpack.c.bf16 %v2071, %v2071
      %s2073 = scalar_lea.vmem %s17, 32
      %v2074 = vld [vmem:[%s2073] sm:$0xf]
      %v2075 = vld [vmem:[%s2073 + $0x4] sm:$0xf]
      %v2076 = vld [vmem:[%s2073 + $0x8] sm:$0xf]
      %v2077 = vld [vmem:[%s2073 + $0xc] sm:$0xf]
      %v2078 = vld [vmem:[%s2073 + $0x10] sm:$0xf]
      %v2079 = vld [vmem:[%s2073 + $0x14] sm:$0xf]
      %v2080 = vld [vmem:[%s2073 + $0x18] sm:$0xf]
      %v2081 = vld [vmem:[%s2073 + $0x1c] sm:$0xf]
      %s2082 = scalar_lea.vmem %s18, 1
      %v2083 = vld [vmem:[%s2082] sm:$0x1]
      %v2085 = vlaneseq
      %v2086 = vshrl.u32 %v2085, 7
      %v2087 = vsub.s32 0, %v2086
      %v2088 = vrot.slane %v2083, %v2087
      %v2098 = vunpack.c.l.b16 %v2074
      %v2099 = vunpack.c.l.b16 %v2075
      %v2100 = vunpack.c.l.b16 %v2076
      %v2101 = vunpack.c.l.b16 %v2077
      %v2102 = vunpack.c.l.b16 %v2078
      %v2103 = vunpack.c.l.b16 %v2079
      %v2104 = vunpack.c.l.b16 %v2080
      %v2105 = vunpack.c.l.b16 %v2081
      %v2106 = vpack.c.b16 %v2099, %v2098
      %v2107 = vpack.c.b16 %v2101, %v2100
      %v2108 = vpack.c.b16 %v2103, %v2102
      %v2109 = vpack.c.b16 %v2105, %v2104
      %v2115 = vsel %vm804, %v2072, 0
      %2117 = vmatprep.subr.bf16.mxu0 0
      %2118 = vmatpush1.bf16.msra.mxu0 0
      %2119 = vmatprep.subr.bf16.mxu0 0
      %2120 = vmatpush1.bf16.msra.mxu0 0
      %2121 = vmatprep.subr.bf16.mxu0 0
      %2122 = vmatpush1.bf16.msra.mxu0 0
      %2123 = vmatprep.subr.bf16.mxu0 0
      %2124 = vmatpush1.bf16.msra.mxu0 0
      %2125 = vmatprep.subr.bf16.mxu0 0
      %2126 = vmatpush1.bf16.msra.mxu0 %v2109
      %2127 = vmatprep.subr.bf16.mxu0 0
      %2128 = vmatpush1.bf16.msra.mxu0 %v2108
      %2129 = vmatprep.subr.bf16.mxu0 0
      %2130 = vmatpush1.bf16.msra.mxu0 %v2107
      %2131 = vmatprep.subr.bf16.mxu0 0
      %2132 = vmatpush1.bf16.msra.mxu0 %v2106
      %2133 = vmatprep.subr.bf16.mxu0 0
      %2134 = vmatpush2.bf16.msra.mxu0 0
      %2135 = vmatprep.subr.bf16.mxu0 0
      %2136 = vmatpush2.bf16.msra.mxu0 0
      %2137 = vmatprep.subr.bf16.mxu0 0
      %2138 = vmatpush2.bf16.msra.mxu0 0
      %2139 = vmatprep.subr.bf16.mxu0 0
      %2140 = vmatpush2.bf16.msra.mxu0 0
      %2141 = vmatprep.subr.bf16.mxu0 0
      %2142 = vmatpush2.bf16.msra.mxu0 0
      %2143 = vmatprep.subr.bf16.mxu0 0
      %2144 = vmatpush2.bf16.msra.mxu0 0
      %2145 = vmatprep.subr.bf16.mxu0 0
      %2146 = vmatpush2.bf16.msra.mxu0 0
      %2147 = vmatprep.subr.bf16.mxu0 0
      %2148 = vmatpush2.bf16.msra.mxu0 0
      %2149 = vmatprep.mubr.bf16.mxu0 0
      %2150 = vmatmul.mubr.bf16.gmra.mxu0 %v2115
      %v2151 = vpop.f32.mrf.mxu0
      %v2152 = vadd.f32 %v2088, %v2151
      %v2153 = vpop.f32.mrf.mxu0
      %v2154 = vpop.f32.mrf.mxu0
      %v2155 = vpop.f32.mrf.mxu0
      %2156 = vdwg.mxu0
      %v2157 = vadd.f32 %v1993, %v2152
      %s2158 = scalar_lea.vmem %s19, 1
      %v2159 = vld [vmem:[%s2158] sm:$0x1]
      %s2160 = scalar_lea.vmem %s20, 1
      %v2161 = vld [vmem:[%s2160] sm:$0x1]
      %v2162 = vsel %vm850, %v2157, 0.0
      %2163 = vadd.xlane.f32.xlu0 %v2162
      %v2164 = vpop.xlane.xlu0 %2163
      %v2165 = vmul.f32 %v2164, %v854
      %v2166 = vsub.f32 %v2157, %v2165
      %v2167 = vmul.f32 %v2166, %v2166
      %v2168 = vsel %vm850, %v2167, 0.0
      %2169 = vadd.xlane.f32.xlu0 %v2168
      %v2170 = vpop.xlane.xlu0 %2169
      %v2171 = vmul.f32 %v2170, %v854
      %v2172 = vadd.f32 %v2171, 1e-12
      %v2173 = vrsqrt.pop %v2172
      %v2174 = vmul.f32 %v2166, %v2173
      %v2176 = vlaneseq
      %v2177 = vshrl.u32 %v2176, 7
      %v2178 = vsub.s32 0, %v2177
      %v2179 = vrot.slane %v2159, %v2178
      %v2181 = vmul.f32 %v2174, %v2179
      %v2183 = vlaneseq
      %v2184 = vshrl.u32 %v2183, 7
      %v2185 = vsub.s32 0, %v2184
      %v2186 = vrot.slane %v2161, %v2185
      %v2188 = vadd.f32 %v2181, %v2186
      %v2189 = vpack.c.bf16 %v2188, %v2188
      %v2190 = vld [vmem:[%s23] sm:$0xf]
      %v2191 = vld [vmem:[%s23 + $0x4] sm:$0xf]
      %v2192 = vld [vmem:[%s23 + $0x8] sm:$0xf]
      %v2193 = vld [vmem:[%s23 + $0xc] sm:$0xf]
      %v2194 = vld [vmem:[%s24] sm:$0x1]
      %v2196 = vlaneseq
      %v2197 = vshrl.u32 %v2196, 7
      %v2198 = vsub.s32 0, %v2197
      %v2199 = vrot.slane %v2194, %v2198
      %v2205 = vunpack.c.l.b16 %v2190
      %v2206 = vunpack.c.l.b16 %v2191
      %v2207 = vunpack.c.l.b16 %v2192
      %v2208 = vunpack.c.l.b16 %v2193
      %v2209 = vpack.c.b16 %v2206, %v2205
      %v2210 = vpack.c.b16 %v2208, %v2207
      %v2214 = vsel %vm850, %v2189, 0
      %2216 = vmatprep.subr.bf16.mxu0 0
      %2217 = vmatpush1.bf16.msra.mxu0 0
      %2218 = vmatprep.subr.bf16.mxu0 0
      %2219 = vmatpush1.bf16.msra.mxu0 0
      %2220 = vmatprep.subr.bf16.mxu0 0
      %2221 = vmatpush1.bf16.msra.mxu0 0
      %2222 = vmatprep.subr.bf16.mxu0 0
      %2223 = vmatpush1.bf16.msra.mxu0 0
      %2224 = vmatprep.subr.bf16.mxu0 0
      %2225 = vmatpush1.bf16.msra.mxu0 0
      %2226 = vmatprep.subr.bf16.mxu0 0
      %2227 = vmatpush1.bf16.msra.mxu0 0
      %2228 = vmatprep.subr.bf16.mxu0 0
      %2229 = vmatpush1.bf16.msra.mxu0 %v2210
      %2230 = vmatprep.subr.bf16.mxu0 0
      %2231 = vmatpush1.bf16.msra.mxu0 %v2209
      %2232 = vmatprep.subr.bf16.mxu0 0
      %2233 = vmatpush2.bf16.msra.mxu0 0
      %2234 = vmatprep.subr.bf16.mxu0 0
      %2235 = vmatpush2.bf16.msra.mxu0 0
      %2236 = vmatprep.subr.bf16.mxu0 0
      %2237 = vmatpush2.bf16.msra.mxu0 0
      %2238 = vmatprep.subr.bf16.mxu0 0
      %2239 = vmatpush2.bf16.msra.mxu0 0
      %2240 = vmatprep.subr.bf16.mxu0 0
      %2241 = vmatpush2.bf16.msra.mxu0 0
      %2242 = vmatprep.subr.bf16.mxu0 0
      %2243 = vmatpush2.bf16.msra.mxu0 0
      %2244 = vmatprep.subr.bf16.mxu0 0
      %2245 = vmatpush2.bf16.msra.mxu0 0
      %2246 = vmatprep.subr.bf16.mxu0 0
      %2247 = vmatpush2.bf16.msra.mxu0 0
      %2248 = vmatprep.mubr.bf16.mxu0 0
      %2249 = vmatmul.mubr.bf16.gmra.mxu0 %v2214
      %v2250 = vpop.f32.mrf.mxu0
      %v2251 = vadd.f32 %v2199, %v2250
      %v2252 = vpop.f32.mrf.mxu0
      %v2253 = vpop.f32.mrf.mxu0
      %v2254 = vpop.f32.mrf.mxu0
      %2255 = vdwg.mxu0
      %vm2256 = vcmp.lt.s32.totalorder %v763, 64
      %v2257 = vsel %vm2256, %v2251, -1e+30
      %2258 = vmax.xlane.f32.xlu0 %v2257
      %v2259 = vpop.xlane.xlu0 %2258
      %v2260 = vsub.f32 %v2257, %v2259
      %v2261 = vmul.f32 %v2260, 1.442695
      %v2262 = vpow.pop %v2261
      %2263 = vadd.xlane.f32.xlu0 %v2262
      %v2264 = vpop.xlane.xlu0 %2263
      %v2265 = vrcp.pop %v2264
      %v2266 = vmul.f32 %v2262, %v2265
      %2267 = vst [vmem:[%s759] sm:$0xff] %v2266
      %p2268 = scmp.lt.s32.totalorder %s36, 1
      %s2269 = scalar_select %p2268, %s36, 1
      %s2270 = smul.addr %s2269, 8
      %s2271 = scalar_lea.vmem %s25, %s2270
      // Predicated region
      $region121: #{language_model_forward.1} parent=119 // pred_check
        %p2272 = pneg %p584
      $region122: #{language_model_forward.1} parent=119 // pred_check_branch
        %2274 = sbr.rel (%p2272) target = $region124
      $region123: #{language_model_forward.1} parent=119 // pred_region
        _
      $region124: #{language_model_forward.1} parent=119 // pred_fallthru
        _
    $region120: #{language_model_forward.1} parent=5 // pred_fallthru
      _
    %p2275 = scmp.le.s32.totalorder 2, %s31
    // Predicated region
    $region125: #{language_model_forward.1} parent=5 // pred_check
      %p2276 = pneg %p2275
    $region126: #{language_model_forward.1} parent=5 // pred_check_branch
      %2278 = sbr.rel (%p2276) target = $region128
    $region127: #{language_model_forward.1} parent=5 // pred_region
      %s2279 = ssub.s32 %s31, 2
      // Predicated region
      $region129: #{language_model_forward.1} parent=127 // pred_check
        %p2280 = pneg %p590
      $region130: #{language_model_forward.1} parent=127 // pred_check_branch
        %2282 = sbr.rel (%p2280) target = $region132
      $region131: #{language_model_forward.1} parent=127 // pred_region
        %p2283 = scmp.lt.s32.totalorder %s37, 1
        %s2284 = scalar_select %p2283, %s37, 1
        %s2285 = smul.addr %s2284, 8
        %s2286 = scalar_lea.vmem %s25, %s2285
      $region132: #{language_model_forward.1} parent=127 // pred_fallthru
        _
    $region128: #{language_model_forward.1} parent=5 // pred_fallthru
      _
  $region6: #{language_model_forward.1} parent=0 // loop_footer
    %s35 = sadd.s32 1, %s31
  $region7: #{language_model_forward.1} parent=0 // loop_footer_branch
    %30 = sbr.rel target = $region3
  $region8: #{language_model_forward.1} parent=0 // loop_exit
    _

</llo_original>
